<compile_context>
chip_gen: v7x
topology: tpu7x:2x2x1
jax: 0.10.0
libtpu: 0.0.40
codegen_flags: <defaults>
</compile_context>

<pallas_src>
import math

import jax
import jax.numpy as jnp
from jax.experimental import pallas as pl
from jax.experimental.pallas import tpu as pltpu

_VMEM_LIMIT = 64 * 1024 * 1024  # above 16/32 MiB scoped defaults, <= v7x physical 64 MiB


def _ceil_to(n, m):
    return ((n + m - 1) // m) * m


def _pick_tile(total, cap, unit):
    """Largest multiple of `unit` that divides `total` and is <= cap (total % unit == 0)."""
    t = min(cap, total)
    t -= t % unit
    while t > unit and total % t:
        t -= unit
    return max(t, unit)


def _pick_chunk(T, cap=16):
    """Timesteps per grid step.  Prefer a divisor of T; otherwise pad T up to a chunk
    multiple (returns (tc, Tp)) so we never fall back to 1-step chunks for prime T."""
    tc = min(T, cap)
    while tc > 1 and T % tc:
        tc -= 1
    if tc >= min(T, 8):
        return tc, T
    tc = min(T, cap)
    return tc, _ceil_to(T, tc)


# ----------------------------------------------------------------------------
# Generic tiled linear: y = x @ w_t + b with full-K reduction (no K padding).
# w_t / b are pre-padded at init so the output column count is a multiple of 128
# (lane-dense, unmasked stores).  Used for the hoisted LSTM gate projection and
# the decoder.
# ----------------------------------------------------------------------------
def _linear_kernel(x_ref, w_ref, b_ref, o_ref):
    acc = jnp.dot(x_ref[...], w_ref[...], preferred_element_type=jnp.float32)
    o_ref[...] = (acc + b_ref[...]).astype(o_ref.dtype)


def linear(x, w_t, b, *, out_dtype=jnp.float32, tm_cap=256, tn_cap=512):
    """x: (N, K); w_t: (K, Mp) pre-transposed & pre-padded (Mp % 128 == 0); b: (1, Mp) f32.
    Returns (N, Mp) in out_dtype."""
    N, K = x.shape
    Kw, Mp = w_t.shape
    assert Kw == K and Mp % 128 == 0

    if x.dtype != w_t.dtype:           # callers already pass matching dtypes (bf16)
        x = x.astype(w_t.dtype)

    tm = min(tm_cap, _ceil_to(N, 16))  # multiple of 16 -> full bf16 sublane tiles
    Np = _ceil_to(N, tm)
    if Np != N:
        x = jnp.pad(x, ((0, Np - N), (0, 0)))
    tn = _pick_tile(Mp, tn_cap, 128)

    out = pl.pallas_call(
        _linear_kernel,
        out_shape=jax.ShapeDtypeStruct((Np, Mp), out_dtype),
        grid_spec=pltpu.PrefetchScalarGridSpec(
            num_scalar_prefetch=0,
            grid=(Np // tm, Mp // tn),
            in_specs=[
                pl.BlockSpec((tm, K), lambda i, j: (i, 0)),   # activations (full K)
                pl.BlockSpec((K, tn), lambda i, j: (0, j)),   # weight column panel
                pl.BlockSpec((1, tn), lambda i, j: (0, j)),   # bias
            ],
            out_specs=pl.BlockSpec((tm, tn), lambda i, j: (i, j)),
        ),
        compiler_params=pltpu.CompilerParams(
            dimension_semantics=("parallel", "parallel"),
            vmem_limit_bytes=_VMEM_LIMIT),
    )(x, w_t, b)

    if Np != N:
        out = out[:N]
    return out


# ----------------------------------------------------------------------------
# LSTM recurrence kernel.  gx = x @ W_ih^T + (b_ih + b_hh) is precomputed (bf16).
# Each grid step processes a chunk of timesteps with a partially-unrolled fori_loop;
# h/c live in f32 VMEM scratch across the serial grid and h_T/c_T are written only
# on the last chunk.  Hidden size Hp is a multiple of 128 so gate slices and the
# per-step y store are lane-aligned.
# ----------------------------------------------------------------------------
def _make_recurrence_kernel(T_real, tc, Hp, needs_mask):
    def kernel(gx_ref, whh_ref, h0_ref, c0_ref, y_ref, hT_ref, cT_ref, h_sc, c_sc):
        chunk = pl.program_id(0)

        @pl.when(chunk == 0)
        def _():
            h_sc[...] = h0_ref[...]
            c_sc[...] = c0_ref[...]

        w_hh = whh_ref[...]                              # (Hp, 4Hp) bf16, hoisted

        def step(t, carry):
            h = h_sc[...]                                # (Bp, Hp) f32
            c = c_sc[...]
            gates = gx_ref[t].astype(jnp.float32) + jnp.dot(
                h.astype(jnp.bfloat16), w_hh, preferred_element_type=jnp.float32)
            i = jax.nn.sigmoid(gates[:, 0 * Hp:1 * Hp])
            f = jax.nn.sigmoid(gates[:, 1 * Hp:2 * Hp])
            g = jnp.tanh(gates[:, 2 * Hp:3 * Hp])
            o = jax.nn.sigmoid(gates[:, 3 * Hp:4 * Hp])
            c_new = f * c + i * g
            h_new = o * jnp.tanh(c_new)

            if needs_mask:
                # Only update state / emit output for real (non-padded) timesteps so the
                # final h_T/c_T come from timestep T-1 exactly.
                @pl.when(chunk * tc + t < T_real)
                def _():
                    h_sc[...] = h_new
                    c_sc[...] = c_new
                    y_ref[t] = h_new.astype(y_ref.dtype)
            else:
                h_sc[...] = h_new
                c_sc[...] = c_new
                y_ref[t] = h_new.astype(y_ref.dtype)
            return carry

        jax.lax.fori_loop(0, tc, step, 0, unroll=min(tc, 8))

        @pl.when(chunk == pl.num_programs(0) - 1)
        def _():
            hT_ref[...] = h_sc[...]
            cT_ref[...] = c_sc[...]

    return kernel


def lstm_layer(x, w_ih_t, w_hh_t, bias, h0, c0):
    """x: (T, Bp, K) bf16; w_ih_t: (K, 4Hp) bf16; w_hh_t: (Hp, 4Hp) bf16; bias: (1, 4Hp) f32;
    h0/c0: (Bp, Hp) f32.  Returns (y (T,Bp,Hp) bf16, h_T (Bp,Hp) f32, c_T (Bp,Hp) f32)."""
    T, Bp, K = x.shape
    Hp = w_hh_t.shape[0]

    # (1) Hoisted input projection: one big bf16 MXU matmul over all T*Bp rows (gx in bf16).
    gx = linear(x.reshape(T * Bp, K), w_ih_t, bias,
                out_dtype=jnp.bfloat16).reshape(T, Bp, 4 * Hp)

    tc, Tp = _pick_chunk(T)
    if Tp != T:
        gx = jnp.pad(gx, ((0, Tp - T), (0, 0), (0, 0)))
    kernel = _make_recurrence_kernel(T, tc, Hp, needs_mask=(Tp != T))

    # TODO(synk): for very large Hp on v7x (64 MiB VMEM), mark the grid-invariant
    # w_hh/h0/c0 BlockSpecs with pipeline_mode=pl.Buffered(1) to avoid double-buffering.
    y, hT, cT = pl.pallas_call(
        kernel,
        out_shape=(
            jax.ShapeDtypeStruct((Tp, Bp, Hp), jnp.bfloat16),
            jax.ShapeDtypeStruct((Bp, Hp), jnp.float32),
            jax.ShapeDtypeStruct((Bp, Hp), jnp.float32),
        ),
        grid_spec=pltpu.PrefetchScalarGridSpec(
            num_scalar_prefetch=0,
            grid=(Tp // tc,),
            in_specs=[
                pl.BlockSpec((tc, Bp, 4 * Hp), lambda n: (n, 0, 0)),  # gx chunk (bf16)
                pl.BlockSpec((Hp, 4 * Hp), lambda n: (0, 0)),         # W_hh^T (resident, bf16)
                pl.BlockSpec((Bp, Hp), lambda n: (0, 0)),             # h0
                pl.BlockSpec((Bp, Hp), lambda n: (0, 0)),             # c0
            ],
            out_specs=[
                pl.BlockSpec((tc, Bp, Hp), lambda n: (n, 0, 0)),      # y chunk (bf16)
                pl.BlockSpec((Bp, Hp), lambda n: (0, 0)),             # h_T
                pl.BlockSpec((Bp, Hp), lambda n: (0, 0)),             # c_T
            ],
            scratch_shapes=[
                pltpu.VMEM((Bp, Hp), jnp.float32),                    # h state (f32)
                pltpu.VMEM((Bp, Hp), jnp.float32),                    # c state (f32)
            ],
        ),
        compiler_params=pltpu.CompilerParams(
            dimension_semantics=("arbitrary",),                        # serial recurrence
            vmem_limit_bytes=_VMEM_LIMIT),
    )(gx, w_hh_t, h0, c0)

    if Tp != T:
        y = y[:T]
    return y, hT, cT


# ----------------------------------------------------------------------------
# Whole forward (jitted once): embedding gather glue -> LSTM stack -> decoder.
# Batch stays padded (multiple of 16) through all layers; only the final logits
# and h_T/c_T are sliced back.
# ----------------------------------------------------------------------------
def _forward(params, tokens, hidden):
    T, B = tokens.shape
    ntoken = params["enc_w"].shape[0]
    Bp = _ceil_to(B, 16)

    # embedded_dropout / LockedDropout are identity in eval mode (masks = None).
    emb = jnp.take(params["enc_w"], tokens, axis=0)                  # (T, B, ninp) gather glue
    if Bp != B:
        emb = jnp.pad(emb, ((0, 0), (0, Bp - B), (0, 0)))
    x = emb.astype(jnp.bfloat16)                                     # bf16 MXU operand

    new_hidden = []
    for l, layer in enumerate(params["lstm"]):
        h0 = hidden[l][0][0]                                         # (B, d_out)
        c0 = hidden[l][1][0]
        d_out = h0.shape[-1]
        Hp = layer["w_hh_t"].shape[0]
        if Bp != B or Hp != d_out:
            h0 = jnp.pad(h0, ((0, Bp - B), (0, Hp - d_out)))
            c0 = jnp.pad(c0, ((0, Bp - B), (0, Hp - d_out)))
        x, h_t, c_t = lstm_layer(x, layer["w_ih_t"], layer["w_hh_t"], layer["bias"], h0, c0)
        new_hidden.append((h_t[:B, :d_out][None], c_t[:B, :d_out][None]))

    Hp_last = x.shape[-1]
    decoded = linear(x.reshape(T * Bp, Hp_last), params["dec_w_t"], params["dec_b"],
                     out_dtype=jnp.float32)                          # (T*Bp, Mp) f32
    Mp = params["dec_w_t"].shape[1]
    logits = decoded.reshape(T, Bp, Mp)
    if Bp != B or Mp != ntoken:
        logits = logits[:, :B, :ntoken]
    return logits, new_hidden


_forward_jit = jax.jit(_forward)


class RNNModelPallas:
    def __init__(self, ntoken, ninp, nhid, nlayers, key):
        # The PyTorch decoder is nn.Linear(nhid, ntoken) while the last LSTM layer outputs
        # ninp (tie_weights trick) -- the forward only type-checks when ninp == nhid.
        assert ninp == nhid, "decoder input dim requires ninp == nhid"
        self.ntoken, self.ninp, self.nhid, self.nlayers = ntoken, ninp, nhid, nlayers

        keys = jax.random.split(key, 2 + 4 * nlayers)
        initrange = 0.1
        # encoder / decoder init mirrors init_weights(): uniform(-0.1, 0.1), bias = 0
        enc_w = jax.random.uniform(keys[0], (ntoken, ninp), jnp.float32, -initrange, initrange)
        dec_w = jax.random.uniform(keys[1], (ntoken, nhid), jnp.float32, -initrange, initrange)

        # One-time host-side weight prep: gate-blocked padding of the hidden dim to a
        # multiple of 128 (lane-aligned gate slices), pre-transpose, cast to bf16.
        lstm = []
        in_dim_padded = ninp                       # layer-0 input is the raw embedding width
        for l in range(nlayers):
            d_in = ninp if l == 0 else nhid
            d_out = nhid if l != nlayers - 1 else ninp
            Hp = _ceil_to(d_out, 128)
            Kin = in_dim_padded
            k = 1.0 / math.sqrt(d_out)
            kw = keys[2 + 4 * l: 2 + 4 * (l + 1)]
            # PyTorch layout: (4H, D) with gate order [i, f, g, o].
            w_ih = jax.random.uniform(kw[0], (4 * d_out, d_in), jnp.float32, -k, k)
            w_hh = jax.random.uniform(kw[1], (4 * d_out, d_out), jnp.float32, -k, k)
            b_ih = jax.random.uniform(kw[2], (4 * d_out,), jnp.float32, -k, k)
            b_hh = jax.random.uniform(kw[3], (4 * d_out,), jnp.float32, -k, k)

            w_ih_g = jnp.pad(w_ih.reshape(4, d_out, d_in),
                             ((0, 0), (0, Hp - d_out), (0, Kin - d_in)))
            w_ih_t = w_ih_g.reshape(4 * Hp, Kin).T.astype(jnp.bfloat16)       # (Kin, 4Hp)

            w_hh_g = jnp.pad(w_hh.reshape(4, d_out, d_out),
                             ((0, 0), (0, Hp - d_out), (0, Hp - d_out)))
            w_hh_t = w_hh_g.reshape(4 * Hp, Hp).T.astype(jnp.bfloat16)        # (Hp, 4Hp)

            bias = jnp.pad((b_ih + b_hh).reshape(4, d_out),
                           ((0, 0), (0, Hp - d_out))).reshape(1, 4 * Hp)      # f32, folded

            lstm.append(dict(w_ih_t=w_ih_t, w_hh_t=w_hh_t, bias=bias))
            in_dim_padded = Hp

        Hp_last = in_dim_padded
        Mp = _ceil_to(ntoken, 128)                 # lane-dense, unmasked decoder stores
        dec_w_t = jnp.pad(dec_w.T, ((0, Hp_last - nhid), (0, Mp - ntoken))).astype(jnp.bfloat16)
        dec_b = jnp.zeros((1, Mp), jnp.float32)

        self.params = dict(enc_w=enc_w, dec_w_t=dec_w_t, dec_b=dec_b, lstm=lstm)

    def init_hidden(self, bsz):
        hid = []
        for l in range(self.nlayers):
            d_out = self.nhid if l != self.nlayers - 1 else self.ninp
            hid.append((jnp.zeros((1, bsz, d_out), jnp.float32),
                        jnp.zeros((1, bsz, d_out), jnp.float32)))
        return hid

    def __call__(self, tokens, hidden):
        """tokens: (T, B) int32; hidden: list of (h (1,B,H_l), c (1,B,H_l))."""
        return _forward_jit(self.params, tokens, hidden)


if __name__ == "__main__":
    # small shapes consistent with the module
    ntoken, ninp, nhid, nlayers = 50, 32, 32, 2
    T, B = 8, 2

    key = jax.random.PRNGKey(0)
    k_model, k_tok = jax.random.split(key)

    model = RNNModelPallas(ntoken, ninp, nhid, nlayers, k_model)
    tokens = jax.random.randint(k_tok, (T, B), 0, ntoken, dtype=jnp.int32)
    hidden = model.init_hidden(B)

    result, new_hidden = model(tokens, hidden)
    jax.block_until_ready(result)
    jax.block_until_ready(new_hidden)

    assert result.shape == (T, B, ntoken)
    assert new_hidden[0][0].shape == (1, B, nhid)
    assert new_hidden[-1][0].shape == (1, B, ninp)
    print("KERNEL_OK")
</pallas_src>

<mosaic_0001>
module attributes {stable_mosaic.version = 11 : i64} {
  func.func @_linear_kernel(%arg0: i32, %arg1: i32, %arg2: memref<128x32xbf16, #tpu.memory_space<vmem>>, %arg3: memref<32x512xbf16, #tpu.memory_space<vmem>>, %arg4: memref<1x512xf32, #tpu.memory_space<vmem>>, %arg5: memref<128x512xbf16, #tpu.memory_space<vmem>>) attributes {dimension_semantics = [#tpu.dimension_semantics<parallel>, #tpu.dimension_semantics<parallel>], iteration_bounds = array<i64: 1, 1>, scalar_prefetch = 0 : i64, scratch_operands = 0 : i64, tpu.core_type = #tpu.core_type<tc>, window_params = [{transform_indices = @transform_0, window_bounds = array<i64: 128, 32>}, {transform_indices = @transform_1, window_bounds = array<i64: 32, 512>}, {transform_indices = @transform_2, window_bounds = array<i64: 1, 512>}, {transform_indices = @transform_3, window_bounds = array<i64: 128, 512>}]} {
    %c0 = arith.constant 0 : index
    %c0_0 = arith.constant 0 : index
    %0 = vector.load %arg2[%c0, %c0_0] : memref<128x32xbf16, #tpu.memory_space<vmem>>, vector<128x32xbf16>
    %c0_1 = arith.constant 0 : index
    %c0_2 = arith.constant 0 : index
    %1 = vector.load %arg3[%c0_1, %c0_2] : memref<32x512xbf16, #tpu.memory_space<vmem>>, vector<32x512xbf16>
    %cst = arith.constant dense<0.000000e+00> : vector<128x512xf32>
    %2 = tpu.matmul %0, %1, %cst {dimension_numbers = #tpu.dot_dimension_numbers<[1], [0], [0], [1], [0, 0, 1, 1], [], []>} : vector<128x32xbf16>, vector<32x512xbf16>, vector<128x512xf32> -> vector<128x512xf32>
    %c0_3 = arith.constant 0 : index
    %c0_4 = arith.constant 0 : index
    %3 = vector.load %arg4[%c0_3, %c0_4] : memref<1x512xf32, #tpu.memory_space<vmem>>, vector<1x512xf32>
    %4 = vector.broadcast %3 : vector<1x512xf32> to vector<128x512xf32>
    %5 = arith.addf %2, %4 : vector<128x512xf32>
    %6 = arith.truncf %5 : vector<128x512xf32> to vector<128x512xbf16>
    %c0_5 = arith.constant 0 : index
    %c0_6 = arith.constant 0 : index
    %7 = vector.load %arg5[%c0_5, %c0_6] : memref<128x512xbf16, #tpu.memory_space<vmem>>, vector<128x512xbf16>
    tpu.vector_store %arg5[%c0_5, %c0_6], %6 {strides = array<i32>} : memref<128x512xbf16, #tpu.memory_space<vmem>>, vector<128x512xbf16>,
    return
  }
  func.func @transform_0(%arg0: i32, %arg1: i32) -> (i32, i32) {
    %c0_i32 = arith.constant 0 : i32
    %c0_i32_0 = arith.constant 0 : i32
    return %arg0, %c0_i32 : i32, i32
  }
  func.func @transform_1(%arg0: i32, %arg1: i32) -> (i32, i32) {
    %c0_i32 = arith.constant 0 : i32
    %c0_i32_0 = arith.constant 0 : i32
    return %c0_i32, %arg1 : i32, i32
  }
  func.func @transform_2(%arg0: i32, %arg1: i32) -> (i32, i32) {
    %c0_i32 = arith.constant 0 : i32
    %c0_i32_0 = arith.constant 0 : i32
    return %c0_i32, %arg1 : i32, i32
  }
  func.func @transform_3(%arg0: i32, %arg1: i32) -> (i32, i32) {
    %c0_i32 = arith.constant 0 : i32
    return %arg0, %arg1 : i32, i32
  }
}

module attributes {stable_mosaic.version = 11 : i64} {
  func.func @_linear_kernel(%arg0: i32, %arg1: i32, %arg2: memref<128x128xbf16, #tpu.memory_space<vmem>>, %arg3: memref<128x512xbf16, #tpu.memory_space<vmem>>, %arg4: memref<1x512xf32, #tpu.memory_space<vmem>>, %arg5: memref<128x512xbf16, #tpu.memory_space<vmem>>) attributes {dimension_semantics = [#tpu.dimension_semantics<parallel>, #tpu.dimension_semantics<parallel>], iteration_bounds = array<i64: 1, 1>, scalar_prefetch = 0 : i64, scratch_operands = 0 : i64, tpu.core_type = #tpu.core_type<tc>, window_params = [{transform_indices = @transform_0, window_bounds = array<i64: 128, 128>}, {transform_indices = @transform_1, window_bounds = array<i64: 128, 512>}, {transform_indices = @transform_2, window_bounds = array<i64: 1, 512>}, {transform_indices = @transform_3, window_bounds = array<i64: 128, 512>}]} {
    %c0 = arith.constant 0 : index
    %c0_0 = arith.constant 0 : index
    %0 = vector.load %arg2[%c0, %c0_0] : memref<128x128xbf16, #tpu.memory_space<vmem>>, vector<128x128xbf16>
    %c0_1 = arith.constant 0 : index
    %c0_2 = arith.constant 0 : index
    %1 = vector.load %arg3[%c0_1, %c0_2] : memref<128x512xbf16, #tpu.memory_space<vmem>>, vector<128x512xbf16>
    %cst = arith.constant dense<0.000000e+00> : vector<128x512xf32>
    %2 = tpu.matmul %0, %1, %cst {dimension_numbers = #tpu.dot_dimension_numbers<[1], [0], [0], [1], [0, 0, 1, 1], [], []>} : vector<128x128xbf16>, vector<128x512xbf16>, vector<128x512xf32> -> vector<128x512xf32>
    %c0_3 = arith.constant 0 : index
    %c0_4 = arith.constant 0 : index
    %3 = vector.load %arg4[%c0_3, %c0_4] : memref<1x512xf32, #tpu.memory_space<vmem>>, vector<1x512xf32>
    %4 = vector.broadcast %3 : vector<1x512xf32> to vector<128x512xf32>
    %5 = arith.addf %2, %4 : vector<128x512xf32>
    %6 = arith.truncf %5 : vector<128x512xf32> to vector<128x512xbf16>
    %c0_5 = arith.constant 0 : index
    %c0_6 = arith.constant 0 : index
    %7 = vector.load %arg5[%c0_5, %c0_6] : memref<128x512xbf16, #tpu.memory_space<vmem>>, vector<128x512xbf16>
    tpu.vector_store %arg5[%c0_5, %c0_6], %6 {strides = array<i32>} : memref<128x512xbf16, #tpu.memory_space<vmem>>, vector<128x512xbf16>,
    return
  }
  func.func @transform_0(%arg0: i32, %arg1: i32) -> (i32, i32) {
    %c0_i32 = arith.constant 0 : i32
    %c0_i32_0 = arith.constant 0 : i32
    return %arg0, %c0_i32 : i32, i32
  }
  func.func @transform_1(%arg0: i32, %arg1: i32) -> (i32, i32) {
    %c0_i32 = arith.constant 0 : i32
    %c0_i32_0 = arith.constant 0 : i32
    return %c0_i32, %arg1 : i32, i32
  }
  func.func @transform_2(%arg0: i32, %arg1: i32) -> (i32, i32) {
    %c0_i32 = arith.constant 0 : i32
    %c0_i32_0 = arith.constant 0 : i32
    return %c0_i32, %arg1 : i32, i32
  }
  func.func @transform_3(%arg0: i32, %arg1: i32) -> (i32, i32) {
    %c0_i32 = arith.constant 0 : i32
    return %arg0, %arg1 : i32, i32
  }
}

module attributes {stable_mosaic.version = 11 : i64} {
  func.func @_linear_kernel(%arg0: i32, %arg1: i32, %arg2: memref<128x128xbf16, #tpu.memory_space<vmem>>, %arg3: memref<128x128xbf16, #tpu.memory_space<vmem>>, %arg4: memref<1x128xf32, #tpu.memory_space<vmem>>, %arg5: memref<128x128xf32, #tpu.memory_space<vmem>>) attributes {dimension_semantics = [#tpu.dimension_semantics<parallel>, #tpu.dimension_semantics<parallel>], iteration_bounds = array<i64: 1, 1>, scalar_prefetch = 0 : i64, scratch_operands = 0 : i64, tpu.core_type = #tpu.core_type<tc>, window_params = [{transform_indices = @transform_0, window_bounds = array<i64: 128, 128>}, {transform_indices = @transform_1, window_bounds = array<i64: 128, 128>}, {transform_indices = @transform_2, window_bounds = array<i64: 1, 128>}, {transform_indices = @transform_3, window_bounds = array<i64: 128, 128>}]} {
    %c0 = arith.constant 0 : index
    %c0_0 = arith.constant 0 : index
    %0 = vector.load %arg2[%c0, %c0_0] : memref<128x128xbf16, #tpu.memory_space<vmem>>, vector<128x128xbf16>
    %c0_1 = arith.constant 0 : index
    %c0_2 = arith.constant 0 : index
    %1 = vector.load %arg3[%c0_1, %c0_2] : memref<128x128xbf16, #tpu.memory_space<vmem>>, vector<128x128xbf16>
    %cst = arith.constant dense<0.000000e+00> : vector<128x128xf32>
    %2 = tpu.matmul %0, %1, %cst {dimension_numbers = #tpu.dot_dimension_numbers<[1], [0], [0], [1], [0, 0, 1, 1], [], []>} : vector<128x128xbf16>, vector<128x128xbf16>, vector<128x128xf32> -> vector<128x128xf32>
    %c0_3 = arith.constant 0 : index
    %c0_4 = arith.constant 0 : index
    %3 = vector.load %arg4[%c0_3, %c0_4] : memref<1x128xf32, #tpu.memory_space<vmem>>, vector<1x128xf32>
    %4 = vector.broadcast %3 : vector<1x128xf32> to vector<128x128xf32>
    %5 = arith.addf %2, %4 : vector<128x128xf32>
    %c0_5 = arith.constant 0 : index
    %c0_6 = arith.constant 0 : index
    %6 = vector.load %arg5[%c0_5, %c0_6] : memref<128x128xf32, #tpu.memory_space<vmem>>, vector<128x128xf32>
    tpu.vector_store %arg5[%c0_5, %c0_6], %5 {strides = array<i32>} : memref<128x128xf32, #tpu.memory_space<vmem>>, vector<128x128xf32>,
    return
  }
  func.func @transform_0(%arg0: i32, %arg1: i32) -> (i32, i32) {
    %c0_i32 = arith.constant 0 : i32
    %c0_i32_0 = arith.constant 0 : i32
    return %arg0, %c0_i32 : i32, i32
  }
  func.func @transform_1(%arg0: i32, %arg1: i32) -> (i32, i32) {
    %c0_i32 = arith.constant 0 : i32
    %c0_i32_0 = arith.constant 0 : i32
    return %c0_i32, %arg1 : i32, i32
  }
  func.func @transform_2(%arg0: i32, %arg1: i32) -> (i32, i32) {
    %c0_i32 = arith.constant 0 : i32
    %c0_i32_0 = arith.constant 0 : i32
    return %c0_i32, %arg1 : i32, i32
  }
  func.func @transform_3(%arg0: i32, %arg1: i32) -> (i32, i32) {
    %c0_i32 = arith.constant 0 : i32
    return %arg0, %arg1 : i32, i32
  }
}

module attributes {stable_mosaic.version = 11 : i64} {
  func.func @kernel(%arg0: i32, %arg1: memref<8x16x512xbf16, #tpu.memory_space<vmem>>, %arg2: memref<128x512xbf16, #tpu.memory_space<vmem>>, %arg3: memref<16x128xf32, #tpu.memory_space<vmem>>, %arg4: memref<16x128xf32, #tpu.memory_space<vmem>>, %arg5: memref<8x16x128xbf16, #tpu.memory_space<vmem>>, %arg6: memref<16x128xf32, #tpu.memory_space<vmem>>, %arg7: memref<16x128xf32, #tpu.memory_space<vmem>>, %arg8: memref<16x128xf32, #tpu.memory_space<vmem>>, %arg9: memref<16x128xf32, #tpu.memory_space<vmem>>) attributes {dimension_semantics = [#tpu.dimension_semantics<arbitrary>], iteration_bounds = array<i64: 1>, scalar_prefetch = 0 : i64, scratch_operands = 2 : i64, tpu.core_type = #tpu.core_type<tc>, window_params = [{transform_indices = @transform_0, window_bounds = array<i64: 8, 16, 512>}, {pipeline_mode = #tpu.pipeline_mode<synchronous>, transform_indices = @transform_1, window_bounds = array<i64: 128, 512>}, {pipeline_mode = #tpu.pipeline_mode<synchronous>, transform_indices = @transform_2, window_bounds = array<i64: 16, 128>}, {pipeline_mode = #tpu.pipeline_mode<synchronous>, transform_indices = @transform_3, window_bounds = array<i64: 16, 128>}, {transform_indices = @transform_4, window_bounds = array<i64: 8, 16, 128>}, {pipeline_mode = #tpu.pipeline_mode<synchronous>, transform_indices = @transform_5, window_bounds = array<i64: 16, 128>}, {pipeline_mode = #tpu.pipeline_mode<synchronous>, transform_indices = @transform_6, window_bounds = array<i64: 16, 128>}]} {
    %c0_i32 = arith.constant 0 : i32
    %0 = arith.cmpi eq, %arg0, %c0_i32 : i32
    %1 = arith.extui %0 : i1 to i32
    %c0_i32_0 = arith.constant 0 : i32
    %2 = arith.cmpi ne, %1, %c0_i32_0 : i32
    scf.if %2 {
      %c0_132 = arith.constant 0 : index
      %c0_133 = arith.constant 0 : index
      %335 = vector.load %arg3[%c0_132, %c0_133] : memref<16x128xf32, #tpu.memory_space<vmem>>, vector<16x128xf32>
      %c0_134 = arith.constant 0 : index
      %c0_135 = arith.constant 0 : index
      %336 = vector.load %arg8[%c0_134, %c0_135] : memref<16x128xf32, #tpu.memory_space<vmem>>, vector<16x128xf32>
      tpu.vector_store %arg8[%c0_134, %c0_135], %335 {strides = array<i32>} : memref<16x128xf32, #tpu.memory_space<vmem>>, vector<16x128xf32>,
      %c0_136 = arith.constant 0 : index
      %c0_137 = arith.constant 0 : index
      %337 = vector.load %arg4[%c0_136, %c0_137] : memref<16x128xf32, #tpu.memory_space<vmem>>, vector<16x128xf32>
      %c0_138 = arith.constant 0 : index
      %c0_139 = arith.constant 0 : index
      %338 = vector.load %arg9[%c0_138, %c0_139] : memref<16x128xf32, #tpu.memory_space<vmem>>, vector<16x128xf32>
      tpu.vector_store %arg9[%c0_138, %c0_139], %337 {strides = array<i32>} : memref<16x128xf32, #tpu.memory_space<vmem>>, vector<16x128xf32>,
    } else {
    }
    %c0 = arith.constant 0 : index
    %c0_1 = arith.constant 0 : index
    %3 = vector.load %arg2[%c0, %c0_1] : memref<128x512xbf16, #tpu.memory_space<vmem>>, vector<128x512xbf16>
    %c0_i32_2 = arith.constant 0 : i32
    %c0_3 = arith.constant 0 : index
    %c0_4 = arith.constant 0 : index
    %4 = vector.load %arg8[%c0_3, %c0_4] : memref<16x128xf32, #tpu.memory_space<vmem>>, vector<16x128xf32>
    %c0_5 = arith.constant 0 : index
    %c0_6 = arith.constant 0 : index
    %5 = vector.load %arg9[%c0_5, %c0_6] : memref<16x128xf32, #tpu.memory_space<vmem>>, vector<16x128xf32>
    %6 = arith.index_cast %c0_i32_2 : i32 to index
    %c0_7 = arith.constant 0 : index
    %c0_8 = arith.constant 0 : index
    %7 = vector.load %arg1[%6, %c0_7, %c0_8] : memref<8x16x512xbf16, #tpu.memory_space<vmem>>, vector<1x16x512xbf16>
    %8 = vector.shape_cast %7 : vector<1x16x512xbf16> to vector<16x512xbf16>
    %9 = arith.extf %8 : vector<16x512xbf16> to vector<16x512xf32>
    %10 = arith.truncf %4 : vector<16x128xf32> to vector<16x128xbf16>
    %cst = arith.constant dense<0.000000e+00> : vector<16x512xf32>
    %11 = tpu.matmul %10, %3, %cst {dimension_numbers = #tpu.dot_dimension_numbers<[1], [0], [0], [1], [0, 0, 1, 1], [], []>} : vector<16x128xbf16>, vector<128x512xbf16>, vector<16x512xf32> -> vector<16x512xf32>
    %12 = arith.addf %9, %11 : vector<16x512xf32>
    %13 = vector.extract_strided_slice %12 {offsets = [0, 0], sizes = [16, 128], strides = [1, 1]} : vector<16x512xf32> to vector<16x128xf32>
    %14 = arith.negf %13 : vector<16x128xf32>
    %15 = math.exp %14 : vector<16x128xf32>
    %cst_9 = arith.constant 1.000000e+00 : f32
    %16 = vector.broadcast %cst_9 : f32 to vector<16x128xf32>
    %17 = arith.addf %16, %15 : vector<16x128xf32>
    %18 = arith.divf %16, %17 : vector<16x128xf32>
    %19 = vector.extract_strided_slice %12 {offsets = [0, 128], sizes = [16, 128], strides = [1, 1]} : vector<16x512xf32> to vector<16x128xf32>
    %20 = arith.negf %19 : vector<16x128xf32>
    %21 = math.exp %20 : vector<16x128xf32>
    %cst_10 = arith.constant 1.000000e+00 : f32
    %22 = vector.broadcast %cst_10 : f32 to vector<16x128xf32>
    %23 = arith.addf %22, %21 : vector<16x128xf32>
    %24 = arith.divf %22, %23 : vector<16x128xf32>
    %25 = vector.extract_strided_slice %12 {offsets = [0, 256], sizes = [16, 128], strides = [1, 1]} : vector<16x512xf32> to vector<16x128xf32>
    %26 = math.tanh %25 : vector<16x128xf32>
    %27 = vector.extract_strided_slice %12 {offsets = [0, 384], sizes = [16, 128], strides = [1, 1]} : vector<16x512xf32> to vector<16x128xf32>
    %28 = arith.negf %27 : vector<16x128xf32>
    %29 = math.exp %28 : vector<16x128xf32>
    %cst_11 = arith.constant 1.000000e+00 : f32
    %30 = vector.broadcast %cst_11 : f32 to vector<16x128xf32>
    %31 = arith.addf %30, %29 : vector<16x128xf32>
    %32 = arith.divf %30, %31 : vector<16x128xf32>
    %33 = arith.mulf %24, %5 : vector<16x128xf32>
    %34 = arith.mulf %18, %26 : vector<16x128xf32>
    %35 = arith.addf %33, %34 : vector<16x128xf32>
    %36 = math.tanh %35 : vector<16x128xf32>
    %37 = arith.mulf %32, %36 : vector<16x128xf32>
    %c0_12 = arith.constant 0 : index
    %c0_13 = arith.constant 0 : index
    %38 = vector.load %arg8[%c0_12, %c0_13] : memref<16x128xf32, #tpu.memory_space<vmem>>, vector<16x128xf32>
    tpu.vector_store %arg8[%c0_12, %c0_13], %37 {strides = array<i32>} : memref<16x128xf32, #tpu.memory_space<vmem>>, vector<16x128xf32>,
    %c0_14 = arith.constant 0 : index
    %c0_15 = arith.constant 0 : index
    %39 = vector.load %arg9[%c0_14, %c0_15] : memref<16x128xf32, #tpu.memory_space<vmem>>, vector<16x128xf32>
    tpu.vector_store %arg9[%c0_14, %c0_15], %35 {strides = array<i32>} : memref<16x128xf32, #tpu.memory_space<vmem>>, vector<16x128xf32>,
    %40 = arith.truncf %37 : vector<16x128xf32> to vector<16x128xbf16>
    %41 = arith.index_cast %c0_i32_2 : i32 to index
    %c0_16 = arith.constant 0 : index
    %c0_17 = arith.constant 0 : index
    %42 = vector.load %arg5[%41, %c0_16, %c0_17] : memref<8x16x128xbf16, #tpu.memory_space<vmem>>, vector<1x16x128xbf16>
    %43 = vector.shape_cast %42 : vector<1x16x128xbf16> to vector<16x128xbf16>
    %44 = vector.shape_cast %40 : vector<16x128xbf16> to vector<1x16x128xbf16>
    tpu.vector_store %arg5[%41, %c0_16, %c0_17], %44 {strides = array<i32>} : memref<8x16x128xbf16, #tpu.memory_space<vmem>>, vector<1x16x128xbf16>,
    %c1_i32 = arith.constant 1 : i32
    %c0_18 = arith.constant 0 : index
    %c0_19 = arith.constant 0 : index
    %45 = vector.load %arg8[%c0_18, %c0_19] : memref<16x128xf32, #tpu.memory_space<vmem>>, vector<16x128xf32>
    %c0_20 = arith.constant 0 : index
    %c0_21 = arith.constant 0 : index
    %46 = vector.load %arg9[%c0_20, %c0_21] : memref<16x128xf32, #tpu.memory_space<vmem>>, vector<16x128xf32>
    %47 = arith.index_cast %c1_i32 : i32 to index
    %c0_22 = arith.constant 0 : index
    %c0_23 = arith.constant 0 : index
    %48 = vector.load %arg1[%47, %c0_22, %c0_23] : memref<8x16x512xbf16, #tpu.memory_space<vmem>>, vector<1x16x512xbf16>
    %49 = vector.shape_cast %48 : vector<1x16x512xbf16> to vector<16x512xbf16>
    %50 = arith.extf %49 : vector<16x512xbf16> to vector<16x512xf32>
    %51 = arith.truncf %45 : vector<16x128xf32> to vector<16x128xbf16>
    %cst_24 = arith.constant dense<0.000000e+00> : vector<16x512xf32>
    %52 = tpu.matmul %51, %3, %cst_24 {dimension_numbers = #tpu.dot_dimension_numbers<[1], [0], [0], [1], [0, 0, 1, 1], [], []>} : vector<16x128xbf16>, vector<128x512xbf16>, vector<16x512xf32> -> vector<16x512xf32>
    %53 = arith.addf %50, %52 : vector<16x512xf32>
    %54 = vector.extract_strided_slice %53 {offsets = [0, 0], sizes = [16, 128], strides = [1, 1]} : vector<16x512xf32> to vector<16x128xf32>
    %55 = arith.negf %54 : vector<16x128xf32>
    %56 = math.exp %55 : vector<16x128xf32>
    %cst_25 = arith.constant 1.000000e+00 : f32
    %57 = vector.broadcast %cst_25 : f32 to vector<16x128xf32>
    %58 = arith.addf %57, %56 : vector<16x128xf32>
    %59 = arith.divf %57, %58 : vector<16x128xf32>
    %60 = vector.extract_strided_slice %53 {offsets = [0, 128], sizes = [16, 128], strides = [1, 1]} : vector<16x512xf32> to vector<16x128xf32>
    %61 = arith.negf %60 : vector<16x128xf32>
    %62 = math.exp %61 : vector<16x128xf32>
    %cst_26 = arith.constant 1.000000e+00 : f32
    %63 = vector.broadcast %cst_26 : f32 to vector<16x128xf32>
    %64 = arith.addf %63, %62 : vector<16x128xf32>
    %65 = arith.divf %63, %64 : vector<16x128xf32>
    %66 = vector.extract_strided_slice %53 {offsets = [0, 256], sizes = [16, 128], strides = [1, 1]} : vector<16x512xf32> to vector<16x128xf32>
    %67 = math.tanh %66 : vector<16x128xf32>
    %68 = vector.extract_strided_slice %53 {offsets = [0, 384], sizes = [16, 128], strides = [1, 1]} : vector<16x512xf32> to vector<16x128xf32>
    %69 = arith.negf %68 : vector<16x128xf32>
    %70 = math.exp %69 : vector<16x128xf32>
    %cst_27 = arith.constant 1.000000e+00 : f32
    %71 = vector.broadcast %cst_27 : f32 to vector<16x128xf32>
    %72 = arith.addf %71, %70 : vector<16x128xf32>
    %73 = arith.divf %71, %72 : vector<16x128xf32>
    %74 = arith.mulf %65, %46 : vector<16x128xf32>
    %75 = arith.mulf %59, %67 : vector<16x128xf32>
    %76 = arith.addf %74, %75 : vector<16x128xf32>
    %77 = math.tanh %76 : vector<16x128xf32>
    %78 = arith.mulf %73, %77 : vector<16x128xf32>
    %c0_28 = arith.constant 0 : index
    %c0_29 = arith.constant 0 : index
    %79 = vector.load %arg8[%c0_28, %c0_29] : memref<16x128xf32, #tpu.memory_space<vmem>>, vector<16x128xf32>
    tpu.vector_store %arg8[%c0_28, %c0_29], %78 {strides = array<i32>} : memref<16x128xf32, #tpu.memory_space<vmem>>, vector<16x128xf32>,
    %c0_30 = arith.constant 0 : index
    %c0_31 = arith.constant 0 : index
    %80 = vector.load %arg9[%c0_30, %c0_31] : memref<16x128xf32, #tpu.memory_space<vmem>>, vector<16x128xf32>
    tpu.vector_store %arg9[%c0_30, %c0_31], %76 {strides = array<i32>} : memref<16x128xf32, #tpu.memory_space<vmem>>, vector<16x128xf32>,
    %81 = arith.truncf %78 : vector<16x128xf32> to vector<16x128xbf16>
    %82 = arith.index_cast %c1_i32 : i32 to index
    %c0_32 = arith.constant 0 : index
    %c0_33 = arith.constant 0 : index
    %83 = vector.load %arg5[%82, %c0_32, %c0_33] : memref<8x16x128xbf16, #tpu.memory_space<vmem>>, vector<1x16x128xbf16>
    %84 = vector.shape_cast %83 : vector<1x16x128xbf16> to vector<16x128xbf16>
    %85 = vector.shape_cast %81 : vector<16x128xbf16> to vector<1x16x128xbf16>
    tpu.vector_store %arg5[%82, %c0_32, %c0_33], %85 {strides = array<i32>} : memref<8x16x128xbf16, #tpu.memory_space<vmem>>, vector<1x16x128xbf16>,
    %c2_i32 = arith.constant 2 : i32
    %c0_34 = arith.constant 0 : index
    %c0_35 = arith.constant 0 : index
    %86 = vector.load %arg8[%c0_34, %c0_35] : memref<16x128xf32, #tpu.memory_space<vmem>>, vector<16x128xf32>
    %c0_36 = arith.constant 0 : index
    %c0_37 = arith.constant 0 : index
    %87 = vector.load %arg9[%c0_36, %c0_37] : memref<16x128xf32, #tpu.memory_space<vmem>>, vector<16x128xf32>
    %88 = arith.index_cast %c2_i32 : i32 to index
    %c0_38 = arith.constant 0 : index
    %c0_39 = arith.constant 0 : index
    %89 = vector.load %arg1[%88, %c0_38, %c0_39] : memref<8x16x512xbf16, #tpu.memory_space<vmem>>, vector<1x16x512xbf16>
    %90 = vector.shape_cast %89 : vector<1x16x512xbf16> to vector<16x512xbf16>
    %91 = arith.extf %90 : vector<16x512xbf16> to vector<16x512xf32>
    %92 = arith.truncf %86 : vector<16x128xf32> to vector<16x128xbf16>
    %cst_40 = arith.constant dense<0.000000e+00> : vector<16x512xf32>
    %93 = tpu.matmul %92, %3, %cst_40 {dimension_numbers = #tpu.dot_dimension_numbers<[1], [0], [0], [1], [0, 0, 1, 1], [], []>} : vector<16x128xbf16>, vector<128x512xbf16>, vector<16x512xf32> -> vector<16x512xf32>
    %94 = arith.addf %91, %93 : vector<16x512xf32>
    %95 = vector.extract_strided_slice %94 {offsets = [0, 0], sizes = [16, 128], strides = [1, 1]} : vector<16x512xf32> to vector<16x128xf32>
    %96 = arith.negf %95 : vector<16x128xf32>
    %97 = math.exp %96 : vector<16x128xf32>
    %cst_41 = arith.constant 1.000000e+00 : f32
    %98 = vector.broadcast %cst_41 : f32 to vector<16x128xf32>
    %99 = arith.addf %98, %97 : vector<16x128xf32>
    %100 = arith.divf %98, %99 : vector<16x128xf32>
    %101 = vector.extract_strided_slice %94 {offsets = [0, 128], sizes = [16, 128], strides = [1, 1]} : vector<16x512xf32> to vector<16x128xf32>
    %102 = arith.negf %101 : vector<16x128xf32>
    %103 = math.exp %102 : vector<16x128xf32>
    %cst_42 = arith.constant 1.000000e+00 : f32
    %104 = vector.broadcast %cst_42 : f32 to vector<16x128xf32>
    %105 = arith.addf %104, %103 : vector<16x128xf32>
    %106 = arith.divf %104, %105 : vector<16x128xf32>
    %107 = vector.extract_strided_slice %94 {offsets = [0, 256], sizes = [16, 128], strides = [1, 1]} : vector<16x512xf32> to vector<16x128xf32>
    %108 = math.tanh %107 : vector<16x128xf32>
    %109 = vector.extract_strided_slice %94 {offsets = [0, 384], sizes = [16, 128], strides = [1, 1]} : vector<16x512xf32> to vector<16x128xf32>
    %110 = arith.negf %109 : vector<16x128xf32>
    %111 = math.exp %110 : vector<16x128xf32>
    %cst_43 = arith.constant 1.000000e+00 : f32
    %112 = vector.broadcast %cst_43 : f32 to vector<16x128xf32>
    %113 = arith.addf %112, %111 : vector<16x128xf32>
    %114 = arith.divf %112, %113 : vector<16x128xf32>
    %115 = arith.mulf %106, %87 : vector<16x128xf32>
    %116 = arith.mulf %100, %108 : vector<16x128xf32>
    %117 = arith.addf %115, %116 : vector<16x128xf32>
    %118 = math.tanh %117 : vector<16x128xf32>
    %119 = arith.mulf %114, %118 : vector<16x128xf32>
    %c0_44 = arith.constant 0 : index
    %c0_45 = arith.constant 0 : index
    %120 = vector.load %arg8[%c0_44, %c0_45] : memref<16x128xf32, #tpu.memory_space<vmem>>, vector<16x128xf32>
    tpu.vector_store %arg8[%c0_44, %c0_45], %119 {strides = array<i32>} : memref<16x128xf32, #tpu.memory_space<vmem>>, vector<16x128xf32>,
    %c0_46 = arith.constant 0 : index
    %c0_47 = arith.constant 0 : index
    %121 = vector.load %arg9[%c0_46, %c0_47] : memref<16x128xf32, #tpu.memory_space<vmem>>, vector<16x128xf32>
    tpu.vector_store %arg9[%c0_46, %c0_47], %117 {strides = array<i32>} : memref<16x128xf32, #tpu.memory_space<vmem>>, vector<16x128xf32>,
    %122 = arith.truncf %119 : vector<16x128xf32> to vector<16x128xbf16>
    %123 = arith.index_cast %c2_i32 : i32 to index
    %c0_48 = arith.constant 0 : index
    %c0_49 = arith.constant 0 : index
    %124 = vector.load %arg5[%123, %c0_48, %c0_49] : memref<8x16x128xbf16, #tpu.memory_space<vmem>>, vector<1x16x128xbf16>
    %125 = vector.shape_cast %124 : vector<1x16x128xbf16> to vector<16x128xbf16>
    %126 = vector.shape_cast %122 : vector<16x128xbf16> to vector<1x16x128xbf16>
    tpu.vector_store %arg5[%123, %c0_48, %c0_49], %126 {strides = array<i32>} : memref<8x16x128xbf16, #tpu.memory_space<vmem>>, vector<1x16x128xbf16>,
    %c3_i32 = arith.constant 3 : i32
    %c0_50 = arith.constant 0 : index
    %c0_51 = arith.constant 0 : index
    %127 = vector.load %arg8[%c0_50, %c0_51] : memref<16x128xf32, #tpu.memory_space<vmem>>, vector<16x128xf32>
    %c0_52 = arith.constant 0 : index
    %c0_53 = arith.constant 0 : index
    %128 = vector.load %arg9[%c0_52, %c0_53] : memref<16x128xf32, #tpu.memory_space<vmem>>, vector<16x128xf32>
    %129 = arith.index_cast %c3_i32 : i32 to index
    %c0_54 = arith.constant 0 : index
    %c0_55 = arith.constant 0 : index
    %130 = vector.load %arg1[%129, %c0_54, %c0_55] : memref<8x16x512xbf16, #tpu.memory_space<vmem>>, vector<1x16x512xbf16>
    %131 = vector.shape_cast %130 : vector<1x16x512xbf16> to vector<16x512xbf16>
    %132 = arith.extf %131 : vector<16x512xbf16> to vector<16x512xf32>
    %133 = arith.truncf %127 : vector<16x128xf32> to vector<16x128xbf16>
    %cst_56 = arith.constant dense<0.000000e+00> : vector<16x512xf32>
    %134 = tpu.matmul %133, %3, %cst_56 {dimension_numbers = #tpu.dot_dimension_numbers<[1], [0], [0], [1], [0, 0, 1, 1], [], []>} : vector<16x128xbf16>, vector<128x512xbf16>, vector<16x512xf32> -> vector<16x512xf32>
    %135 = arith.addf %132, %134 : vector<16x512xf32>
    %136 = vector.extract_strided_slice %135 {offsets = [0, 0], sizes = [16, 128], strides = [1, 1]} : vector<16x512xf32> to vector<16x128xf32>
    %137 = arith.negf %136 : vector<16x128xf32>
    %138 = math.exp %137 : vector<16x128xf32>
    %cst_57 = arith.constant 1.000000e+00 : f32
    %139 = vector.broadcast %cst_57 : f32 to vector<16x128xf32>
    %140 = arith.addf %139, %138 : vector<16x128xf32>
    %141 = arith.divf %139, %140 : vector<16x128xf32>
    %142 = vector.extract_strided_slice %135 {offsets = [0, 128], sizes = [16, 128], strides = [1, 1]} : vector<16x512xf32> to vector<16x128xf32>
    %143 = arith.negf %142 : vector<16x128xf32>
    %144 = math.exp %143 : vector<16x128xf32>
    %cst_58 = arith.constant 1.000000e+00 : f32
    %145 = vector.broadcast %cst_58 : f32 to vector<16x128xf32>
    %146 = arith.addf %145, %144 : vector<16x128xf32>
    %147 = arith.divf %145, %146 : vector<16x128xf32>
    %148 = vector.extract_strided_slice %135 {offsets = [0, 256], sizes = [16, 128], strides = [1, 1]} : vector<16x512xf32> to vector<16x128xf32>
    %149 = math.tanh %148 : vector<16x128xf32>
    %150 = vector.extract_strided_slice %135 {offsets = [0, 384], sizes = [16, 128], strides = [1, 1]} : vector<16x512xf32> to vector<16x128xf32>
    %151 = arith.negf %150 : vector<16x128xf32>
    %152 = math.exp %151 : vector<16x128xf32>
    %cst_59 = arith.constant 1.000000e+00 : f32
    %153 = vector.broadcast %cst_59 : f32 to vector<16x128xf32>
    %154 = arith.addf %153, %152 : vector<16x128xf32>
    %155 = arith.divf %153, %154 : vector<16x128xf32>
    %156 = arith.mulf %147, %128 : vector<16x128xf32>
    %157 = arith.mulf %141, %149 : vector<16x128xf32>
    %158 = arith.addf %156, %157 : vector<16x128xf32>
    %159 = math.tanh %158 : vector<16x128xf32>
    %160 = arith.mulf %155, %159 : vector<16x128xf32>
    %c0_60 = arith.constant 0 : index
    %c0_61 = arith.constant 0 : index
    %161 = vector.load %arg8[%c0_60, %c0_61] : memref<16x128xf32, #tpu.memory_space<vmem>>, vector<16x128xf32>
    tpu.vector_store %arg8[%c0_60, %c0_61], %160 {strides = array<i32>} : memref<16x128xf32, #tpu.memory_space<vmem>>, vector<16x128xf32>,
    %c0_62 = arith.constant 0 : index
    %c0_63 = arith.constant 0 : index
    %162 = vector.load %arg9[%c0_62, %c0_63] : memref<16x128xf32, #tpu.memory_space<vmem>>, vector<16x128xf32>
    tpu.vector_store %arg9[%c0_62, %c0_63], %158 {strides = array<i32>} : memref<16x128xf32, #tpu.memory_space<vmem>>, vector<16x128xf32>,
    %163 = arith.truncf %160 : vector<16x128xf32> to vector<16x128xbf16>
    %164 = arith.index_cast %c3_i32 : i32 to index
    %c0_64 = arith.constant 0 : index
    %c0_65 = arith.constant 0 : index
    %165 = vector.load %arg5[%164, %c0_64, %c0_65] : memref<8x16x128xbf16, #tpu.memory_space<vmem>>, vector<1x16x128xbf16>
    %166 = vector.shape_cast %165 : vector<1x16x128xbf16> to vector<16x128xbf16>
    %167 = vector.shape_cast %163 : vector<16x128xbf16> to vector<1x16x128xbf16>
    tpu.vector_store %arg5[%164, %c0_64, %c0_65], %167 {strides = array<i32>} : memref<8x16x128xbf16, #tpu.memory_space<vmem>>, vector<1x16x128xbf16>,
    %c4_i32 = arith.constant 4 : i32
    %c0_66 = arith.constant 0 : index
    %c0_67 = arith.constant 0 : index
    %168 = vector.load %arg8[%c0_66, %c0_67] : memref<16x128xf32, #tpu.memory_space<vmem>>, vector<16x128xf32>
    %c0_68 = arith.constant 0 : index
    %c0_69 = arith.constant 0 : index
    %169 = vector.load %arg9[%c0_68, %c0_69] : memref<16x128xf32, #tpu.memory_space<vmem>>, vector<16x128xf32>
    %170 = arith.index_cast %c4_i32 : i32 to index
    %c0_70 = arith.constant 0 : index
    %c0_71 = arith.constant 0 : index
    %171 = vector.load %arg1[%170, %c0_70, %c0_71] : memref<8x16x512xbf16, #tpu.memory_space<vmem>>, vector<1x16x512xbf16>
    %172 = vector.shape_cast %171 : vector<1x16x512xbf16> to vector<16x512xbf16>
    %173 = arith.extf %172 : vector<16x512xbf16> to vector<16x512xf32>
    %174 = arith.truncf %168 : vector<16x128xf32> to vector<16x128xbf16>
    %cst_72 = arith.constant dense<0.000000e+00> : vector<16x512xf32>
    %175 = tpu.matmul %174, %3, %cst_72 {dimension_numbers = #tpu.dot_dimension_numbers<[1], [0], [0], [1], [0, 0, 1, 1], [], []>} : vector<16x128xbf16>, vector<128x512xbf16>, vector<16x512xf32> -> vector<16x512xf32>
    %176 = arith.addf %173, %175 : vector<16x512xf32>
    %177 = vector.extract_strided_slice %176 {offsets = [0, 0], sizes = [16, 128], strides = [1, 1]} : vector<16x512xf32> to vector<16x128xf32>
    %178 = arith.negf %177 : vector<16x128xf32>
    %179 = math.exp %178 : vector<16x128xf32>
    %cst_73 = arith.constant 1.000000e+00 : f32
    %180 = vector.broadcast %cst_73 : f32 to vector<16x128xf32>
    %181 = arith.addf %180, %179 : vector<16x128xf32>
    %182 = arith.divf %180, %181 : vector<16x128xf32>
    %183 = vector.extract_strided_slice %176 {offsets = [0, 128], sizes = [16, 128], strides = [1, 1]} : vector<16x512xf32> to vector<16x128xf32>
    %184 = arith.negf %183 : vector<16x128xf32>
    %185 = math.exp %184 : vector<16x128xf32>
    %cst_74 = arith.constant 1.000000e+00 : f32
    %186 = vector.broadcast %cst_74 : f32 to vector<16x128xf32>
    %187 = arith.addf %186, %185 : vector<16x128xf32>
    %188 = arith.divf %186, %187 : vector<16x128xf32>
    %189 = vector.extract_strided_slice %176 {offsets = [0, 256], sizes = [16, 128], strides = [1, 1]} : vector<16x512xf32> to vector<16x128xf32>
    %190 = math.tanh %189 : vector<16x128xf32>
    %191 = vector.extract_strided_slice %176 {offsets = [0, 384], sizes = [16, 128], strides = [1, 1]} : vector<16x512xf32> to vector<16x128xf32>
    %192 = arith.negf %191 : vector<16x128xf32>
    %193 = math.exp %192 : vector<16x128xf32>
    %cst_75 = arith.constant 1.000000e+00 : f32
    %194 = vector.broadcast %cst_75 : f32 to vector<16x128xf32>
    %195 = arith.addf %194, %193 : vector<16x128xf32>
    %196 = arith.divf %194, %195 : vector<16x128xf32>
    %197 = arith.mulf %188, %169 : vector<16x128xf32>
    %198 = arith.mulf %182, %190 : vector<16x128xf32>
    %199 = arith.addf %197, %198 : vector<16x128xf32>
    %200 = math.tanh %199 : vector<16x128xf32>
    %201 = arith.mulf %196, %200 : vector<16x128xf32>
    %c0_76 = arith.constant 0 : index
    %c0_77 = arith.constant 0 : index
    %202 = vector.load %arg8[%c0_76, %c0_77] : memref<16x128xf32, #tpu.memory_space<vmem>>, vector<16x128xf32>
    tpu.vector_store %arg8[%c0_76, %c0_77], %201 {strides = array<i32>} : memref<16x128xf32, #tpu.memory_space<vmem>>, vector<16x128xf32>,
    %c0_78 = arith.constant 0 : index
    %c0_79 = arith.constant 0 : index
    %203 = vector.load %arg9[%c0_78, %c0_79] : memref<16x128xf32, #tpu.memory_space<vmem>>, vector<16x128xf32>
    tpu.vector_store %arg9[%c0_78, %c0_79], %199 {strides = array<i32>} : memref<16x128xf32, #tpu.memory_space<vmem>>, vector<16x128xf32>,
    %204 = arith.truncf %201 : vector<16x128xf32> to vector<16x128xbf16>
    %205 = arith.index_cast %c4_i32 : i32 to index
    %c0_80 = arith.constant 0 : index
    %c0_81 = arith.constant 0 : index
    %206 = vector.load %arg5[%205, %c0_80, %c0_81] : memref<8x16x128xbf16, #tpu.memory_space<vmem>>, vector<1x16x128xbf16>
    %207 = vector.shape_cast %206 : vector<1x16x128xbf16> to vector<16x128xbf16>
    %208 = vector.shape_cast %204 : vector<16x128xbf16> to vector<1x16x128xbf16>
    tpu.vector_store %arg5[%205, %c0_80, %c0_81], %208 {strides = array<i32>} : memref<8x16x128xbf16, #tpu.memory_space<vmem>>, vector<1x16x128xbf16>,
    %c5_i32 = arith.constant 5 : i32
    %c0_82 = arith.constant 0 : index
    %c0_83 = arith.constant 0 : index
    %209 = vector.load %arg8[%c0_82, %c0_83] : memref<16x128xf32, #tpu.memory_space<vmem>>, vector<16x128xf32>
    %c0_84 = arith.constant 0 : index
    %c0_85 = arith.constant 0 : index
    %210 = vector.load %arg9[%c0_84, %c0_85] : memref<16x128xf32, #tpu.memory_space<vmem>>, vector<16x128xf32>
    %211 = arith.index_cast %c5_i32 : i32 to index
    %c0_86 = arith.constant 0 : index
    %c0_87 = arith.constant 0 : index
    %212 = vector.load %arg1[%211, %c0_86, %c0_87] : memref<8x16x512xbf16, #tpu.memory_space<vmem>>, vector<1x16x512xbf16>
    %213 = vector.shape_cast %212 : vector<1x16x512xbf16> to vector<16x512xbf16>
    %214 = arith.extf %213 : vector<16x512xbf16> to vector<16x512xf32>
    %215 = arith.truncf %209 : vector<16x128xf32> to vector<16x128xbf16>
    %cst_88 = arith.constant dense<0.000000e+00> : vector<16x512xf32>
    %216 = tpu.matmul %215, %3, %cst_88 {dimension_numbers = #tpu.dot_dimension_numbers<[1], [0], [0], [1], [0, 0, 1, 1], [], []>} : vector<16x128xbf16>, vector<128x512xbf16>, vector<16x512xf32> -> vector<16x512xf32>
    %217 = arith.addf %214, %216 : vector<16x512xf32>
    %218 = vector.extract_strided_slice %217 {offsets = [0, 0], sizes = [16, 128], strides = [1, 1]} : vector<16x512xf32> to vector<16x128xf32>
    %219 = arith.negf %218 : vector<16x128xf32>
    %220 = math.exp %219 : vector<16x128xf32>
    %cst_89 = arith.constant 1.000000e+00 : f32
    %221 = vector.broadcast %cst_89 : f32 to vector<16x128xf32>
    %222 = arith.addf %221, %220 : vector<16x128xf32>
    %223 = arith.divf %221, %222 : vector<16x128xf32>
    %224 = vector.extract_strided_slice %217 {offsets = [0, 128], sizes = [16, 128], strides = [1, 1]} : vector<16x512xf32> to vector<16x128xf32>
    %225 = arith.negf %224 : vector<16x128xf32>
    %226 = math.exp %225 : vector<16x128xf32>
    %cst_90 = arith.constant 1.000000e+00 : f32
    %227 = vector.broadcast %cst_90 : f32 to vector<16x128xf32>
    %228 = arith.addf %227, %226 : vector<16x128xf32>
    %229 = arith.divf %227, %228 : vector<16x128xf32>
    %230 = vector.extract_strided_slice %217 {offsets = [0, 256], sizes = [16, 128], strides = [1, 1]} : vector<16x512xf32> to vector<16x128xf32>
    %231 = math.tanh %230 : vector<16x128xf32>
    %232 = vector.extract_strided_slice %217 {offsets = [0, 384], sizes = [16, 128], strides = [1, 1]} : vector<16x512xf32> to vector<16x128xf32>
    %233 = arith.negf %232 : vector<16x128xf32>
    %234 = math.exp %233 : vector<16x128xf32>
    %cst_91 = arith.constant 1.000000e+00 : f32
    %235 = vector.broadcast %cst_91 : f32 to vector<16x128xf32>
    %236 = arith.addf %235, %234 : vector<16x128xf32>
    %237 = arith.divf %235, %236 : vector<16x128xf32>
    %238 = arith.mulf %229, %210 : vector<16x128xf32>
    %239 = arith.mulf %223, %231 : vector<16x128xf32>
    %240 = arith.addf %238, %239 : vector<16x128xf32>
    %241 = math.tanh %240 : vector<16x128xf32>
    %242 = arith.mulf %237, %241 : vector<16x128xf32>
    %c0_92 = arith.constant 0 : index
    %c0_93 = arith.constant 0 : index
    %243 = vector.load %arg8[%c0_92, %c0_93] : memref<16x128xf32, #tpu.memory_space<vmem>>, vector<16x128xf32>
    tpu.vector_store %arg8[%c0_92, %c0_93], %242 {strides = array<i32>} : memref<16x128xf32, #tpu.memory_space<vmem>>, vector<16x128xf32>,
    %c0_94 = arith.constant 0 : index
    %c0_95 = arith.constant 0 : index
    %244 = vector.load %arg9[%c0_94, %c0_95] : memref<16x128xf32, #tpu.memory_space<vmem>>, vector<16x128xf32>
    tpu.vector_store %arg9[%c0_94, %c0_95], %240 {strides = array<i32>} : memref<16x128xf32, #tpu.memory_space<vmem>>, vector<16x128xf32>,
    %245 = arith.truncf %242 : vector<16x128xf32> to vector<16x128xbf16>
    %246 = arith.index_cast %c5_i32 : i32 to index
    %c0_96 = arith.constant 0 : index
    %c0_97 = arith.constant 0 : index
    %247 = vector.load %arg5[%246, %c0_96, %c0_97] : memref<8x16x128xbf16, #tpu.memory_space<vmem>>, vector<1x16x128xbf16>
    %248 = vector.shape_cast %247 : vector<1x16x128xbf16> to vector<16x128xbf16>
    %249 = vector.shape_cast %245 : vector<16x128xbf16> to vector<1x16x128xbf16>
    tpu.vector_store %arg5[%246, %c0_96, %c0_97], %249 {strides = array<i32>} : memref<8x16x128xbf16, #tpu.memory_space<vmem>>, vector<1x16x128xbf16>,
    %c6_i32 = arith.constant 6 : i32
    %c0_98 = arith.constant 0 : index
    %c0_99 = arith.constant 0 : index
    %250 = vector.load %arg8[%c0_98, %c0_99] : memref<16x128xf32, #tpu.memory_space<vmem>>, vector<16x128xf32>
    %c0_100 = arith.constant 0 : index
    %c0_101 = arith.constant 0 : index
    %251 = vector.load %arg9[%c0_100, %c0_101] : memref<16x128xf32, #tpu.memory_space<vmem>>, vector<16x128xf32>
    %252 = arith.index_cast %c6_i32 : i32 to index
    %c0_102 = arith.constant 0 : index
    %c0_103 = arith.constant 0 : index
    %253 = vector.load %arg1[%252, %c0_102, %c0_103] : memref<8x16x512xbf16, #tpu.memory_space<vmem>>, vector<1x16x512xbf16>
    %254 = vector.shape_cast %253 : vector<1x16x512xbf16> to vector<16x512xbf16>
    %255 = arith.extf %254 : vector<16x512xbf16> to vector<16x512xf32>
    %256 = arith.truncf %250 : vector<16x128xf32> to vector<16x128xbf16>
    %cst_104 = arith.constant dense<0.000000e+00> : vector<16x512xf32>
    %257 = tpu.matmul %256, %3, %cst_104 {dimension_numbers = #tpu.dot_dimension_numbers<[1], [0], [0], [1], [0, 0, 1, 1], [], []>} : vector<16x128xbf16>, vector<128x512xbf16>, vector<16x512xf32> -> vector<16x512xf32>
    %258 = arith.addf %255, %257 : vector<16x512xf32>
    %259 = vector.extract_strided_slice %258 {offsets = [0, 0], sizes = [16, 128], strides = [1, 1]} : vector<16x512xf32> to vector<16x128xf32>
    %260 = arith.negf %259 : vector<16x128xf32>
    %261 = math.exp %260 : vector<16x128xf32>
    %cst_105 = arith.constant 1.000000e+00 : f32
    %262 = vector.broadcast %cst_105 : f32 to vector<16x128xf32>
    %263 = arith.addf %262, %261 : vector<16x128xf32>
    %264 = arith.divf %262, %263 : vector<16x128xf32>
    %265 = vector.extract_strided_slice %258 {offsets = [0, 128], sizes = [16, 128], strides = [1, 1]} : vector<16x512xf32> to vector<16x128xf32>
    %266 = arith.negf %265 : vector<16x128xf32>
    %267 = math.exp %266 : vector<16x128xf32>
    %cst_106 = arith.constant 1.000000e+00 : f32
    %268 = vector.broadcast %cst_106 : f32 to vector<16x128xf32>
    %269 = arith.addf %268, %267 : vector<16x128xf32>
    %270 = arith.divf %268, %269 : vector<16x128xf32>
    %271 = vector.extract_strided_slice %258 {offsets = [0, 256], sizes = [16, 128], strides = [1, 1]} : vector<16x512xf32> to vector<16x128xf32>
    %272 = math.tanh %271 : vector<16x128xf32>
    %273 = vector.extract_strided_slice %258 {offsets = [0, 384], sizes = [16, 128], strides = [1, 1]} : vector<16x512xf32> to vector<16x128xf32>
    %274 = arith.negf %273 : vector<16x128xf32>
    %275 = math.exp %274 : vector<16x128xf32>
    %cst_107 = arith.constant 1.000000e+00 : f32
    %276 = vector.broadcast %cst_107 : f32 to vector<16x128xf32>
    %277 = arith.addf %276, %275 : vector<16x128xf32>
    %278 = arith.divf %276, %277 : vector<16x128xf32>
    %279 = arith.mulf %270, %251 : vector<16x128xf32>
    %280 = arith.mulf %264, %272 : vector<16x128xf32>
    %281 = arith.addf %279, %280 : vector<16x128xf32>
    %282 = math.tanh %281 : vector<16x128xf32>
    %283 = arith.mulf %278, %282 : vector<16x128xf32>
    %c0_108 = arith.constant 0 : index
    %c0_109 = arith.constant 0 : index
    %284 = vector.load %arg8[%c0_108, %c0_109] : memref<16x128xf32, #tpu.memory_space<vmem>>, vector<16x128xf32>
    tpu.vector_store %arg8[%c0_108, %c0_109], %283 {strides = array<i32>} : memref<16x128xf32, #tpu.memory_space<vmem>>, vector<16x128xf32>,
    %c0_110 = arith.constant 0 : index
    %c0_111 = arith.constant 0 : index
    %285 = vector.load %arg9[%c0_110, %c0_111] : memref<16x128xf32, #tpu.memory_space<vmem>>, vector<16x128xf32>
    tpu.vector_store %arg9[%c0_110, %c0_111], %281 {strides = array<i32>} : memref<16x128xf32, #tpu.memory_space<vmem>>, vector<16x128xf32>,
    %286 = arith.truncf %283 : vector<16x128xf32> to vector<16x128xbf16>
    %287 = arith.index_cast %c6_i32 : i32 to index
    %c0_112 = arith.constant 0 : index
    %c0_113 = arith.constant 0 : index
    %288 = vector.load %arg5[%287, %c0_112, %c0_113] : memref<8x16x128xbf16, #tpu.memory_space<vmem>>, vector<1x16x128xbf16>
    %289 = vector.shape_cast %288 : vector<1x16x128xbf16> to vector<16x128xbf16>
    %290 = vector.shape_cast %286 : vector<16x128xbf16> to vector<1x16x128xbf16>
    tpu.vector_store %arg5[%287, %c0_112, %c0_113], %290 {strides = array<i32>} : memref<8x16x128xbf16, #tpu.memory_space<vmem>>, vector<1x16x128xbf16>,
    %c7_i32 = arith.constant 7 : i32
    %c0_114 = arith.constant 0 : index
    %c0_115 = arith.constant 0 : index
    %291 = vector.load %arg8[%c0_114, %c0_115] : memref<16x128xf32, #tpu.memory_space<vmem>>, vector<16x128xf32>
    %c0_116 = arith.constant 0 : index
    %c0_117 = arith.constant 0 : index
    %292 = vector.load %arg9[%c0_116, %c0_117] : memref<16x128xf32, #tpu.memory_space<vmem>>, vector<16x128xf32>
    %293 = arith.index_cast %c7_i32 : i32 to index
    %c0_118 = arith.constant 0 : index
    %c0_119 = arith.constant 0 : index
    %294 = vector.load %arg1[%293, %c0_118, %c0_119] : memref<8x16x512xbf16, #tpu.memory_space<vmem>>, vector<1x16x512xbf16>
    %295 = vector.shape_cast %294 : vector<1x16x512xbf16> to vector<16x512xbf16>
    %296 = arith.extf %295 : vector<16x512xbf16> to vector<16x512xf32>
    %297 = arith.truncf %291 : vector<16x128xf32> to vector<16x128xbf16>
    %cst_120 = arith.constant dense<0.000000e+00> : vector<16x512xf32>
    %298 = tpu.matmul %297, %3, %cst_120 {dimension_numbers = #tpu.dot_dimension_numbers<[1], [0], [0], [1], [0, 0, 1, 1], [], []>} : vector<16x128xbf16>, vector<128x512xbf16>, vector<16x512xf32> -> vector<16x512xf32>
    %299 = arith.addf %296, %298 : vector<16x512xf32>
    %300 = vector.extract_strided_slice %299 {offsets = [0, 0], sizes = [16, 128], strides = [1, 1]} : vector<16x512xf32> to vector<16x128xf32>
    %301 = arith.negf %300 : vector<16x128xf32>
    %302 = math.exp %301 : vector<16x128xf32>
    %cst_121 = arith.constant 1.000000e+00 : f32
    %303 = vector.broadcast %cst_121 : f32 to vector<16x128xf32>
    %304 = arith.addf %303, %302 : vector<16x128xf32>
    %305 = arith.divf %303, %304 : vector<16x128xf32>
    %306 = vector.extract_strided_slice %299 {offsets = [0, 128], sizes = [16, 128], strides = [1, 1]} : vector<16x512xf32> to vector<16x128xf32>
    %307 = arith.negf %306 : vector<16x128xf32>
    %308 = math.exp %307 : vector<16x128xf32>
    %cst_122 = arith.constant 1.000000e+00 : f32
    %309 = vector.broadcast %cst_122 : f32 to vector<16x128xf32>
    %310 = arith.addf %309, %308 : vector<16x128xf32>
    %311 = arith.divf %309, %310 : vector<16x128xf32>
    %312 = vector.extract_strided_slice %299 {offsets = [0, 256], sizes = [16, 128], strides = [1, 1]} : vector<16x512xf32> to vector<16x128xf32>
    %313 = math.tanh %312 : vector<16x128xf32>
    %314 = vector.extract_strided_slice %299 {offsets = [0, 384], sizes = [16, 128], strides = [1, 1]} : vector<16x512xf32> to vector<16x128xf32>
    %315 = arith.negf %314 : vector<16x128xf32>
    %316 = math.exp %315 : vector<16x128xf32>
    %cst_123 = arith.constant 1.000000e+00 : f32
    %317 = vector.broadcast %cst_123 : f32 to vector<16x128xf32>
    %318 = arith.addf %317, %316 : vector<16x128xf32>
    %319 = arith.divf %317, %318 : vector<16x128xf32>
    %320 = arith.mulf %311, %292 : vector<16x128xf32>
    %321 = arith.mulf %305, %313 : vector<16x128xf32>
    %322 = arith.addf %320, %321 : vector<16x128xf32>
    %323 = math.tanh %322 : vector<16x128xf32>
    %324 = arith.mulf %319, %323 : vector<16x128xf32>
    %c0_124 = arith.constant 0 : index
    %c0_125 = arith.constant 0 : index
    %325 = vector.load %arg8[%c0_124, %c0_125] : memref<16x128xf32, #tpu.memory_space<vmem>>, vector<16x128xf32>
    tpu.vector_store %arg8[%c0_124, %c0_125], %324 {strides = array<i32>} : memref<16x128xf32, #tpu.memory_space<vmem>>, vector<16x128xf32>,
    %c0_126 = arith.constant 0 : index
    %c0_127 = arith.constant 0 : index
    %326 = vector.load %arg9[%c0_126, %c0_127] : memref<16x128xf32, #tpu.memory_space<vmem>>, vector<16x128xf32>
    tpu.vector_store %arg9[%c0_126, %c0_127], %322 {strides = array<i32>} : memref<16x128xf32, #tpu.memory_space<vmem>>, vector<16x128xf32>,
    %327 = arith.truncf %324 : vector<16x128xf32> to vector<16x128xbf16>
    %328 = arith.index_cast %c7_i32 : i32 to index
    %c0_128 = arith.constant 0 : index
    %c0_129 = arith.constant 0 : index
    %329 = vector.load %arg5[%328, %c0_128, %c0_129] : memref<8x16x128xbf16, #tpu.memory_space<vmem>>, vector<1x16x128xbf16>
    %330 = vector.shape_cast %329 : vector<1x16x128xbf16> to vector<16x128xbf16>
    %331 = vector.shape_cast %327 : vector<16x128xbf16> to vector<1x16x128xbf16>
    tpu.vector_store %arg5[%328, %c0_128, %c0_129], %331 {strides = array<i32>} : memref<8x16x128xbf16, #tpu.memory_space<vmem>>, vector<1x16x128xbf16>,
    %c8_i32 = arith.constant 8 : i32
    %c0_i32_130 = arith.constant 0 : i32
    %332 = arith.cmpi eq, %arg0, %c0_i32_130 : i32
    %333 = arith.extui %332 : i1 to i32
    %c0_i32_131 = arith.constant 0 : i32
    %334 = arith.cmpi ne, %333, %c0_i32_131 : i32
    scf.if %334 {
      %c0_132 = arith.constant 0 : index
      %c0_133 = arith.constant 0 : index
      %335 = vector.load %arg8[%c0_132, %c0_133] : memref<16x128xf32, #tpu.memory_space<vmem>>, vector<16x128xf32>
      %c0_134 = arith.constant 0 : index
      %c0_135 = arith.constant 0 : index
      %336 = vector.load %arg6[%c0_134, %c0_135] : memref<16x128xf32, #tpu.memory_space<vmem>>, vector<16x128xf32>
      tpu.vector_store %arg6[%c0_134, %c0_135], %335 {strides = array<i32>} : memref<16x128xf32, #tpu.memory_space<vmem>>, vector<16x128xf32>,
      %c0_136 = arith.constant 0 : index
      %c0_137 = arith.constant 0 : index
      %337 = vector.load %arg9[%c0_136, %c0_137] : memref<16x128xf32, #tpu.memory_space<vmem>>, vector<16x128xf32>
      %c0_138 = arith.constant 0 : index
      %c0_139 = arith.constant 0 : index
      %338 = vector.load %arg7[%c0_138, %c0_139] : memref<16x128xf32, #tpu.memory_space<vmem>>, vector<16x128xf32>
      tpu.vector_store %arg7[%c0_138, %c0_139], %337 {strides = array<i32>} : memref<16x128xf32, #tpu.memory_space<vmem>>, vector<16x128xf32>,
    } else {
    }
    return
  }
  func.func @transform_0(%arg0: i32) -> (i32, i32, i32) {
    %c0_i32 = arith.constant 0 : i32
    %c0_i32_0 = arith.constant 0 : i32
    %c0_i32_1 = arith.constant 0 : i32
    return %arg0, %c0_i32, %c0_i32_0 : i32, i32, i32
  }
  func.func @transform_1(%arg0: i32) -> (i32, i32) {
    %c0_i32 = arith.constant 0 : i32
    %c0_i32_0 = arith.constant 0 : i32
    %c0_i32_1 = arith.constant 0 : i32
    return %c0_i32, %c0_i32_0 : i32, i32
  }
  func.func @transform_2(%arg0: i32) -> (i32, i32) {
    %c0_i32 = arith.constant 0 : i32
    %c0_i32_0 = arith.constant 0 : i32
    %c0_i32_1 = arith.constant 0 : i32
    return %c0_i32, %c0_i32_0 : i32, i32
  }
  func.func @transform_3(%arg0: i32) -> (i32, i32) {
    %c0_i32 = arith.constant 0 : i32
    %c0_i32_0 = arith.constant 0 : i32
    %c0_i32_1 = arith.constant 0 : i32
    return %c0_i32, %c0_i32_0 : i32, i32
  }
  func.func @transform_4(%arg0: i32) -> (i32, i32, i32) {
    %c0_i32 = arith.constant 0 : i32
    %c0_i32_0 = arith.constant 0 : i32
    %c0_i32_1 = arith.constant 0 : i32
    return %arg0, %c0_i32, %c0_i32_0 : i32, i32, i32
  }
  func.func @transform_5(%arg0: i32) -> (i32, i32) {
    %c0_i32 = arith.constant 0 : i32
    %c0_i32_0 = arith.constant 0 : i32
    %c0_i32_1 = arith.constant 0 : i32
    return %c0_i32, %c0_i32_0 : i32, i32
  }
  func.func @transform_6(%arg0: i32) -> (i32, i32) {
    %c0_i32 = arith.constant 0 : i32
    %c0_i32_0 = arith.constant 0 : i32
    %c0_i32_1 = arith.constant 0 : i32
    return %c0_i32, %c0_i32_0 : i32, i32
  }
}

</mosaic_0001>

<llo_original>
// kernel: _forward.5
$region0: #{_forward.5}
  #allocation0 [shape = 'u32[]', space=smem, size = 0x4, offset = 0x4, fixed_abs, tag = 'smem constant byte address 0x4 - core index']
  #allocation1 [shape = 'u32[144,128]{1,0:T(1,128)}', space=vmem, size = 0x12000, scoped, tag = 'internal scratch']
  %s0 = inlined_call_operand.hbm [shape: bf16[128,32], index: 0, kind: input, shape index: {}]
  %s1 = inlined_call_operand.hbm [shape: bf16[32,512], index: 1, kind: input, shape index: {}]
  %s2 = inlined_call_operand.hbm [shape: f32[1,512], index: 2, kind: input, shape index: {}]
  %s3 = inlined_call_operand.hbm [shape: bf16[128,512], index: 3, kind: output, shape index: {}]
  %s4 = sld [smem:[#allocation0]]
  $region34: #{_forward.5} parent=0
    _
  %s6 = ssub.s32 1, %s4
  %s7 = scalar_select 0, %s6, %s4
  $region1: #{_forward.5} parent=0
    #allocation2 [shape = 'u8[32768]{0}', space=vmem, size = 0x8000, scoped, tag = 'input window, operand 0, single buffered']
    #allocation3 [shape = 's32[1]{0}', space=sflag, size = 0x4, scoped, tag = 'scoped memory for _forward.5']
    #allocation4 [shape = 's32[1]{0}', space=sflag, size = 0x4, scoped, tag = 'scoped memory for _forward.5']
    #allocation5 [shape = 'u8[32768]{0}', space=vmem, size = 0x8000, scoped, tag = 'input window, operand 1, single buffered']
    #allocation6 [shape = 's32[1]{0}', space=sflag, size = 0x4, scoped, tag = 'scoped memory for _forward.5']
    #allocation7 [shape = 'u8[2048]{0}', space=vmem, size = 0x800, scoped, tag = 'input window, operand 2, single buffered']
    #allocation8 [shape = 'u8[131072]{0}', space=vmem, size = 0x20000, scoped, tag = 'output window, operand 0, single buffered']
    %8 = vsyncpa [#allocation3], 0
    %9 = vsyncpa [#allocation6], 0
    %10 = vsyncpa [#allocation4], 0
    // Predicated region
    $region2: #{_forward.5} parent=1 // pred_check
      _
    $region3: #{_forward.5} parent=1 // pred_check_branch
      %12 = sbr.rel (0) target = $region5
    $region4: #{_forward.5} parent=1 // pred_region
      %s14 = ssub.s32 1024, 1024
      %15 = vsyncadd [#allocation3], %s14
      %s16 = sshll.u32 [#allocation2], 4
      %s17 = int_to_ptr.vmem [resolvable:$true] %s16
      %22 = dma.hbm_to_vmem [thread:$0]  %s0, 1024, %s17, [#allocation3], 64, 64, 4
    $region5: #{_forward.5} parent=1 // pred_fallthru
      _
    // Predicated region
    $region6: #{_forward.5} parent=1 // pred_check
      _
    $region7: #{_forward.5} parent=1 // pred_check_branch
      %24 = sbr.rel (0) target = $region9
    $region8: #{_forward.5} parent=1 // pred_region
      %s26 = ssub.s32 1024, 1024
      %27 = vsyncadd [#allocation6], %s26
      %s28 = sshll.u32 [#allocation5], 4
      %s29 = int_to_ptr.vmem [resolvable:$true] %s28
      %34 = dma.hbm_to_vmem [thread:$0]  %s1, 1024, %s29, [#allocation6], 256, 256, 16
    $region9: #{_forward.5} parent=1 // pred_fallthru
      _
    // Predicated region
    $region10: #{_forward.5} parent=1 // pred_check
      _
    $region11: #{_forward.5} parent=1 // pred_check_branch
      %36 = sbr.rel (0) target = $region13
    $region12: #{_forward.5} parent=1 // pred_region
      %s38 = ssub.s32 64, 64
      %39 = vsyncadd [#allocation6], %s38
      %s41 = sshll.u32 [#allocation7], 4
      %s42 = int_to_ptr.vmem [resolvable:$true] %s41
      %44 = dma.hbm_to_vmem [thread:$0]  %s2, 64, %s42, [#allocation6]
    $region13: #{_forward.5} parent=1 // pred_fallthru
      _
    // Predicated region
    $region14: #{_forward.5} parent=1 // pred_check
      _
    $region15: #{_forward.5} parent=1 // pred_check_branch
      %46 = sbr.rel (0) target = $region17
    $region16: #{_forward.5} parent=1 // pred_region
      %47 = dma.done [#allocation3], 1024
    $region17: #{_forward.5} parent=1 // pred_fallthru
      _
    // Predicated region
    $region18: #{_forward.5} parent=1 // pred_check
      _
    $region19: #{_forward.5} parent=1 // pred_check_branch
      %49 = sbr.rel (0) target = $region21
    $region20: #{_forward.5} parent=1 // pred_region
      %50 = dma.done [#allocation6], 1024
    $region21: #{_forward.5} parent=1 // pred_fallthru
      _
    // Predicated region
    $region22: #{_forward.5} parent=1 // pred_check
      _
    $region23: #{_forward.5} parent=1 // pred_check_branch
      %52 = sbr.rel (0) target = $region25
    $region24: #{_forward.5} parent=1 // pred_region
      %53 = dma.done [#allocation6], 64
    $region25: #{_forward.5} parent=1 // pred_fallthru
      _
    %v55 = vld [vmem:[#allocation2] sm:$0xf]
    %v56 = vld [vmem:[#allocation2 + $0x4] sm:$0xf]
    %v57 = vld [vmem:[#allocation2 + $0x8] sm:$0xf]
    %v58 = vld [vmem:[#allocation2 + $0xc] sm:$0xf]
    %v59 = vld [vmem:[#allocation2 + $0x10] sm:$0xf]
    %v60 = vld [vmem:[#allocation2 + $0x14] sm:$0xf]
    %v61 = vld [vmem:[#allocation2 + $0x18] sm:$0xf]
    %v62 = vld [vmem:[#allocation2 + $0x1c] sm:$0xf]
    %v63 = vld [vmem:[#allocation2 + $0x20] sm:$0xf]
    %v64 = vld [vmem:[#allocation2 + $0x24] sm:$0xf]
    %v65 = vld [vmem:[#allocation2 + $0x28] sm:$0xf]
    %v66 = vld [vmem:[#allocation2 + $0x2c] sm:$0xf]
    %v67 = vld [vmem:[#allocation2 + $0x30] sm:$0xf]
    %v68 = vld [vmem:[#allocation2 + $0x34] sm:$0xf]
    %v69 = vld [vmem:[#allocation2 + $0x38] sm:$0xf]
    %v70 = vld [vmem:[#allocation2 + $0x3c] sm:$0xf]
    %v71 = vld [vmem:[#allocation5] sm:$0xff]
    %v72 = vld [vmem:[#allocation5 + $0x8] sm:$0xff]
    %v73 = vld [vmem:[#allocation5 + $0x10] sm:$0xff]
    %v74 = vld [vmem:[#allocation5 + $0x18] sm:$0xff]
    %v75 = vld [vmem:[#allocation5 + $0x20] sm:$0xff]
    %v76 = vld [vmem:[#allocation5 + $0x28] sm:$0xff]
    %v77 = vld [vmem:[#allocation5 + $0x30] sm:$0xff]
    %v78 = vld [vmem:[#allocation5 + $0x38] sm:$0xff]
    %v79 = vld [vmem:[#allocation7] sm:$0xf]
    %v81 = vlaneseq
    %v82 = vshrl.u32 %v81, 7
    %v83 = vsub.s32 0, %v82
    %v84 = vrot.slane %v79, %v83
    %v85 = vlaneseq
    %v86 = vshrl.u32 %v85, 7
    %v87 = vsub.s32 1, %v86
    %v88 = vrot.slane %v79, %v87
    %v89 = vlaneseq
    %v90 = vshrl.u32 %v89, 7
    %v91 = vsub.s32 2, %v90
    %v92 = vrot.slane %v79, %v91
    %v93 = vlaneseq
    %v94 = vshrl.u32 %v93, 7
    %v95 = vsub.s32 3, %v94
    %v96 = vrot.slane %v79, %v95
    %v117 = vunpack.c.l.b16 %v55
    %v118 = vunpack.c.l.b16 %v56
    %v119 = vunpack.c.l.b16 %v57
    %v120 = vunpack.c.l.b16 %v58
    %v121 = vunpack.c.l.b16 %v59
    %v122 = vunpack.c.l.b16 %v60
    %v123 = vunpack.c.l.b16 %v61
    %v124 = vunpack.c.l.b16 %v62
    %v125 = vunpack.c.l.b16 %v63
    %v126 = vunpack.c.l.b16 %v64
    %v127 = vunpack.c.l.b16 %v65
    %v128 = vunpack.c.l.b16 %v66
    %v129 = vunpack.c.l.b16 %v67
    %v130 = vunpack.c.l.b16 %v68
    %v131 = vunpack.c.l.b16 %v69
    %v132 = vunpack.c.l.b16 %v70
    %v133 = vpack.c.b16 %v118, %v117
    %v134 = vpack.c.b16 %v120, %v119
    %v135 = vpack.c.b16 %v122, %v121
    %v136 = vpack.c.b16 %v124, %v123
    %v137 = vpack.c.b16 %v126, %v125
    %v138 = vpack.c.b16 %v128, %v127
    %v139 = vpack.c.b16 %v130, %v129
    %v140 = vpack.c.b16 %v132, %v131
    %v149 = vunpack.c.l.b16 %v71
    %v150 = vunpack.c.h.b16 %v71
    %v151 = vunpack.c.l.b16 %v72
    %v152 = vunpack.c.h.b16 %v72
    %v153 = vunpack.c.l.b16 %v73
    %v154 = vunpack.c.h.b16 %v73
    %v155 = vunpack.c.l.b16 %v74
    %v156 = vunpack.c.h.b16 %v74
    %v157 = vunpack.c.l.b16 %v75
    %v158 = vunpack.c.h.b16 %v75
    %v159 = vunpack.c.l.b16 %v76
    %v160 = vunpack.c.h.b16 %v76
    %v161 = vunpack.c.l.b16 %v77
    %v162 = vunpack.c.h.b16 %v77
    %v163 = vunpack.c.l.b16 %v78
    %v164 = vunpack.c.h.b16 %v78
    %v165 = vpack.c.b16 %v153, %v149
    %v166 = vpack.c.b16 %v154, %v150
    %v167 = vpack.c.b16 %v155, %v151
    %v168 = vpack.c.b16 %v156, %v152
    %v169 = vpack.c.b16 %v161, %v157
    %v170 = vpack.c.b16 %v162, %v158
    %v171 = vpack.c.b16 %v163, %v159
    %v172 = vpack.c.b16 %v164, %v160
    %vm181 = vcmask 261120
    %v183 = vsel %vm181, %v133, 0
    %v186 = vsel %vm181, %v134, 0
    %v189 = vsel %vm181, %v135, 0
    %v192 = vsel %vm181, %v136, 0
    %v195 = vsel %vm181, %v137, 0
    %v198 = vsel %vm181, %v138, 0
    %v201 = vsel %vm181, %v139, 0
    %v204 = vsel %vm181, %v140, 0
    %206 = vmatprep.subr.bf16.mxu0 %v166
    %207 = vmatpush1.bf16.msra.mxu0 %v165
    %208 = vmatprep.subr.bf16.mxu0 %v170
    %209 = vmatpush1.bf16.msra.mxu0 %v169
    %210 = vmatprep.subr.bf16.mxu0 0
    %211 = vmatpush1.bf16.msra.mxu0 0
    %212 = vmatprep.subr.bf16.mxu0 0
    %213 = vmatpush1.bf16.msra.mxu0 0
    %214 = vmatprep.subr.bf16.mxu0 0
    %215 = vmatpush1.bf16.msra.mxu0 0
    %216 = vmatprep.subr.bf16.mxu0 0
    %217 = vmatpush1.bf16.msra.mxu0 0
    %218 = vmatprep.subr.bf16.mxu0 0
    %219 = vmatpush1.bf16.msra.mxu0 0
    %220 = vmatprep.subr.bf16.mxu0 0
    %221 = vmatpush1.bf16.msra.mxu0 0
    %222 = vmatprep.subr.bf16.mxu0 0
    %223 = vmatpush1.bf16.msra.mxu0 0
    %224 = vmatprep.subr.bf16.mxu0 0
    %225 = vmatpush1.bf16.msra.mxu0 0
    %226 = vmatprep.subr.bf16.mxu0 0
    %227 = vmatpush1.bf16.msra.mxu0 0
    %228 = vmatprep.subr.bf16.mxu0 0
    %229 = vmatpush1.bf16.msra.mxu0 0
    %230 = vmatprep.subr.bf16.mxu0 0
    %231 = vmatpush1.bf16.msra.mxu0 0
    %232 = vmatprep.subr.bf16.mxu0 0
    %233 = vmatpush1.bf16.msra.mxu0 0
    %234 = vmatprep.subr.bf16.mxu0 0
    %235 = vmatpush1.bf16.msra.mxu0 0
    %236 = vmatprep.subr.bf16.mxu0 0
    %237 = vmatpush1.bf16.msra.mxu0 0
    %238 = vmatprep.mubr.bf16.mxu0 0
    %239 = vmatmul.mubr.bf16.gmra.mrb[0].mxu0 %v183
    %v240 = vpop.f32.mrb[0].mxu0
    %v241 = vadd.f32 %v84, %v240
    %v242 = vpop.f32.mrb[0].mxu0
    %v243 = vadd.f32 %v88, %v242
    %v244 = vpop.f32.mrb[0].mxu0
    %v245 = vadd.f32 %v84, %v244
    %v246 = vpop.f32.mrb[0].mxu0
    %v247 = vadd.f32 %v88, %v246
    %248 = vmatprep.mubr.bf16.mxu0 0
    %249 = vmatmul.mubr.bf16.gmra.mrb[0].mxu0 %v186
    %v250 = vpop.f32.mrb[0].mxu0
    %v251 = vadd.f32 %v84, %v250
    %v252 = vpop.f32.mrb[0].mxu0
    %v253 = vadd.f32 %v88, %v252
    %v254 = vpop.f32.mrb[0].mxu0
    %v255 = vadd.f32 %v84, %v254
    %v256 = vpop.f32.mrb[0].mxu0
    %v257 = vadd.f32 %v88, %v256
    %258 = vmatprep.mubr.bf16.mxu0 0
    %259 = vmatmul.mubr.bf16.gmra.mrb[0].mxu0 %v189
    %v260 = vpop.f32.mrb[0].mxu0
    %v261 = vadd.f32 %v84, %v260
    %v262 = vpop.f32.mrb[0].mxu0
    %v263 = vadd.f32 %v88, %v262
    %v264 = vpop.f32.mrb[0].mxu0
    %v265 = vadd.f32 %v84, %v264
    %v266 = vpop.f32.mrb[0].mxu0
    %v267 = vadd.f32 %v88, %v266
    %268 = vmatprep.mubr.bf16.mxu0 0
    %269 = vmatmul.mubr.bf16.gmra.mrb[0].mxu0 %v192
    %v270 = vpop.f32.mrb[0].mxu0
    %v271 = vadd.f32 %v84, %v270
    %v272 = vpop.f32.mrb[0].mxu0
    %v273 = vadd.f32 %v88, %v272
    %v274 = vpop.f32.mrb[0].mxu0
    %v275 = vadd.f32 %v84, %v274
    %v276 = vpop.f32.mrb[0].mxu0
    %v277 = vadd.f32 %v88, %v276
    %278 = vmatprep.mubr.bf16.mxu0 0
    %279 = vmatmul.mubr.bf16.gmra.mrb[0].mxu0 %v195
    %v280 = vpop.f32.mrb[0].mxu0
    %v281 = vadd.f32 %v84, %v280
    %v282 = vpop.f32.mrb[0].mxu0
    %v283 = vadd.f32 %v88, %v282
    %v284 = vpop.f32.mrb[0].mxu0
    %v285 = vadd.f32 %v84, %v284
    %v286 = vpop.f32.mrb[0].mxu0
    %v287 = vadd.f32 %v88, %v286
    %288 = vmatprep.mubr.bf16.mxu0 0
    %289 = vmatmul.mubr.bf16.gmra.mrb[0].mxu0 %v198
    %v290 = vpop.f32.mrb[0].mxu0
    %v291 = vadd.f32 %v84, %v290
    %v292 = vpop.f32.mrb[0].mxu0
    %v293 = vadd.f32 %v88, %v292
    %v294 = vpop.f32.mrb[0].mxu0
    %v295 = vadd.f32 %v84, %v294
    %v296 = vpop.f32.mrb[0].mxu0
    %v297 = vadd.f32 %v88, %v296
    %298 = vmatprep.mubr.bf16.mxu0 0
    %299 = vmatmul.mubr.bf16.gmra.mrb[0].mxu0 %v201
    %v300 = vpop.f32.mrb[0].mxu0
    %v301 = vadd.f32 %v84, %v300
    %v302 = vpop.f32.mrb[0].mxu0
    %v303 = vadd.f32 %v88, %v302
    %v304 = vpop.f32.mrb[0].mxu0
    %v305 = vadd.f32 %v84, %v304
    %v306 = vpop.f32.mrb[0].mxu0
    %v307 = vadd.f32 %v88, %v306
    %308 = vmatprep.mubr.bf16.mxu0 0
    %309 = vmatmul.mubr.bf16.gmra.mrb[0].mxu0 %v204
    %v310 = vpop.f32.mrb[0].mxu0
    %v311 = vadd.f32 %v84, %v310
    %v312 = vpop.f32.mrb[0].mxu0
    %v313 = vadd.f32 %v88, %v312
    %v314 = vpop.f32.mrb[0].mxu0
    %v315 = vadd.f32 %v84, %v314
    %v316 = vpop.f32.mrb[0].mxu0
    %v317 = vadd.f32 %v88, %v316
    %318 = vdwg.mxu0
    %319 = vmatprep.subr.bf16.mxu0 %v168
    %320 = vmatpush1.bf16.msra.mxu0 %v167
    %321 = vmatprep.subr.bf16.mxu0 %v172
    %322 = vmatpush1.bf16.msra.mxu0 %v171
    %323 = vmatprep.subr.bf16.mxu0 0
    %324 = vmatpush1.bf16.msra.mxu0 0
    %325 = vmatprep.subr.bf16.mxu0 0
    %326 = vmatpush1.bf16.msra.mxu0 0
    %327 = vmatprep.subr.bf16.mxu0 0
    %328 = vmatpush1.bf16.msra.mxu0 0
    %329 = vmatprep.subr.bf16.mxu0 0
    %330 = vmatpush1.bf16.msra.mxu0 0
    %331 = vmatprep.subr.bf16.mxu0 0
    %332 = vmatpush1.bf16.msra.mxu0 0
    %333 = vmatprep.subr.bf16.mxu0 0
    %334 = vmatpush1.bf16.msra.mxu0 0
    %335 = vmatprep.subr.bf16.mxu0 0
    %336 = vmatpush1.bf16.msra.mxu0 0
    %337 = vmatprep.subr.bf16.mxu0 0
    %338 = vmatpush1.bf16.msra.mxu0 0
    %339 = vmatprep.subr.bf16.mxu0 0
    %340 = vmatpush1.bf16.msra.mxu0 0
    %341 = vmatprep.subr.bf16.mxu0 0
    %342 = vmatpush1.bf16.msra.mxu0 0
    %343 = vmatprep.subr.bf16.mxu0 0
    %344 = vmatpush1.bf16.msra.mxu0 0
    %345 = vmatprep.subr.bf16.mxu0 0
    %346 = vmatpush1.bf16.msra.mxu0 0
    %347 = vmatprep.subr.bf16.mxu0 0
    %348 = vmatpush1.bf16.msra.mxu0 0
    %349 = vmatprep.subr.bf16.mxu0 0
    %350 = vmatpush1.bf16.msra.mxu0 0
    %351 = vmatprep.mubr.bf16.mxu0 0
    %352 = vmatmul.mubr.bf16.gmra.mrb[0].mxu0 %v183
    %v353 = vpop.f32.mrb[0].mxu0
    %v354 = vadd.f32 %v92, %v353
    %v355 = vpop.f32.mrb[0].mxu0
    %v356 = vadd.f32 %v96, %v355
    %v357 = vpop.f32.mrb[0].mxu0
    %v358 = vadd.f32 %v92, %v357
    %v359 = vpop.f32.mrb[0].mxu0
    %v360 = vadd.f32 %v96, %v359
    %361 = vmatprep.mubr.bf16.mxu0 0
    %362 = vmatmul.mubr.bf16.gmra.mrb[0].mxu0 %v186
    %v363 = vpop.f32.mrb[0].mxu0
    %v364 = vadd.f32 %v92, %v363
    %v365 = vpop.f32.mrb[0].mxu0
    %v366 = vadd.f32 %v96, %v365
    %v367 = vpop.f32.mrb[0].mxu0
    %v368 = vadd.f32 %v92, %v367
    %v369 = vpop.f32.mrb[0].mxu0
    %v370 = vadd.f32 %v96, %v369
    %371 = vmatprep.mubr.bf16.mxu0 0
    %372 = vmatmul.mubr.bf16.gmra.mrb[0].mxu0 %v189
    %v373 = vpop.f32.mrb[0].mxu0
    %v374 = vadd.f32 %v92, %v373
    %v375 = vpop.f32.mrb[0].mxu0
    %v376 = vadd.f32 %v96, %v375
    %v377 = vpop.f32.mrb[0].mxu0
    %v378 = vadd.f32 %v92, %v377
    %v379 = vpop.f32.mrb[0].mxu0
    %v380 = vadd.f32 %v96, %v379
    %381 = vmatprep.mubr.bf16.mxu0 0
    %382 = vmatmul.mubr.bf16.gmra.mrb[0].mxu0 %v192
    %v383 = vpop.f32.mrb[0].mxu0
    %v384 = vadd.f32 %v92, %v383
    %v385 = vpop.f32.mrb[0].mxu0
    %v386 = vadd.f32 %v96, %v385
    %v387 = vpop.f32.mrb[0].mxu0
    %v388 = vadd.f32 %v92, %v387
    %v389 = vpop.f32.mrb[0].mxu0
    %v390 = vadd.f32 %v96, %v389
    %391 = vmatprep.mubr.bf16.mxu0 0
    %392 = vmatmul.mubr.bf16.gmra.mrb[0].mxu0 %v195
    %v393 = vpop.f32.mrb[0].mxu0
    %v394 = vadd.f32 %v92, %v393
    %v395 = vpop.f32.mrb[0].mxu0
    %v396 = vadd.f32 %v96, %v395
    %v397 = vpop.f32.mrb[0].mxu0
    %v398 = vadd.f32 %v92, %v397
    %v399 = vpop.f32.mrb[0].mxu0
    %v400 = vadd.f32 %v96, %v399
    %401 = vmatprep.mubr.bf16.mxu0 0
    %402 = vmatmul.mubr.bf16.gmra.mrb[0].mxu0 %v198
    %v403 = vpop.f32.mrb[0].mxu0
    %v404 = vadd.f32 %v92, %v403
    %v405 = vpop.f32.mrb[0].mxu0
    %v406 = vadd.f32 %v96, %v405
    %v407 = vpop.f32.mrb[0].mxu0
    %v408 = vadd.f32 %v92, %v407
    %v409 = vpop.f32.mrb[0].mxu0
    %v410 = vadd.f32 %v96, %v409
    %411 = vmatprep.mubr.bf16.mxu0 0
    %412 = vmatmul.mubr.bf16.gmra.mrb[0].mxu0 %v201
    %v413 = vpop.f32.mrb[0].mxu0
    %v414 = vadd.f32 %v92, %v413
    %v415 = vpop.f32.mrb[0].mxu0
    %v416 = vadd.f32 %v96, %v415
    %v417 = vpop.f32.mrb[0].mxu0
    %v418 = vadd.f32 %v92, %v417
    %v419 = vpop.f32.mrb[0].mxu0
    %v420 = vadd.f32 %v96, %v419
    %421 = vmatprep.mubr.bf16.mxu0 0
    %422 = vmatmul.mubr.bf16.gmra.mrb[0].mxu0 %v204
    %v423 = vpop.f32.mrb[0].mxu0
    %v424 = vadd.f32 %v92, %v423
    %v425 = vpop.f32.mrb[0].mxu0
    %v426 = vadd.f32 %v96, %v425
    %v427 = vpop.f32.mrb[0].mxu0
    %v428 = vadd.f32 %v92, %v427
    %v429 = vpop.f32.mrb[0].mxu0
    %v430 = vadd.f32 %v96, %v429
    %431 = vdwg.mxu0
    %v432 = vpack.c.bf16 %v245, %v241
    %v433 = vpack.c.bf16 %v247, %v243
    %v434 = vpack.c.bf16 %v358, %v354
    %v435 = vpack.c.bf16 %v360, %v356
    %v436 = vpack.c.bf16 %v255, %v251
    %v437 = vpack.c.bf16 %v257, %v253
    %v438 = vpack.c.bf16 %v368, %v364
    %v439 = vpack.c.bf16 %v370, %v366
    %v440 = vpack.c.bf16 %v265, %v261
    %v441 = vpack.c.bf16 %v267, %v263
    %v442 = vpack.c.bf16 %v378, %v374
    %v443 = vpack.c.bf16 %v380, %v376
    %v444 = vpack.c.bf16 %v275, %v271
    %v445 = vpack.c.bf16 %v277, %v273
    %v446 = vpack.c.bf16 %v388, %v384
    %v447 = vpack.c.bf16 %v390, %v386
    %v448 = vpack.c.bf16 %v285, %v281
    %v449 = vpack.c.bf16 %v287, %v283
    %v450 = vpack.c.bf16 %v398, %v394
    %v451 = vpack.c.bf16 %v400, %v396
    %v452 = vpack.c.bf16 %v295, %v291
    %v453 = vpack.c.bf16 %v297, %v293
    %v454 = vpack.c.bf16 %v408, %v404
    %v455 = vpack.c.bf16 %v410, %v406
    %v456 = vpack.c.bf16 %v305, %v301
    %v457 = vpack.c.bf16 %v307, %v303
    %v458 = vpack.c.bf16 %v418, %v414
    %v459 = vpack.c.bf16 %v420, %v416
    %v460 = vpack.c.bf16 %v315, %v311
    %v461 = vpack.c.bf16 %v317, %v313
    %v462 = vpack.c.bf16 %v428, %v424
    %v463 = vpack.c.bf16 %v430, %v426
    %v496 = vunpack.c.l.b16 %v432
    %v497 = vunpack.c.l.b16 %v433
    %v498 = vunpack.c.l.b16 %v434
    %v499 = vunpack.c.l.b16 %v435
    %v500 = vunpack.c.h.b16 %v432
    %v501 = vunpack.c.h.b16 %v433
    %v502 = vunpack.c.h.b16 %v434
    %v503 = vunpack.c.h.b16 %v435
    %v504 = vunpack.c.l.b16 %v436
    %v505 = vunpack.c.l.b16 %v437
    %v506 = vunpack.c.l.b16 %v438
    %v507 = vunpack.c.l.b16 %v439
    %v508 = vunpack.c.h.b16 %v436
    %v509 = vunpack.c.h.b16 %v437
    %v510 = vunpack.c.h.b16 %v438
    %v511 = vunpack.c.h.b16 %v439
    %v512 = vunpack.c.l.b16 %v440
    %v513 = vunpack.c.l.b16 %v441
    %v514 = vunpack.c.l.b16 %v442
    %v515 = vunpack.c.l.b16 %v443
    %v516 = vunpack.c.h.b16 %v440
    %v517 = vunpack.c.h.b16 %v441
    %v518 = vunpack.c.h.b16 %v442
    %v519 = vunpack.c.h.b16 %v443
    %v520 = vunpack.c.l.b16 %v444
    %v521 = vunpack.c.l.b16 %v445
    %v522 = vunpack.c.l.b16 %v446
    %v523 = vunpack.c.l.b16 %v447
    %v524 = vunpack.c.h.b16 %v444
    %v525 = vunpack.c.h.b16 %v445
    %v526 = vunpack.c.h.b16 %v446
    %v527 = vunpack.c.h.b16 %v447
    %v528 = vunpack.c.l.b16 %v448
    %v529 = vunpack.c.l.b16 %v449
    %v530 = vunpack.c.l.b16 %v450
    %v531 = vunpack.c.l.b16 %v451
    %v532 = vunpack.c.h.b16 %v448
    %v533 = vunpack.c.h.b16 %v449
    %v534 = vunpack.c.h.b16 %v450
    %v535 = vunpack.c.h.b16 %v451
    %v536 = vunpack.c.l.b16 %v452
    %v537 = vunpack.c.l.b16 %v453
    %v538 = vunpack.c.l.b16 %v454
    %v539 = vunpack.c.l.b16 %v455
    %v540 = vunpack.c.h.b16 %v452
    %v541 = vunpack.c.h.b16 %v453
    %v542 = vunpack.c.h.b16 %v454
    %v543 = vunpack.c.h.b16 %v455
    %v544 = vunpack.c.l.b16 %v456
    %v545 = vunpack.c.l.b16 %v457
    %v546 = vunpack.c.l.b16 %v458
    %v547 = vunpack.c.l.b16 %v459
    %v548 = vunpack.c.h.b16 %v456
    %v549 = vunpack.c.h.b16 %v457
    %v550 = vunpack.c.h.b16 %v458
    %v551 = vunpack.c.h.b16 %v459
    %v552 = vunpack.c.l.b16 %v460
    %v553 = vunpack.c.l.b16 %v461
    %v554 = vunpack.c.l.b16 %v462
    %v555 = vunpack.c.l.b16 %v463
    %v556 = vunpack.c.h.b16 %v460
    %v557 = vunpack.c.h.b16 %v461
    %v558 = vunpack.c.h.b16 %v462
    %v559 = vunpack.c.h.b16 %v463
    %v560 = vpack.c.b16 %v497, %v496
    %v561 = vpack.c.b16 %v499, %v498
    %v562 = vpack.c.b16 %v501, %v500
    %v563 = vpack.c.b16 %v503, %v502
    %v564 = vpack.c.b16 %v505, %v504
    %v565 = vpack.c.b16 %v507, %v506
    %v566 = vpack.c.b16 %v509, %v508
    %v567 = vpack.c.b16 %v511, %v510
    %v568 = vpack.c.b16 %v513, %v512
    %v569 = vpack.c.b16 %v515, %v514
    %v570 = vpack.c.b16 %v517, %v516
    %v571 = vpack.c.b16 %v519, %v518
    %v572 = vpack.c.b16 %v521, %v520
    %v573 = vpack.c.b16 %v523, %v522
    %v574 = vpack.c.b16 %v525, %v524
    %v575 = vpack.c.b16 %v527, %v526
    %v576 = vpack.c.b16 %v529, %v528
    %v577 = vpack.c.b16 %v531, %v530
    %v578 = vpack.c.b16 %v533, %v532
    %v579 = vpack.c.b16 %v535, %v534
    %v580 = vpack.c.b16 %v537, %v536
    %v581 = vpack.c.b16 %v539, %v538
    %v582 = vpack.c.b16 %v541, %v540
    %v583 = vpack.c.b16 %v543, %v542
    %v584 = vpack.c.b16 %v545, %v544
    %v585 = vpack.c.b16 %v547, %v546
    %v586 = vpack.c.b16 %v549, %v548
    %v587 = vpack.c.b16 %v551, %v550
    %v588 = vpack.c.b16 %v553, %v552
    %v589 = vpack.c.b16 %v555, %v554
    %v590 = vpack.c.b16 %v557, %v556
    %v591 = vpack.c.b16 %v559, %v558
    %624 = vst [vmem:[#allocation8] sm:$0xff] %v560
    %625 = vst [vmem:[#allocation8 + $0x8] sm:$0xff] %v561
    %626 = vst [vmem:[#allocation8 + $0x10] sm:$0xff] %v562
    %627 = vst [vmem:[#allocation8 + $0x18] sm:$0xff] %v563
    %628 = vst [vmem:[#allocation8 + $0x20] sm:$0xff] %v564
    %629 = vst [vmem:[#allocation8 + $0x28] sm:$0xff] %v565
    %630 = vst [vmem:[#allocation8 + $0x30] sm:$0xff] %v566
    %631 = vst [vmem:[#allocation8 + $0x38] sm:$0xff] %v567
    %632 = vst [vmem:[#allocation8 + $0x40] sm:$0xff] %v568
    %633 = vst [vmem:[#allocation8 + $0x48] sm:$0xff] %v569
    %634 = vst [vmem:[#allocation8 + $0x50] sm:$0xff] %v570
    %635 = vst [vmem:[#allocation8 + $0x58] sm:$0xff] %v571
    %636 = vst [vmem:[#allocation8 + $0x60] sm:$0xff] %v572
    %637 = vst [vmem:[#allocation8 + $0x68] sm:$0xff] %v573
    %638 = vst [vmem:[#allocation8 + $0x70] sm:$0xff] %v574
    %639 = vst [vmem:[#allocation8 + $0x78] sm:$0xff] %v575
    %640 = vst [vmem:[#allocation8 + $0x80] sm:$0xff] %v576
    %641 = vst [vmem:[#allocation8 + $0x88] sm:$0xff] %v577
    %642 = vst [vmem:[#allocation8 + $0x90] sm:$0xff] %v578
    %643 = vst [vmem:[#allocation8 + $0x98] sm:$0xff] %v579
    %644 = vst [vmem:[#allocation8 + $0xa0] sm:$0xff] %v580
    %645 = vst [vmem:[#allocation8 + $0xa8] sm:$0xff] %v581
    %646 = vst [vmem:[#allocation8 + $0xb0] sm:$0xff] %v582
    %647 = vst [vmem:[#allocation8 + $0xb8] sm:$0xff] %v583
    %648 = vst [vmem:[#allocation8 + $0xc0] sm:$0xff] %v584
    %649 = vst [vmem:[#allocation8 + $0xc8] sm:$0xff] %v585
    %650 = vst [vmem:[#allocation8 + $0xd0] sm:$0xff] %v586
    %651 = vst [vmem:[#allocation8 + $0xd8] sm:$0xff] %v587
    %652 = vst [vmem:[#allocation8 + $0xe0] sm:$0xff] %v588
    %653 = vst [vmem:[#allocation8 + $0xe8] sm:$0xff] %v589
    %654 = vst [vmem:[#allocation8 + $0xf0] sm:$0xff] %v590
    %655 = vst [vmem:[#allocation8 + $0xf8] sm:$0xff] %v591
    // Predicated region
    $region26: #{_forward.5} parent=1 // pred_check
      _
    $region27: #{_forward.5} parent=1 // pred_check_branch
      %657 = sbr.rel (0) target = $region29
    $region28: #{_forward.5} parent=1 // pred_region
      %s659 = ssub.s32 4096, 4096
      %660 = vsyncadd [#allocation4], %s659
      %s661 = sshll.u32 [#allocation8], 4
      %s662 = int_to_ptr.vmem [resolvable:$true] %s661
      %667 = dma.vmem_to_hbm [thread:$0]  %s662, 4096, %s3, [#allocation4], 256, 256, 16
    $region29: #{_forward.5} parent=1 // pred_fallthru
      _
    // Predicated region
    $region30: #{_forward.5} parent=1 // pred_check
      _
    $region31: #{_forward.5} parent=1 // pred_check_branch
      %669 = sbr.rel (0) target = $region33
    $region32: #{_forward.5} parent=1 // pred_region
      %670 = dma.done [#allocation4], 4096
    $region33: #{_forward.5} parent=1 // pred_fallthru
      _
    %671 = vsyncpa [#allocation3], 1
    %672 = vsyncpa [#allocation6], 1
    %673 = vsyncpa [#allocation4], 1

// kernel: _forward.9
$region0: #{_forward.9}
  #allocation0 [shape = 'u32[]', space=smem, size = 0x4, offset = 0x4, fixed_abs, tag = 'smem constant byte address 0x4 - core index']
  #allocation1 [shape = 'u32[144,128]{1,0:T(1,128)}', space=vmem, size = 0x12000, scoped, tag = 'internal scratch']
  %s0 = inlined_call_operand.hbm [shape: bf16[128,128], index: 0, kind: input, shape index: {}]
  %s1 = inlined_call_operand.hbm [shape: bf16[128,128], index: 1, kind: input, shape index: {}]
  %s2 = inlined_call_operand.hbm [shape: f32[1,128], index: 2, kind: input, shape index: {}]
  %s3 = inlined_call_operand.hbm [shape: f32[128,128], index: 3, kind: output, shape index: {}]
  %s4 = sld [smem:[#allocation0]]
  $region34: #{_forward.9} parent=0
    _
  %s6 = ssub.s32 1, %s4
  %s7 = scalar_select 0, %s6, %s4
  $region1: #{_forward.9} parent=0
    #allocation2 [shape = 'u8[32768]{0}', space=vmem, size = 0x8000, scoped, tag = 'input window, operand 0, single buffered']
    #allocation3 [shape = 's32[1]{0}', space=sflag, size = 0x4, scoped, tag = 'scoped memory for _forward.9']
    #allocation4 [shape = 's32[1]{0}', space=sflag, size = 0x4, scoped, tag = 'scoped memory for _forward.9']
    #allocation5 [shape = 'u8[32768]{0}', space=vmem, size = 0x8000, scoped, tag = 'input window, operand 1, single buffered']
    #allocation6 [shape = 's32[1]{0}', space=sflag, size = 0x4, scoped, tag = 'scoped memory for _forward.9']
    #allocation7 [shape = 'u8[512]{0}', space=vmem, size = 0x400, scoped, tag = 'input window, operand 2, single buffered']
    #allocation8 [shape = 'u8[65536]{0}', space=vmem, size = 0x10000, scoped, tag = 'output window, operand 0, single buffered']
    %8 = vsyncpa [#allocation3], 0
    %9 = vsyncpa [#allocation6], 0
    %10 = vsyncpa [#allocation4], 0
    // Predicated region
    $region2: #{_forward.9} parent=1 // pred_check
      _
    $region3: #{_forward.9} parent=1 // pred_check_branch
      %12 = sbr.rel (0) target = $region5
    $region4: #{_forward.9} parent=1 // pred_region
      %s14 = ssub.s32 1024, 1024
      %15 = vsyncadd [#allocation3], %s14
      %s16 = sshll.u32 [#allocation2], 4
      %s17 = int_to_ptr.vmem [resolvable:$true] %s16
      %22 = dma.hbm_to_vmem [thread:$0]  %s0, 1024, %s17, [#allocation3], 64, 64, 4
    $region5: #{_forward.9} parent=1 // pred_fallthru
      _
    // Predicated region
    $region6: #{_forward.9} parent=1 // pred_check
      _
    $region7: #{_forward.9} parent=1 // pred_check_branch
      %24 = sbr.rel (0) target = $region9
    $region8: #{_forward.9} parent=1 // pred_region
      %s26 = ssub.s32 1024, 1024
      %27 = vsyncadd [#allocation6], %s26
      %s28 = sshll.u32 [#allocation5], 4
      %s29 = int_to_ptr.vmem [resolvable:$true] %s28
      %34 = dma.hbm_to_vmem [thread:$0]  %s1, 1024, %s29, [#allocation6], 64, 64, 4
    $region9: #{_forward.9} parent=1 // pred_fallthru
      _
    // Predicated region
    $region10: #{_forward.9} parent=1 // pred_check
      _
    $region11: #{_forward.9} parent=1 // pred_check_branch
      %36 = sbr.rel (0) target = $region13
    $region12: #{_forward.9} parent=1 // pred_region
      %s38 = ssub.s32 16, 16
      %39 = vsyncadd [#allocation6], %s38
      %s41 = sshll.u32 [#allocation7], 4
      %s42 = int_to_ptr.vmem [resolvable:$true] %s41
      %44 = dma.hbm_to_vmem [thread:$0]  %s2, 16, %s42, [#allocation6]
    $region13: #{_forward.9} parent=1 // pred_fallthru
      _
    // Predicated region
    $region14: #{_forward.9} parent=1 // pred_check
      _
    $region15: #{_forward.9} parent=1 // pred_check_branch
      %46 = sbr.rel (0) target = $region17
    $region16: #{_forward.9} parent=1 // pred_region
      %47 = dma.done [#allocation3], 1024
    $region17: #{_forward.9} parent=1 // pred_fallthru
      _
    // Predicated region
    $region18: #{_forward.9} parent=1 // pred_check
      _
    $region19: #{_forward.9} parent=1 // pred_check_branch
      %49 = sbr.rel (0) target = $region21
    $region20: #{_forward.9} parent=1 // pred_region
      %50 = dma.done [#allocation6], 1024
    $region21: #{_forward.9} parent=1 // pred_fallthru
      _
    // Predicated region
    $region22: #{_forward.9} parent=1 // pred_check
      _
    $region23: #{_forward.9} parent=1 // pred_check_branch
      %52 = sbr.rel (0) target = $region25
    $region24: #{_forward.9} parent=1 // pred_region
      %53 = dma.done [#allocation6], 16
    $region25: #{_forward.9} parent=1 // pred_fallthru
      _
    %v55 = vld [vmem:[#allocation2] sm:$0xf]
    %v56 = vld [vmem:[#allocation2 + $0x4] sm:$0xf]
    %v57 = vld [vmem:[#allocation2 + $0x8] sm:$0xf]
    %v58 = vld [vmem:[#allocation2 + $0xc] sm:$0xf]
    %v59 = vld [vmem:[#allocation2 + $0x10] sm:$0xf]
    %v60 = vld [vmem:[#allocation2 + $0x14] sm:$0xf]
    %v61 = vld [vmem:[#allocation2 + $0x18] sm:$0xf]
    %v62 = vld [vmem:[#allocation2 + $0x1c] sm:$0xf]
    %v63 = vld [vmem:[#allocation2 + $0x20] sm:$0xf]
    %v64 = vld [vmem:[#allocation2 + $0x24] sm:$0xf]
    %v65 = vld [vmem:[#allocation2 + $0x28] sm:$0xf]
    %v66 = vld [vmem:[#allocation2 + $0x2c] sm:$0xf]
    %v67 = vld [vmem:[#allocation2 + $0x30] sm:$0xf]
    %v68 = vld [vmem:[#allocation2 + $0x34] sm:$0xf]
    %v69 = vld [vmem:[#allocation2 + $0x38] sm:$0xf]
    %v70 = vld [vmem:[#allocation2 + $0x3c] sm:$0xf]
    %v71 = vld [vmem:[#allocation5] sm:$0xf]
    %v72 = vld [vmem:[#allocation5 + $0x4] sm:$0xf]
    %v73 = vld [vmem:[#allocation5 + $0x8] sm:$0xf]
    %v74 = vld [vmem:[#allocation5 + $0xc] sm:$0xf]
    %v75 = vld [vmem:[#allocation5 + $0x10] sm:$0xf]
    %v76 = vld [vmem:[#allocation5 + $0x14] sm:$0xf]
    %v77 = vld [vmem:[#allocation5 + $0x18] sm:$0xf]
    %v78 = vld [vmem:[#allocation5 + $0x1c] sm:$0xf]
    %v79 = vld [vmem:[#allocation5 + $0x20] sm:$0xf]
    %v80 = vld [vmem:[#allocation5 + $0x24] sm:$0xf]
    %v81 = vld [vmem:[#allocation5 + $0x28] sm:$0xf]
    %v82 = vld [vmem:[#allocation5 + $0x2c] sm:$0xf]
    %v83 = vld [vmem:[#allocation5 + $0x30] sm:$0xf]
    %v84 = vld [vmem:[#allocation5 + $0x34] sm:$0xf]
    %v85 = vld [vmem:[#allocation5 + $0x38] sm:$0xf]
    %v86 = vld [vmem:[#allocation5 + $0x3c] sm:$0xf]
    %v87 = vld [vmem:[#allocation7] sm:$0x1]
    %v89 = vlaneseq
    %v90 = vshrl.u32 %v89, 7
    %v91 = vsub.s32 0, %v90
    %v92 = vrot.slane %v87, %v91
    %v110 = vunpack.c.l.b16 %v55
    %v111 = vunpack.c.l.b16 %v56
    %v112 = vunpack.c.l.b16 %v57
    %v113 = vunpack.c.l.b16 %v58
    %v114 = vunpack.c.l.b16 %v59
    %v115 = vunpack.c.l.b16 %v60
    %v116 = vunpack.c.l.b16 %v61
    %v117 = vunpack.c.l.b16 %v62
    %v118 = vunpack.c.l.b16 %v63
    %v119 = vunpack.c.l.b16 %v64
    %v120 = vunpack.c.l.b16 %v65
    %v121 = vunpack.c.l.b16 %v66
    %v122 = vunpack.c.l.b16 %v67
    %v123 = vunpack.c.l.b16 %v68
    %v124 = vunpack.c.l.b16 %v69
    %v125 = vunpack.c.l.b16 %v70
    %v126 = vpack.c.b16 %v111, %v110
    %v127 = vpack.c.b16 %v113, %v112
    %v128 = vpack.c.b16 %v115, %v114
    %v129 = vpack.c.b16 %v117, %v116
    %v130 = vpack.c.b16 %v119, %v118
    %v131 = vpack.c.b16 %v121, %v120
    %v132 = vpack.c.b16 %v123, %v122
    %v133 = vpack.c.b16 %v125, %v124
    %v158 = vunpack.c.l.b16 %v71
    %v159 = vunpack.c.l.b16 %v72
    %v160 = vunpack.c.l.b16 %v73
    %v161 = vunpack.c.l.b16 %v74
    %v162 = vunpack.c.l.b16 %v75
    %v163 = vunpack.c.l.b16 %v76
    %v164 = vunpack.c.l.b16 %v77
    %v165 = vunpack.c.l.b16 %v78
    %v166 = vunpack.c.l.b16 %v79
    %v167 = vunpack.c.l.b16 %v80
    %v168 = vunpack.c.l.b16 %v81
    %v169 = vunpack.c.l.b16 %v82
    %v170 = vunpack.c.l.b16 %v83
    %v171 = vunpack.c.l.b16 %v84
    %v172 = vunpack.c.l.b16 %v85
    %v173 = vunpack.c.l.b16 %v86
    %v174 = vpack.c.b16 %v159, %v158
    %v175 = vpack.c.b16 %v161, %v160
    %v176 = vpack.c.b16 %v163, %v162
    %v177 = vpack.c.b16 %v165, %v164
    %v178 = vpack.c.b16 %v167, %v166
    %v179 = vpack.c.b16 %v169, %v168
    %v180 = vpack.c.b16 %v171, %v170
    %v181 = vpack.c.b16 %v173, %v172
    %190 = vmatprep.subr.bf16.mxu0 0
    %191 = vmatpush1.bf16.msra.mxu0 %v174
    %192 = vmatprep.subr.bf16.mxu0 0
    %193 = vmatpush1.bf16.msra.mxu0 %v175
    %194 = vmatprep.subr.bf16.mxu0 0
    %195 = vmatpush1.bf16.msra.mxu0 %v176
    %196 = vmatprep.subr.bf16.mxu0 0
    %197 = vmatpush1.bf16.msra.mxu0 %v177
    %198 = vmatprep.subr.bf16.mxu0 0
    %199 = vmatpush1.bf16.msra.mxu0 %v178
    %200 = vmatprep.subr.bf16.mxu0 0
    %201 = vmatpush1.bf16.msra.mxu0 %v179
    %202 = vmatprep.subr.bf16.mxu0 0
    %203 = vmatpush1.bf16.msra.mxu0 %v180
    %204 = vmatprep.subr.bf16.mxu0 0
    %205 = vmatpush1.bf16.msra.mxu0 %v181
    %206 = vmatprep.subr.bf16.mxu0 0
    %207 = vmatpush1.bf16.msra.mxu0 0
    %208 = vmatprep.subr.bf16.mxu0 0
    %209 = vmatpush1.bf16.msra.mxu0 0
    %210 = vmatprep.subr.bf16.mxu0 0
    %211 = vmatpush1.bf16.msra.mxu0 0
    %212 = vmatprep.subr.bf16.mxu0 0
    %213 = vmatpush1.bf16.msra.mxu0 0
    %214 = vmatprep.subr.bf16.mxu0 0
    %215 = vmatpush1.bf16.msra.mxu0 0
    %216 = vmatprep.subr.bf16.mxu0 0
    %217 = vmatpush1.bf16.msra.mxu0 0
    %218 = vmatprep.subr.bf16.mxu0 0
    %219 = vmatpush1.bf16.msra.mxu0 0
    %220 = vmatprep.subr.bf16.mxu0 0
    %221 = vmatpush1.bf16.msra.mxu0 0
    %222 = vmatprep.mubr.bf16.mxu0 0
    %223 = vmatmul.mubr.bf16.gmra.mrb[0].mxu0 %v126
    %v224 = vpop.f32.mrb[0].mxu0
    %v225 = vadd.f32 %v92, %v224
    %v226 = vpop.f32.mrb[0].mxu0
    %v227 = vpop.f32.mrb[0].mxu0
    %v228 = vadd.f32 %v92, %v227
    %v229 = vpop.f32.mrb[0].mxu0
    %230 = vmatprep.mubr.bf16.mxu0 0
    %231 = vmatmul.mubr.bf16.gmra.mrb[0].mxu0 %v127
    %v232 = vpop.f32.mrb[0].mxu0
    %v233 = vadd.f32 %v92, %v232
    %v234 = vpop.f32.mrb[0].mxu0
    %v235 = vpop.f32.mrb[0].mxu0
    %v236 = vadd.f32 %v92, %v235
    %v237 = vpop.f32.mrb[0].mxu0
    %238 = vmatprep.mubr.bf16.mxu0 0
    %239 = vmatmul.mubr.bf16.gmra.mrb[0].mxu0 %v128
    %v240 = vpop.f32.mrb[0].mxu0
    %v241 = vadd.f32 %v92, %v240
    %v242 = vpop.f32.mrb[0].mxu0
    %v243 = vpop.f32.mrb[0].mxu0
    %v244 = vadd.f32 %v92, %v243
    %v245 = vpop.f32.mrb[0].mxu0
    %246 = vmatprep.mubr.bf16.mxu0 0
    %247 = vmatmul.mubr.bf16.gmra.mrb[0].mxu0 %v129
    %v248 = vpop.f32.mrb[0].mxu0
    %v249 = vadd.f32 %v92, %v248
    %v250 = vpop.f32.mrb[0].mxu0
    %v251 = vpop.f32.mrb[0].mxu0
    %v252 = vadd.f32 %v92, %v251
    %v253 = vpop.f32.mrb[0].mxu0
    %254 = vmatprep.mubr.bf16.mxu0 0
    %255 = vmatmul.mubr.bf16.gmra.mrb[0].mxu0 %v130
    %v256 = vpop.f32.mrb[0].mxu0
    %v257 = vadd.f32 %v92, %v256
    %v258 = vpop.f32.mrb[0].mxu0
    %v259 = vpop.f32.mrb[0].mxu0
    %v260 = vadd.f32 %v92, %v259
    %v261 = vpop.f32.mrb[0].mxu0
    %262 = vmatprep.mubr.bf16.mxu0 0
    %263 = vmatmul.mubr.bf16.gmra.mrb[0].mxu0 %v131
    %v264 = vpop.f32.mrb[0].mxu0
    %v265 = vadd.f32 %v92, %v264
    %v266 = vpop.f32.mrb[0].mxu0
    %v267 = vpop.f32.mrb[0].mxu0
    %v268 = vadd.f32 %v92, %v267
    %v269 = vpop.f32.mrb[0].mxu0
    %270 = vmatprep.mubr.bf16.mxu0 0
    %271 = vmatmul.mubr.bf16.gmra.mrb[0].mxu0 %v132
    %v272 = vpop.f32.mrb[0].mxu0
    %v273 = vadd.f32 %v92, %v272
    %v274 = vpop.f32.mrb[0].mxu0
    %v275 = vpop.f32.mrb[0].mxu0
    %v276 = vadd.f32 %v92, %v275
    %v277 = vpop.f32.mrb[0].mxu0
    %278 = vmatprep.mubr.bf16.mxu0 0
    %279 = vmatmul.mubr.bf16.gmra.mrb[0].mxu0 %v133
    %v280 = vpop.f32.mrb[0].mxu0
    %v281 = vadd.f32 %v92, %v280
    %v282 = vpop.f32.mrb[0].mxu0
    %v283 = vpop.f32.mrb[0].mxu0
    %v284 = vadd.f32 %v92, %v283
    %v285 = vpop.f32.mrb[0].mxu0
    %286 = vdwg.mxu0
    %287 = vst [vmem:[#allocation8] sm:$0xff] %v225
    %288 = vst [vmem:[#allocation8 + $0x8] sm:$0xff] %v228
    %289 = vst [vmem:[#allocation8 + $0x10] sm:$0xff] %v233
    %290 = vst [vmem:[#allocation8 + $0x18] sm:$0xff] %v236
    %291 = vst [vmem:[#allocation8 + $0x20] sm:$0xff] %v241
    %292 = vst [vmem:[#allocation8 + $0x28] sm:$0xff] %v244
    %293 = vst [vmem:[#allocation8 + $0x30] sm:$0xff] %v249
    %294 = vst [vmem:[#allocation8 + $0x38] sm:$0xff] %v252
    %295 = vst [vmem:[#allocation8 + $0x40] sm:$0xff] %v257
    %296 = vst [vmem:[#allocation8 + $0x48] sm:$0xff] %v260
    %297 = vst [vmem:[#allocation8 + $0x50] sm:$0xff] %v265
    %298 = vst [vmem:[#allocation8 + $0x58] sm:$0xff] %v268
    %299 = vst [vmem:[#allocation8 + $0x60] sm:$0xff] %v273
    %300 = vst [vmem:[#allocation8 + $0x68] sm:$0xff] %v276
    %301 = vst [vmem:[#allocation8 + $0x70] sm:$0xff] %v281
    %302 = vst [vmem:[#allocation8 + $0x78] sm:$0xff] %v284
    // Predicated region
    $region26: #{_forward.9} parent=1 // pred_check
      _
    $region27: #{_forward.9} parent=1 // pred_check_branch
      %304 = sbr.rel (0) target = $region29
    $region28: #{_forward.9} parent=1 // pred_region
      %s306 = ssub.s32 2048, 2048
      %307 = vsyncadd [#allocation4], %s306
      %s308 = sshll.u32 [#allocation8], 4
      %s309 = int_to_ptr.vmem [resolvable:$true] %s308
      %314 = dma.vmem_to_hbm [thread:$0]  %s309, 2048, %s3, [#allocation4], 128, 128, 8
    $region29: #{_forward.9} parent=1 // pred_fallthru
      _
    // Predicated region
    $region30: #{_forward.9} parent=1 // pred_check
      _
    $region31: #{_forward.9} parent=1 // pred_check_branch
      %316 = sbr.rel (0) target = $region33
    $region32: #{_forward.9} parent=1 // pred_region
      %317 = dma.done [#allocation4], 2048
    $region33: #{_forward.9} parent=1 // pred_fallthru
      _
    %318 = vsyncpa [#allocation3], 1
    %319 = vsyncpa [#allocation6], 1
    %320 = vsyncpa [#allocation4], 1

// kernel: _forward.7
$region0: #{_forward.7}
  #allocation0 [shape = 'u32[]', space=smem, size = 0x4, offset = 0x4, fixed_abs, tag = 'smem constant byte address 0x4 - core index']
  #allocation1 [shape = 'u32[144,128]{1,0:T(1,128)}', space=vmem, size = 0x12000, scoped, tag = 'internal scratch']
  %s0 = inlined_call_operand.hbm [shape: bf16[128,128], index: 0, kind: input, shape index: {}]
  %s1 = inlined_call_operand.hbm [shape: bf16[128,512], index: 1, kind: input, shape index: {}]
  %s2 = inlined_call_operand.hbm [shape: f32[1,512], index: 2, kind: input, shape index: {}]
  %s3 = inlined_call_operand.hbm [shape: bf16[128,512], index: 3, kind: output, shape index: {}]
  %s4 = sld [smem:[#allocation0]]
  $region34: #{_forward.7} parent=0
    _
  %s6 = ssub.s32 1, %s4
  %s7 = scalar_select 0, %s6, %s4
  $region1: #{_forward.7} parent=0
    #allocation2 [shape = 'u8[32768]{0}', space=vmem, size = 0x8000, scoped, tag = 'input window, operand 0, single buffered']
    #allocation3 [shape = 's32[1]{0}', space=sflag, size = 0x4, scoped, tag = 'scoped memory for _forward.7']
    #allocation4 [shape = 's32[1]{0}', space=sflag, size = 0x4, scoped, tag = 'scoped memory for _forward.7']
    #allocation5 [shape = 'u8[131072]{0}', space=vmem, size = 0x20000, scoped, tag = 'input window, operand 1, single buffered']
    #allocation6 [shape = 's32[1]{0}', space=sflag, size = 0x4, scoped, tag = 'scoped memory for _forward.7']
    #allocation7 [shape = 'u8[2048]{0}', space=vmem, size = 0x800, scoped, tag = 'input window, operand 2, single buffered']
    #allocation8 [shape = 'u8[131072]{0}', space=vmem, size = 0x20000, scoped, tag = 'output window, operand 0, single buffered']
    %8 = vsyncpa [#allocation3], 0
    %9 = vsyncpa [#allocation6], 0
    %10 = vsyncpa [#allocation4], 0
    // Predicated region
    $region2: #{_forward.7} parent=1 // pred_check
      _
    $region3: #{_forward.7} parent=1 // pred_check_branch
      %12 = sbr.rel (0) target = $region5
    $region4: #{_forward.7} parent=1 // pred_region
      %s14 = ssub.s32 1024, 1024
      %15 = vsyncadd [#allocation3], %s14
      %s16 = sshll.u32 [#allocation2], 4
      %s17 = int_to_ptr.vmem [resolvable:$true] %s16
      %22 = dma.hbm_to_vmem [thread:$0]  %s0, 1024, %s17, [#allocation3], 64, 64, 4
    $region5: #{_forward.7} parent=1 // pred_fallthru
      _
    // Predicated region
    $region6: #{_forward.7} parent=1 // pred_check
      _
    $region7: #{_forward.7} parent=1 // pred_check_branch
      %24 = sbr.rel (0) target = $region9
    $region8: #{_forward.7} parent=1 // pred_region
      %s26 = ssub.s32 4096, 4096
      %27 = vsyncadd [#allocation6], %s26
      %s28 = sshll.u32 [#allocation5], 4
      %s29 = int_to_ptr.vmem [resolvable:$true] %s28
      %34 = dma.hbm_to_vmem [thread:$0]  %s1, 4096, %s29, [#allocation6], 256, 256, 16
    $region9: #{_forward.7} parent=1 // pred_fallthru
      _
    // Predicated region
    $region10: #{_forward.7} parent=1 // pred_check
      _
    $region11: #{_forward.7} parent=1 // pred_check_branch
      %36 = sbr.rel (0) target = $region13
    $region12: #{_forward.7} parent=1 // pred_region
      %s38 = ssub.s32 64, 64
      %39 = vsyncadd [#allocation6], %s38
      %s41 = sshll.u32 [#allocation7], 4
      %s42 = int_to_ptr.vmem [resolvable:$true] %s41
      %44 = dma.hbm_to_vmem [thread:$0]  %s2, 64, %s42, [#allocation6]
    $region13: #{_forward.7} parent=1 // pred_fallthru
      _
    // Predicated region
    $region14: #{_forward.7} parent=1 // pred_check
      _
    $region15: #{_forward.7} parent=1 // pred_check_branch
      %46 = sbr.rel (0) target = $region17
    $region16: #{_forward.7} parent=1 // pred_region
      %47 = dma.done [#allocation3], 1024
    $region17: #{_forward.7} parent=1 // pred_fallthru
      _
    // Predicated region
    $region18: #{_forward.7} parent=1 // pred_check
      _
    $region19: #{_forward.7} parent=1 // pred_check_branch
      %49 = sbr.rel (0) target = $region21
    $region20: #{_forward.7} parent=1 // pred_region
      %50 = dma.done [#allocation6], 4096
    $region21: #{_forward.7} parent=1 // pred_fallthru
      _
    // Predicated region
    $region22: #{_forward.7} parent=1 // pred_check
      _
    $region23: #{_forward.7} parent=1 // pred_check_branch
      %52 = sbr.rel (0) target = $region25
    $region24: #{_forward.7} parent=1 // pred_region
      %53 = dma.done [#allocation6], 64
    $region25: #{_forward.7} parent=1 // pred_fallthru
      _
    %v55 = vld [vmem:[#allocation2] sm:$0xf]
    %v56 = vld [vmem:[#allocation2 + $0x4] sm:$0xf]
    %v57 = vld [vmem:[#allocation2 + $0x8] sm:$0xf]
    %v58 = vld [vmem:[#allocation2 + $0xc] sm:$0xf]
    %v59 = vld [vmem:[#allocation2 + $0x10] sm:$0xf]
    %v60 = vld [vmem:[#allocation2 + $0x14] sm:$0xf]
    %v61 = vld [vmem:[#allocation2 + $0x18] sm:$0xf]
    %v62 = vld [vmem:[#allocation2 + $0x1c] sm:$0xf]
    %v63 = vld [vmem:[#allocation2 + $0x20] sm:$0xf]
    %v64 = vld [vmem:[#allocation2 + $0x24] sm:$0xf]
    %v65 = vld [vmem:[#allocation2 + $0x28] sm:$0xf]
    %v66 = vld [vmem:[#allocation2 + $0x2c] sm:$0xf]
    %v67 = vld [vmem:[#allocation2 + $0x30] sm:$0xf]
    %v68 = vld [vmem:[#allocation2 + $0x34] sm:$0xf]
    %v69 = vld [vmem:[#allocation2 + $0x38] sm:$0xf]
    %v70 = vld [vmem:[#allocation2 + $0x3c] sm:$0xf]
    %v71 = vld [vmem:[#allocation5] sm:$0xff]
    %v72 = vld [vmem:[#allocation5 + $0x8] sm:$0xff]
    %v73 = vld [vmem:[#allocation5 + $0x10] sm:$0xff]
    %v74 = vld [vmem:[#allocation5 + $0x18] sm:$0xff]
    %v75 = vld [vmem:[#allocation5 + $0x20] sm:$0xff]
    %v76 = vld [vmem:[#allocation5 + $0x28] sm:$0xff]
    %v77 = vld [vmem:[#allocation5 + $0x30] sm:$0xff]
    %v78 = vld [vmem:[#allocation5 + $0x38] sm:$0xff]
    %v79 = vld [vmem:[#allocation5 + $0x40] sm:$0xff]
    %v80 = vld [vmem:[#allocation5 + $0x48] sm:$0xff]
    %v81 = vld [vmem:[#allocation5 + $0x50] sm:$0xff]
    %v82 = vld [vmem:[#allocation5 + $0x58] sm:$0xff]
    %v83 = vld [vmem:[#allocation5 + $0x60] sm:$0xff]
    %v84 = vld [vmem:[#allocation5 + $0x68] sm:$0xff]
    %v85 = vld [vmem:[#allocation5 + $0x70] sm:$0xff]
    %v86 = vld [vmem:[#allocation5 + $0x78] sm:$0xff]
    %v87 = vld [vmem:[#allocation5 + $0x80] sm:$0xff]
    %v88 = vld [vmem:[#allocation5 + $0x88] sm:$0xff]
    %v89 = vld [vmem:[#allocation5 + $0x90] sm:$0xff]
    %v90 = vld [vmem:[#allocation5 + $0x98] sm:$0xff]
    %v91 = vld [vmem:[#allocation5 + $0xa0] sm:$0xff]
    %v92 = vld [vmem:[#allocation5 + $0xa8] sm:$0xff]
    %v93 = vld [vmem:[#allocation5 + $0xb0] sm:$0xff]
    %v94 = vld [vmem:[#allocation5 + $0xb8] sm:$0xff]
    %v95 = vld [vmem:[#allocation5 + $0xc0] sm:$0xff]
    %v96 = vld [vmem:[#allocation5 + $0xc8] sm:$0xff]
    %v97 = vld [vmem:[#allocation5 + $0xd0] sm:$0xff]
    %v98 = vld [vmem:[#allocation5 + $0xd8] sm:$0xff]
    %v99 = vld [vmem:[#allocation5 + $0xe0] sm:$0xff]
    %v100 = vld [vmem:[#allocation5 + $0xe8] sm:$0xff]
    %v101 = vld [vmem:[#allocation5 + $0xf0] sm:$0xff]
    %v102 = vld [vmem:[#allocation5 + $0xf8] sm:$0xff]
    %v103 = vld [vmem:[#allocation7] sm:$0xf]
    %v105 = vlaneseq
    %v106 = vshrl.u32 %v105, 7
    %v107 = vsub.s32 0, %v106
    %v108 = vrot.slane %v103, %v107
    %v109 = vlaneseq
    %v110 = vshrl.u32 %v109, 7
    %v111 = vsub.s32 1, %v110
    %v112 = vrot.slane %v103, %v111
    %v113 = vlaneseq
    %v114 = vshrl.u32 %v113, 7
    %v115 = vsub.s32 2, %v114
    %v116 = vrot.slane %v103, %v115
    %v117 = vlaneseq
    %v118 = vshrl.u32 %v117, 7
    %v119 = vsub.s32 3, %v118
    %v120 = vrot.slane %v103, %v119
    %v141 = vunpack.c.l.b16 %v55
    %v142 = vunpack.c.l.b16 %v56
    %v143 = vunpack.c.l.b16 %v57
    %v144 = vunpack.c.l.b16 %v58
    %v145 = vunpack.c.l.b16 %v59
    %v146 = vunpack.c.l.b16 %v60
    %v147 = vunpack.c.l.b16 %v61
    %v148 = vunpack.c.l.b16 %v62
    %v149 = vunpack.c.l.b16 %v63
    %v150 = vunpack.c.l.b16 %v64
    %v151 = vunpack.c.l.b16 %v65
    %v152 = vunpack.c.l.b16 %v66
    %v153 = vunpack.c.l.b16 %v67
    %v154 = vunpack.c.l.b16 %v68
    %v155 = vunpack.c.l.b16 %v69
    %v156 = vunpack.c.l.b16 %v70
    %v157 = vpack.c.b16 %v142, %v141
    %v158 = vpack.c.b16 %v144, %v143
    %v159 = vpack.c.b16 %v146, %v145
    %v160 = vpack.c.b16 %v148, %v147
    %v161 = vpack.c.b16 %v150, %v149
    %v162 = vpack.c.b16 %v152, %v151
    %v163 = vpack.c.b16 %v154, %v153
    %v164 = vpack.c.b16 %v156, %v155
    %v205 = vunpack.c.l.b16 %v71
    %v206 = vunpack.c.h.b16 %v71
    %v207 = vunpack.c.l.b16 %v72
    %v208 = vunpack.c.h.b16 %v72
    %v209 = vunpack.c.l.b16 %v73
    %v210 = vunpack.c.h.b16 %v73
    %v211 = vunpack.c.l.b16 %v74
    %v212 = vunpack.c.h.b16 %v74
    %v213 = vunpack.c.l.b16 %v75
    %v214 = vunpack.c.h.b16 %v75
    %v215 = vunpack.c.l.b16 %v76
    %v216 = vunpack.c.h.b16 %v76
    %v217 = vunpack.c.l.b16 %v77
    %v218 = vunpack.c.h.b16 %v77
    %v219 = vunpack.c.l.b16 %v78
    %v220 = vunpack.c.h.b16 %v78
    %v221 = vunpack.c.l.b16 %v79
    %v222 = vunpack.c.h.b16 %v79
    %v223 = vunpack.c.l.b16 %v80
    %v224 = vunpack.c.h.b16 %v80
    %v225 = vunpack.c.l.b16 %v81
    %v226 = vunpack.c.h.b16 %v81
    %v227 = vunpack.c.l.b16 %v82
    %v228 = vunpack.c.h.b16 %v82
    %v229 = vunpack.c.l.b16 %v83
    %v230 = vunpack.c.h.b16 %v83
    %v231 = vunpack.c.l.b16 %v84
    %v232 = vunpack.c.h.b16 %v84
    %v233 = vunpack.c.l.b16 %v85
    %v234 = vunpack.c.h.b16 %v85
    %v235 = vunpack.c.l.b16 %v86
    %v236 = vunpack.c.h.b16 %v86
    %v237 = vunpack.c.l.b16 %v87
    %v238 = vunpack.c.h.b16 %v87
    %v239 = vunpack.c.l.b16 %v88
    %v240 = vunpack.c.h.b16 %v88
    %v241 = vunpack.c.l.b16 %v89
    %v242 = vunpack.c.h.b16 %v89
    %v243 = vunpack.c.l.b16 %v90
    %v244 = vunpack.c.h.b16 %v90
    %v245 = vunpack.c.l.b16 %v91
    %v246 = vunpack.c.h.b16 %v91
    %v247 = vunpack.c.l.b16 %v92
    %v248 = vunpack.c.h.b16 %v92
    %v249 = vunpack.c.l.b16 %v93
    %v250 = vunpack.c.h.b16 %v93
    %v251 = vunpack.c.l.b16 %v94
    %v252 = vunpack.c.h.b16 %v94
    %v253 = vunpack.c.l.b16 %v95
    %v254 = vunpack.c.h.b16 %v95
    %v255 = vunpack.c.l.b16 %v96
    %v256 = vunpack.c.h.b16 %v96
    %v257 = vunpack.c.l.b16 %v97
    %v258 = vunpack.c.h.b16 %v97
    %v259 = vunpack.c.l.b16 %v98
    %v260 = vunpack.c.h.b16 %v98
    %v261 = vunpack.c.l.b16 %v99
    %v262 = vunpack.c.h.b16 %v99
    %v263 = vunpack.c.l.b16 %v100
    %v264 = vunpack.c.h.b16 %v100
    %v265 = vunpack.c.l.b16 %v101
    %v266 = vunpack.c.h.b16 %v101
    %v267 = vunpack.c.l.b16 %v102
    %v268 = vunpack.c.h.b16 %v102
    %v269 = vpack.c.b16 %v209, %v205
    %v270 = vpack.c.b16 %v210, %v206
    %v271 = vpack.c.b16 %v211, %v207
    %v272 = vpack.c.b16 %v212, %v208
    %v273 = vpack.c.b16 %v217, %v213
    %v274 = vpack.c.b16 %v218, %v214
    %v275 = vpack.c.b16 %v219, %v215
    %v276 = vpack.c.b16 %v220, %v216
    %v277 = vpack.c.b16 %v225, %v221
    %v278 = vpack.c.b16 %v226, %v222
    %v279 = vpack.c.b16 %v227, %v223
    %v280 = vpack.c.b16 %v228, %v224
    %v281 = vpack.c.b16 %v233, %v229
    %v282 = vpack.c.b16 %v234, %v230
    %v283 = vpack.c.b16 %v235, %v231
    %v284 = vpack.c.b16 %v236, %v232
    %v285 = vpack.c.b16 %v241, %v237
    %v286 = vpack.c.b16 %v242, %v238
    %v287 = vpack.c.b16 %v243, %v239
    %v288 = vpack.c.b16 %v244, %v240
    %v289 = vpack.c.b16 %v249, %v245
    %v290 = vpack.c.b16 %v250, %v246
    %v291 = vpack.c.b16 %v251, %v247
    %v292 = vpack.c.b16 %v252, %v248
    %v293 = vpack.c.b16 %v257, %v253
    %v294 = vpack.c.b16 %v258, %v254
    %v295 = vpack.c.b16 %v259, %v255
    %v296 = vpack.c.b16 %v260, %v256
    %v297 = vpack.c.b16 %v265, %v261
    %v298 = vpack.c.b16 %v266, %v262
    %v299 = vpack.c.b16 %v267, %v263
    %v300 = vpack.c.b16 %v268, %v264
    %333 = vmatprep.subr.bf16.mxu0 %v270
    %334 = vmatpush1.bf16.msra.mxu0 %v269
    %335 = vmatprep.subr.bf16.mxu0 %v274
    %336 = vmatpush1.bf16.msra.mxu0 %v273
    %337 = vmatprep.subr.bf16.mxu0 %v278
    %338 = vmatpush1.bf16.msra.mxu0 %v277
    %339 = vmatprep.subr.bf16.mxu0 %v282
    %340 = vmatpush1.bf16.msra.mxu0 %v281
    %341 = vmatprep.subr.bf16.mxu0 %v286
    %342 = vmatpush1.bf16.msra.mxu0 %v285
    %343 = vmatprep.subr.bf16.mxu0 %v290
    %344 = vmatpush1.bf16.msra.mxu0 %v289
    %345 = vmatprep.subr.bf16.mxu0 %v294
    %346 = vmatpush1.bf16.msra.mxu0 %v293
    %347 = vmatprep.subr.bf16.mxu0 %v298
    %348 = vmatpush1.bf16.msra.mxu0 %v297
    %349 = vmatprep.subr.bf16.mxu0 0
    %350 = vmatpush1.bf16.msra.mxu0 0
    %351 = vmatprep.subr.bf16.mxu0 0
    %352 = vmatpush1.bf16.msra.mxu0 0
    %353 = vmatprep.subr.bf16.mxu0 0
    %354 = vmatpush1.bf16.msra.mxu0 0
    %355 = vmatprep.subr.bf16.mxu0 0
    %356 = vmatpush1.bf16.msra.mxu0 0
    %357 = vmatprep.subr.bf16.mxu0 0
    %358 = vmatpush1.bf16.msra.mxu0 0
    %359 = vmatprep.subr.bf16.mxu0 0
    %360 = vmatpush1.bf16.msra.mxu0 0
    %361 = vmatprep.subr.bf16.mxu0 0
    %362 = vmatpush1.bf16.msra.mxu0 0
    %363 = vmatprep.subr.bf16.mxu0 0
    %364 = vmatpush1.bf16.msra.mxu0 0
    %365 = vmatprep.mubr.bf16.mxu0 0
    %366 = vmatmul.mubr.bf16.gmra.mrb[0].mxu0 %v157
    %v367 = vpop.f32.mrb[0].mxu0
    %v368 = vadd.f32 %v108, %v367
    %v369 = vpop.f32.mrb[0].mxu0
    %v370 = vadd.f32 %v112, %v369
    %v371 = vpop.f32.mrb[0].mxu0
    %v372 = vadd.f32 %v108, %v371
    %v373 = vpop.f32.mrb[0].mxu0
    %v374 = vadd.f32 %v112, %v373
    %375 = vmatprep.mubr.bf16.mxu0 0
    %376 = vmatmul.mubr.bf16.gmra.mrb[0].mxu0 %v158
    %v377 = vpop.f32.mrb[0].mxu0
    %v378 = vadd.f32 %v108, %v377
    %v379 = vpop.f32.mrb[0].mxu0
    %v380 = vadd.f32 %v112, %v379
    %v381 = vpop.f32.mrb[0].mxu0
    %v382 = vadd.f32 %v108, %v381
    %v383 = vpop.f32.mrb[0].mxu0
    %v384 = vadd.f32 %v112, %v383
    %385 = vmatprep.mubr.bf16.mxu0 0
    %386 = vmatmul.mubr.bf16.gmra.mrb[0].mxu0 %v159
    %v387 = vpop.f32.mrb[0].mxu0
    %v388 = vadd.f32 %v108, %v387
    %v389 = vpop.f32.mrb[0].mxu0
    %v390 = vadd.f32 %v112, %v389
    %v391 = vpop.f32.mrb[0].mxu0
    %v392 = vadd.f32 %v108, %v391
    %v393 = vpop.f32.mrb[0].mxu0
    %v394 = vadd.f32 %v112, %v393
    %395 = vmatprep.mubr.bf16.mxu0 0
    %396 = vmatmul.mubr.bf16.gmra.mrb[0].mxu0 %v160
    %v397 = vpop.f32.mrb[0].mxu0
    %v398 = vadd.f32 %v108, %v397
    %v399 = vpop.f32.mrb[0].mxu0
    %v400 = vadd.f32 %v112, %v399
    %v401 = vpop.f32.mrb[0].mxu0
    %v402 = vadd.f32 %v108, %v401
    %v403 = vpop.f32.mrb[0].mxu0
    %v404 = vadd.f32 %v112, %v403
    %405 = vmatprep.mubr.bf16.mxu0 0
    %406 = vmatmul.mubr.bf16.gmra.mrb[0].mxu0 %v161
    %v407 = vpop.f32.mrb[0].mxu0
    %v408 = vadd.f32 %v108, %v407
    %v409 = vpop.f32.mrb[0].mxu0
    %v410 = vadd.f32 %v112, %v409
    %v411 = vpop.f32.mrb[0].mxu0
    %v412 = vadd.f32 %v108, %v411
    %v413 = vpop.f32.mrb[0].mxu0
    %v414 = vadd.f32 %v112, %v413
    %415 = vmatprep.mubr.bf16.mxu0 0
    %416 = vmatmul.mubr.bf16.gmra.mrb[0].mxu0 %v162
    %v417 = vpop.f32.mrb[0].mxu0
    %v418 = vadd.f32 %v108, %v417
    %v419 = vpop.f32.mrb[0].mxu0
    %v420 = vadd.f32 %v112, %v419
    %v421 = vpop.f32.mrb[0].mxu0
    %v422 = vadd.f32 %v108, %v421
    %v423 = vpop.f32.mrb[0].mxu0
    %v424 = vadd.f32 %v112, %v423
    %425 = vmatprep.mubr.bf16.mxu0 0
    %426 = vmatmul.mubr.bf16.gmra.mrb[0].mxu0 %v163
    %v427 = vpop.f32.mrb[0].mxu0
    %v428 = vadd.f32 %v108, %v427
    %v429 = vpop.f32.mrb[0].mxu0
    %v430 = vadd.f32 %v112, %v429
    %v431 = vpop.f32.mrb[0].mxu0
    %v432 = vadd.f32 %v108, %v431
    %v433 = vpop.f32.mrb[0].mxu0
    %v434 = vadd.f32 %v112, %v433
    %435 = vmatprep.mubr.bf16.mxu0 0
    %436 = vmatmul.mubr.bf16.gmra.mrb[0].mxu0 %v164
    %v437 = vpop.f32.mrb[0].mxu0
    %v438 = vadd.f32 %v108, %v437
    %v439 = vpop.f32.mrb[0].mxu0
    %v440 = vadd.f32 %v112, %v439
    %v441 = vpop.f32.mrb[0].mxu0
    %v442 = vadd.f32 %v108, %v441
    %v443 = vpop.f32.mrb[0].mxu0
    %v444 = vadd.f32 %v112, %v443
    %445 = vdwg.mxu0
    %446 = vmatprep.subr.bf16.mxu0 %v272
    %447 = vmatpush1.bf16.msra.mxu0 %v271
    %448 = vmatprep.subr.bf16.mxu0 %v276
    %449 = vmatpush1.bf16.msra.mxu0 %v275
    %450 = vmatprep.subr.bf16.mxu0 %v280
    %451 = vmatpush1.bf16.msra.mxu0 %v279
    %452 = vmatprep.subr.bf16.mxu0 %v284
    %453 = vmatpush1.bf16.msra.mxu0 %v283
    %454 = vmatprep.subr.bf16.mxu0 %v288
    %455 = vmatpush1.bf16.msra.mxu0 %v287
    %456 = vmatprep.subr.bf16.mxu0 %v292
    %457 = vmatpush1.bf16.msra.mxu0 %v291
    %458 = vmatprep.subr.bf16.mxu0 %v296
    %459 = vmatpush1.bf16.msra.mxu0 %v295
    %460 = vmatprep.subr.bf16.mxu0 %v300
    %461 = vmatpush1.bf16.msra.mxu0 %v299
    %462 = vmatprep.subr.bf16.mxu0 0
    %463 = vmatpush1.bf16.msra.mxu0 0
    %464 = vmatprep.subr.bf16.mxu0 0
    %465 = vmatpush1.bf16.msra.mxu0 0
    %466 = vmatprep.subr.bf16.mxu0 0
    %467 = vmatpush1.bf16.msra.mxu0 0
    %468 = vmatprep.subr.bf16.mxu0 0
    %469 = vmatpush1.bf16.msra.mxu0 0
    %470 = vmatprep.subr.bf16.mxu0 0
    %471 = vmatpush1.bf16.msra.mxu0 0
    %472 = vmatprep.subr.bf16.mxu0 0
    %473 = vmatpush1.bf16.msra.mxu0 0
    %474 = vmatprep.subr.bf16.mxu0 0
    %475 = vmatpush1.bf16.msra.mxu0 0
    %476 = vmatprep.subr.bf16.mxu0 0
    %477 = vmatpush1.bf16.msra.mxu0 0
    %478 = vmatprep.mubr.bf16.mxu0 0
    %479 = vmatmul.mubr.bf16.gmra.mrb[0].mxu0 %v157
    %v480 = vpop.f32.mrb[0].mxu0
    %v481 = vadd.f32 %v116, %v480
    %v482 = vpop.f32.mrb[0].mxu0
    %v483 = vadd.f32 %v120, %v482
    %v484 = vpop.f32.mrb[0].mxu0
    %v485 = vadd.f32 %v116, %v484
    %v486 = vpop.f32.mrb[0].mxu0
    %v487 = vadd.f32 %v120, %v486
    %488 = vmatprep.mubr.bf16.mxu0 0
    %489 = vmatmul.mubr.bf16.gmra.mrb[0].mxu0 %v158
    %v490 = vpop.f32.mrb[0].mxu0
    %v491 = vadd.f32 %v116, %v490
    %v492 = vpop.f32.mrb[0].mxu0
    %v493 = vadd.f32 %v120, %v492
    %v494 = vpop.f32.mrb[0].mxu0
    %v495 = vadd.f32 %v116, %v494
    %v496 = vpop.f32.mrb[0].mxu0
    %v497 = vadd.f32 %v120, %v496
    %498 = vmatprep.mubr.bf16.mxu0 0
    %499 = vmatmul.mubr.bf16.gmra.mrb[0].mxu0 %v159
    %v500 = vpop.f32.mrb[0].mxu0
    %v501 = vadd.f32 %v116, %v500
    %v502 = vpop.f32.mrb[0].mxu0
    %v503 = vadd.f32 %v120, %v502
    %v504 = vpop.f32.mrb[0].mxu0
    %v505 = vadd.f32 %v116, %v504
    %v506 = vpop.f32.mrb[0].mxu0
    %v507 = vadd.f32 %v120, %v506
    %508 = vmatprep.mubr.bf16.mxu0 0
    %509 = vmatmul.mubr.bf16.gmra.mrb[0].mxu0 %v160
    %v510 = vpop.f32.mrb[0].mxu0
    %v511 = vadd.f32 %v116, %v510
    %v512 = vpop.f32.mrb[0].mxu0
    %v513 = vadd.f32 %v120, %v512
    %v514 = vpop.f32.mrb[0].mxu0
    %v515 = vadd.f32 %v116, %v514
    %v516 = vpop.f32.mrb[0].mxu0
    %v517 = vadd.f32 %v120, %v516
    %518 = vmatprep.mubr.bf16.mxu0 0
    %519 = vmatmul.mubr.bf16.gmra.mrb[0].mxu0 %v161
    %v520 = vpop.f32.mrb[0].mxu0
    %v521 = vadd.f32 %v116, %v520
    %v522 = vpop.f32.mrb[0].mxu0
    %v523 = vadd.f32 %v120, %v522
    %v524 = vpop.f32.mrb[0].mxu0
    %v525 = vadd.f32 %v116, %v524
    %v526 = vpop.f32.mrb[0].mxu0
    %v527 = vadd.f32 %v120, %v526
    %528 = vmatprep.mubr.bf16.mxu0 0
    %529 = vmatmul.mubr.bf16.gmra.mrb[0].mxu0 %v162
    %v530 = vpop.f32.mrb[0].mxu0
    %v531 = vadd.f32 %v116, %v530
    %v532 = vpop.f32.mrb[0].mxu0
    %v533 = vadd.f32 %v120, %v532
    %v534 = vpop.f32.mrb[0].mxu0
    %v535 = vadd.f32 %v116, %v534
    %v536 = vpop.f32.mrb[0].mxu0
    %v537 = vadd.f32 %v120, %v536
    %538 = vmatprep.mubr.bf16.mxu0 0
    %539 = vmatmul.mubr.bf16.gmra.mrb[0].mxu0 %v163
    %v540 = vpop.f32.mrb[0].mxu0
    %v541 = vadd.f32 %v116, %v540
    %v542 = vpop.f32.mrb[0].mxu0
    %v543 = vadd.f32 %v120, %v542
    %v544 = vpop.f32.mrb[0].mxu0
    %v545 = vadd.f32 %v116, %v544
    %v546 = vpop.f32.mrb[0].mxu0
    %v547 = vadd.f32 %v120, %v546
    %548 = vmatprep.mubr.bf16.mxu0 0
    %549 = vmatmul.mubr.bf16.gmra.mrb[0].mxu0 %v164
    %v550 = vpop.f32.mrb[0].mxu0
    %v551 = vadd.f32 %v116, %v550
    %v552 = vpop.f32.mrb[0].mxu0
    %v553 = vadd.f32 %v120, %v552
    %v554 = vpop.f32.mrb[0].mxu0
    %v555 = vadd.f32 %v116, %v554
    %v556 = vpop.f32.mrb[0].mxu0
    %v557 = vadd.f32 %v120, %v556
    %558 = vdwg.mxu0
    %v559 = vpack.c.bf16 %v372, %v368
    %v560 = vpack.c.bf16 %v374, %v370
    %v561 = vpack.c.bf16 %v485, %v481
    %v562 = vpack.c.bf16 %v487, %v483
    %v563 = vpack.c.bf16 %v382, %v378
    %v564 = vpack.c.bf16 %v384, %v380
    %v565 = vpack.c.bf16 %v495, %v491
    %v566 = vpack.c.bf16 %v497, %v493
    %v567 = vpack.c.bf16 %v392, %v388
    %v568 = vpack.c.bf16 %v394, %v390
    %v569 = vpack.c.bf16 %v505, %v501
    %v570 = vpack.c.bf16 %v507, %v503
    %v571 = vpack.c.bf16 %v402, %v398
    %v572 = vpack.c.bf16 %v404, %v400
    %v573 = vpack.c.bf16 %v515, %v511
    %v574 = vpack.c.bf16 %v517, %v513
    %v575 = vpack.c.bf16 %v412, %v408
    %v576 = vpack.c.bf16 %v414, %v410
    %v577 = vpack.c.bf16 %v525, %v521
    %v578 = vpack.c.bf16 %v527, %v523
    %v579 = vpack.c.bf16 %v422, %v418
    %v580 = vpack.c.bf16 %v424, %v420
    %v581 = vpack.c.bf16 %v535, %v531
    %v582 = vpack.c.bf16 %v537, %v533
    %v583 = vpack.c.bf16 %v432, %v428
    %v584 = vpack.c.bf16 %v434, %v430
    %v585 = vpack.c.bf16 %v545, %v541
    %v586 = vpack.c.bf16 %v547, %v543
    %v587 = vpack.c.bf16 %v442, %v438
    %v588 = vpack.c.bf16 %v444, %v440
    %v589 = vpack.c.bf16 %v555, %v551
    %v590 = vpack.c.bf16 %v557, %v553
    %v623 = vunpack.c.l.b16 %v559
    %v624 = vunpack.c.l.b16 %v560
    %v625 = vunpack.c.l.b16 %v561
    %v626 = vunpack.c.l.b16 %v562
    %v627 = vunpack.c.h.b16 %v559
    %v628 = vunpack.c.h.b16 %v560
    %v629 = vunpack.c.h.b16 %v561
    %v630 = vunpack.c.h.b16 %v562
    %v631 = vunpack.c.l.b16 %v563
    %v632 = vunpack.c.l.b16 %v564
    %v633 = vunpack.c.l.b16 %v565
    %v634 = vunpack.c.l.b16 %v566
    %v635 = vunpack.c.h.b16 %v563
    %v636 = vunpack.c.h.b16 %v564
    %v637 = vunpack.c.h.b16 %v565
    %v638 = vunpack.c.h.b16 %v566
    %v639 = vunpack.c.l.b16 %v567
    %v640 = vunpack.c.l.b16 %v568
    %v641 = vunpack.c.l.b16 %v569
    %v642 = vunpack.c.l.b16 %v570
    %v643 = vunpack.c.h.b16 %v567
    %v644 = vunpack.c.h.b16 %v568
    %v645 = vunpack.c.h.b16 %v569
    %v646 = vunpack.c.h.b16 %v570
    %v647 = vunpack.c.l.b16 %v571
    %v648 = vunpack.c.l.b16 %v572
    %v649 = vunpack.c.l.b16 %v573
    %v650 = vunpack.c.l.b16 %v574
    %v651 = vunpack.c.h.b16 %v571
    %v652 = vunpack.c.h.b16 %v572
    %v653 = vunpack.c.h.b16 %v573
    %v654 = vunpack.c.h.b16 %v574
    %v655 = vunpack.c.l.b16 %v575
    %v656 = vunpack.c.l.b16 %v576
    %v657 = vunpack.c.l.b16 %v577
    %v658 = vunpack.c.l.b16 %v578
    %v659 = vunpack.c.h.b16 %v575
    %v660 = vunpack.c.h.b16 %v576
    %v661 = vunpack.c.h.b16 %v577
    %v662 = vunpack.c.h.b16 %v578
    %v663 = vunpack.c.l.b16 %v579
    %v664 = vunpack.c.l.b16 %v580
    %v665 = vunpack.c.l.b16 %v581
    %v666 = vunpack.c.l.b16 %v582
    %v667 = vunpack.c.h.b16 %v579
    %v668 = vunpack.c.h.b16 %v580
    %v669 = vunpack.c.h.b16 %v581
    %v670 = vunpack.c.h.b16 %v582
    %v671 = vunpack.c.l.b16 %v583
    %v672 = vunpack.c.l.b16 %v584
    %v673 = vunpack.c.l.b16 %v585
    %v674 = vunpack.c.l.b16 %v586
    %v675 = vunpack.c.h.b16 %v583
    %v676 = vunpack.c.h.b16 %v584
    %v677 = vunpack.c.h.b16 %v585
    %v678 = vunpack.c.h.b16 %v586
    %v679 = vunpack.c.l.b16 %v587
    %v680 = vunpack.c.l.b16 %v588
    %v681 = vunpack.c.l.b16 %v589
    %v682 = vunpack.c.l.b16 %v590
    %v683 = vunpack.c.h.b16 %v587
    %v684 = vunpack.c.h.b16 %v588
    %v685 = vunpack.c.h.b16 %v589
    %v686 = vunpack.c.h.b16 %v590
    %v687 = vpack.c.b16 %v624, %v623
    %v688 = vpack.c.b16 %v626, %v625
    %v689 = vpack.c.b16 %v628, %v627
    %v690 = vpack.c.b16 %v630, %v629
    %v691 = vpack.c.b16 %v632, %v631
    %v692 = vpack.c.b16 %v634, %v633
    %v693 = vpack.c.b16 %v636, %v635
    %v694 = vpack.c.b16 %v638, %v637
    %v695 = vpack.c.b16 %v640, %v639
    %v696 = vpack.c.b16 %v642, %v641
    %v697 = vpack.c.b16 %v644, %v643
    %v698 = vpack.c.b16 %v646, %v645
    %v699 = vpack.c.b16 %v648, %v647
    %v700 = vpack.c.b16 %v650, %v649
    %v701 = vpack.c.b16 %v652, %v651
    %v702 = vpack.c.b16 %v654, %v653
    %v703 = vpack.c.b16 %v656, %v655
    %v704 = vpack.c.b16 %v658, %v657
    %v705 = vpack.c.b16 %v660, %v659
    %v706 = vpack.c.b16 %v662, %v661
    %v707 = vpack.c.b16 %v664, %v663
    %v708 = vpack.c.b16 %v666, %v665
    %v709 = vpack.c.b16 %v668, %v667
    %v710 = vpack.c.b16 %v670, %v669
    %v711 = vpack.c.b16 %v672, %v671
    %v712 = vpack.c.b16 %v674, %v673
    %v713 = vpack.c.b16 %v676, %v675
    %v714 = vpack.c.b16 %v678, %v677
    %v715 = vpack.c.b16 %v680, %v679
    %v716 = vpack.c.b16 %v682, %v681
    %v717 = vpack.c.b16 %v684, %v683
    %v718 = vpack.c.b16 %v686, %v685
    %751 = vst [vmem:[#allocation8] sm:$0xff] %v687
    %752 = vst [vmem:[#allocation8 + $0x8] sm:$0xff] %v688
    %753 = vst [vmem:[#allocation8 + $0x10] sm:$0xff] %v689
    %754 = vst [vmem:[#allocation8 + $0x18] sm:$0xff] %v690
    %755 = vst [vmem:[#allocation8 + $0x20] sm:$0xff] %v691
    %756 = vst [vmem:[#allocation8 + $0x28] sm:$0xff] %v692
    %757 = vst [vmem:[#allocation8 + $0x30] sm:$0xff] %v693
    %758 = vst [vmem:[#allocation8 + $0x38] sm:$0xff] %v694
    %759 = vst [vmem:[#allocation8 + $0x40] sm:$0xff] %v695
    %760 = vst [vmem:[#allocation8 + $0x48] sm:$0xff] %v696
    %761 = vst [vmem:[#allocation8 + $0x50] sm:$0xff] %v697
    %762 = vst [vmem:[#allocation8 + $0x58] sm:$0xff] %v698
    %763 = vst [vmem:[#allocation8 + $0x60] sm:$0xff] %v699
    %764 = vst [vmem:[#allocation8 + $0x68] sm:$0xff] %v700
    %765 = vst [vmem:[#allocation8 + $0x70] sm:$0xff] %v701
    %766 = vst [vmem:[#allocation8 + $0x78] sm:$0xff] %v702
    %767 = vst [vmem:[#allocation8 + $0x80] sm:$0xff] %v703
    %768 = vst [vmem:[#allocation8 + $0x88] sm:$0xff] %v704
    %769 = vst [vmem:[#allocation8 + $0x90] sm:$0xff] %v705
    %770 = vst [vmem:[#allocation8 + $0x98] sm:$0xff] %v706
    %771 = vst [vmem:[#allocation8 + $0xa0] sm:$0xff] %v707
    %772 = vst [vmem:[#allocation8 + $0xa8] sm:$0xff] %v708
    %773 = vst [vmem:[#allocation8 + $0xb0] sm:$0xff] %v709
    %774 = vst [vmem:[#allocation8 + $0xb8] sm:$0xff] %v710
    %775 = vst [vmem:[#allocation8 + $0xc0] sm:$0xff] %v711
    %776 = vst [vmem:[#allocation8 + $0xc8] sm:$0xff] %v712
    %777 = vst [vmem:[#allocation8 + $0xd0] sm:$0xff] %v713
    %778 = vst [vmem:[#allocation8 + $0xd8] sm:$0xff] %v714
    %779 = vst [vmem:[#allocation8 + $0xe0] sm:$0xff] %v715
    %780 = vst [vmem:[#allocation8 + $0xe8] sm:$0xff] %v716
    %781 = vst [vmem:[#allocation8 + $0xf0] sm:$0xff] %v717
    %782 = vst [vmem:[#allocation8 + $0xf8] sm:$0xff] %v718
    // Predicated region
    $region26: #{_forward.7} parent=1 // pred_check
      _
    $region27: #{_forward.7} parent=1 // pred_check_branch
      %784 = sbr.rel (0) target = $region29
    $region28: #{_forward.7} parent=1 // pred_region
      %s786 = ssub.s32 4096, 4096
      %787 = vsyncadd [#allocation4], %s786
      %s788 = sshll.u32 [#allocation8], 4
      %s789 = int_to_ptr.vmem [resolvable:$true] %s788
      %794 = dma.vmem_to_hbm [thread:$0]  %s789, 4096, %s3, [#allocation4], 256, 256, 16
    $region29: #{_forward.7} parent=1 // pred_fallthru
      _
    // Predicated region
    $region30: #{_forward.7} parent=1 // pred_check
      _
    $region31: #{_forward.7} parent=1 // pred_check_branch
      %796 = sbr.rel (0) target = $region33
    $region32: #{_forward.7} parent=1 // pred_region
      %797 = dma.done [#allocation4], 4096
    $region33: #{_forward.7} parent=1 // pred_fallthru
      _
    %798 = vsyncpa [#allocation3], 1
    %799 = vsyncpa [#allocation6], 1
    %800 = vsyncpa [#allocation4], 1

// kernel: _forward.6
$region0: #{_forward.6}
  #allocation0 [shape = 'u32[]', space=smem, size = 0x4, offset = 0x4, fixed_abs, tag = 'smem constant byte address 0x4 - core index']
  #allocation1 [shape = 'u32[144,128]{1,0:T(1,128)}', space=vmem, size = 0x12000, scoped, tag = 'internal scratch']
  #allocation2 [shape = 'f32[16,128]{1,0:T(8,128)}', space=vmem, size = 0x2000, scoped, tag = 'scratch operand']
  #allocation3 [shape = 'f32[16,128]{1,0:T(8,128)}', space=vmem, size = 0x2000, scoped, tag = 'scratch operand']
  %s0 = inlined_call_operand.hbm [shape: bf16[8,16,512], index: 0, kind: input, shape index: {}]
  %s1 = inlined_call_operand.hbm [shape: bf16[128,512], index: 1, kind: input, shape index: {}]
  %s2 = inlined_call_operand.hbm [shape: f32[16,128], index: 2, kind: input, shape index: {}]
  %s3 = inlined_call_operand.hbm [shape: f32[16,128], index: 3, kind: input, shape index: {}]
  %s4 = inlined_call_operand.hbm [shape: bf16[8,16,128], index: 4, kind: output, shape index: {0}]
  %s5 = inlined_call_operand.hbm [shape: f32[16,128], index: 5, kind: output, shape index: {1}]
  %s6 = inlined_call_operand.hbm [shape: f32[16,128], index: 6, kind: output, shape index: {2}]
  %7 = xla_tuple %s4, %s5, %s6
  %s8 = sld [smem:[#allocation0]]
  $region66: #{_forward.6} parent=0
    _
  %s10 = ssub.s32 1, %s8
  %s11 = scalar_select 0, %s10, %s8
  $region1: #{_forward.6} parent=0
    #allocation4 [shape = 'u8[131072]{0}', space=vmem, size = 0x20000, scoped, tag = 'input window, operand 0, single buffered']
    #allocation5 [shape = 's32[1]{0}', space=sflag, size = 0x4, scoped, tag = 'scoped memory for _forward.6']
    #allocation6 [shape = 's32[1]{0}', space=sflag, size = 0x4, scoped, tag = 'scoped memory for _forward.6']
    #allocation7 [shape = 'u8[131072]{0}', space=vmem, size = 0x20000, scoped, tag = 'input window, operand 1, single buffered']
    #allocation8 [shape = 's32[1]{0}', space=sflag, size = 0x4, scoped, tag = 'scoped memory for _forward.6']
    #allocation9 [shape = 'u8[8192]{0}', space=vmem, size = 0x2000, scoped, tag = 'input window, operand 2, single buffered']
    #allocation10 [shape = 'u8[8192]{0}', space=vmem, size = 0x2000, scoped, tag = 'input window, operand 3, single buffered']
    #allocation11 [shape = 's32[1]{0}', space=sflag, size = 0x4, scoped, tag = 'scoped memory for _forward.6']
    #allocation12 [shape = 'u8[32768]{0}', space=vmem, size = 0x8000, scoped, tag = 'output window, operand 0, single buffered']
    #allocation13 [shape = 'u8[8192]{0}', space=vmem, size = 0x2000, scoped, tag = 'output window, operand 1, single buffered']
    #allocation14 [shape = 's32[1]{0}', space=sflag, size = 0x4, scoped, tag = 'scoped memory for _forward.6']
    #allocation15 [shape = 'u8[8192]{0}', space=vmem, size = 0x2000, scoped, tag = 'output window, operand 2, single buffered']
    %12 = vsyncpa [#allocation5], 0
    %13 = vsyncpa [#allocation8], 0
    %14 = vsyncpa [#allocation11], 0
    %15 = vsyncpa [#allocation6], 0
    %16 = vsyncpa [#allocation14], 0
    // Predicated region
    $region2: #{_forward.6} parent=1 // pred_check
      _
    $region3: #{_forward.6} parent=1 // pred_check_branch
      %18 = sbr.rel (0) target = $region5
    $region4: #{_forward.6} parent=1 // pred_region
      %s20 = ssub.s32 4096, 4096
      %21 = vsyncadd [#allocation5], %s20
      %s22 = sshll.u32 [#allocation4], 4
      %s23 = int_to_ptr.vmem [resolvable:$true] %s22
      %28 = dma.hbm_to_vmem [thread:$0]  %s0, 4096, %s23, [#allocation5], 256, 256, 16
    $region5: #{_forward.6} parent=1 // pred_fallthru
      _
    // Predicated region
    $region6: #{_forward.6} parent=1 // pred_check
      _
    $region7: #{_forward.6} parent=1 // pred_check_branch
      %30 = sbr.rel (0) target = $region9
    $region8: #{_forward.6} parent=1 // pred_region
      %s32 = ssub.s32 4096, 4096
      %33 = vsyncadd [#allocation8], %s32
      %s34 = sshll.u32 [#allocation7], 4
      %s35 = int_to_ptr.vmem [resolvable:$true] %s34
      %40 = dma.hbm_to_vmem [thread:$0]  %s1, 4096, %s35, [#allocation8], 256, 256, 16
    $region9: #{_forward.6} parent=1 // pred_fallthru
      _
    // Predicated region
    $region10: #{_forward.6} parent=1 // pred_check
      _
    $region11: #{_forward.6} parent=1 // pred_check_branch
      %42 = sbr.rel (0) target = $region13
    $region12: #{_forward.6} parent=1 // pred_region
      %s44 = ssub.s32 256, 256
      %45 = vsyncadd [#allocation8], %s44
      %s46 = sshll.u32 [#allocation9], 4
      %s47 = int_to_ptr.vmem [resolvable:$true] %s46
      %52 = dma.hbm_to_vmem [thread:$0]  %s2, 256, %s47, [#allocation8], 128, 128, 8
    $region13: #{_forward.6} parent=1 // pred_fallthru
      _
    // Predicated region
    $region14: #{_forward.6} parent=1 // pred_check
      _
    $region15: #{_forward.6} parent=1 // pred_check_branch
      %54 = sbr.rel (0) target = $region17
    $region16: #{_forward.6} parent=1 // pred_region
      %s56 = ssub.s32 256, 256
      %57 = vsyncadd [#allocation11], %s56
      %s58 = sshll.u32 [#allocation10], 4
      %s59 = int_to_ptr.vmem [resolvable:$true] %s58
      %64 = dma.hbm_to_vmem [thread:$0]  %s3, 256, %s59, [#allocation11], 128, 128, 8
    $region17: #{_forward.6} parent=1 // pred_fallthru
      _
    // Predicated region
    $region18: #{_forward.6} parent=1 // pred_check
      _
    $region19: #{_forward.6} parent=1 // pred_check_branch
      %66 = sbr.rel (0) target = $region21
    $region20: #{_forward.6} parent=1 // pred_region
      %67 = dma.done [#allocation5], 4096
    $region21: #{_forward.6} parent=1 // pred_fallthru
      _
    // Predicated region
    $region22: #{_forward.6} parent=1 // pred_check
      _
    $region23: #{_forward.6} parent=1 // pred_check_branch
      %69 = sbr.rel (0) target = $region25
    $region24: #{_forward.6} parent=1 // pred_region
      %70 = dma.done [#allocation8], 4096
    $region25: #{_forward.6} parent=1 // pred_fallthru
      _
    // Predicated region
    $region26: #{_forward.6} parent=1 // pred_check
      _
    $region27: #{_forward.6} parent=1 // pred_check_branch
      %72 = sbr.rel (0) target = $region29
    $region28: #{_forward.6} parent=1 // pred_region
      %73 = dma.done [#allocation8], 256
    $region29: #{_forward.6} parent=1 // pred_fallthru
      _
    // Predicated region
    $region30: #{_forward.6} parent=1 // pred_check
      _
    $region31: #{_forward.6} parent=1 // pred_check_branch
      %75 = sbr.rel (0) target = $region33
    $region32: #{_forward.6} parent=1 // pred_region
      %76 = dma.done [#allocation11], 256
    $region33: #{_forward.6} parent=1 // pred_fallthru
      _
    %p78 = scmp.eq.s32.totalorder 0, 0
    // Predicated region
    $region34: #{_forward.6} parent=1 // pred_check
      %p79 = pneg %p78
    $region35: #{_forward.6} parent=1 // pred_check_branch
      %81 = sbr.rel (%p79) target = $region37
    $region36: #{_forward.6} parent=1 // pred_region
      %v82 = vld [vmem:[#allocation9] sm:$0xff]
      %v83 = vld [vmem:[#allocation9 + $0x8] sm:$0xff]
      %84 = vst [vmem:[#allocation2] sm:$0xff] %v82
      %85 = vst [vmem:[#allocation2 + $0x8] sm:$0xff] %v83
      %v86 = vld [vmem:[#allocation10] sm:$0xff]
      %v87 = vld [vmem:[#allocation10 + $0x8] sm:$0xff]
      %88 = vst [vmem:[#allocation3] sm:$0xff] %v86
      %89 = vst [vmem:[#allocation3 + $0x8] sm:$0xff] %v87
    $region37: #{_forward.6} parent=1 // pred_fallthru
      _
    %v90 = vld [vmem:[#allocation7] sm:$0xff]
    %v91 = vld [vmem:[#allocation7 + $0x8] sm:$0xff]
    %v92 = vld [vmem:[#allocation7 + $0x10] sm:$0xff]
    %v93 = vld [vmem:[#allocation7 + $0x18] sm:$0xff]
    %v94 = vld [vmem:[#allocation7 + $0x20] sm:$0xff]
    %v95 = vld [vmem:[#allocation7 + $0x28] sm:$0xff]
    %v96 = vld [vmem:[#allocation7 + $0x30] sm:$0xff]
    %v97 = vld [vmem:[#allocation7 + $0x38] sm:$0xff]
    %v98 = vld [vmem:[#allocation7 + $0x40] sm:$0xff]
    %v99 = vld [vmem:[#allocation7 + $0x48] sm:$0xff]
    %v100 = vld [vmem:[#allocation7 + $0x50] sm:$0xff]
    %v101 = vld [vmem:[#allocation7 + $0x58] sm:$0xff]
    %v102 = vld [vmem:[#allocation7 + $0x60] sm:$0xff]
    %v103 = vld [vmem:[#allocation7 + $0x68] sm:$0xff]
    %v104 = vld [vmem:[#allocation7 + $0x70] sm:$0xff]
    %v105 = vld [vmem:[#allocation7 + $0x78] sm:$0xff]
    %v106 = vld [vmem:[#allocation7 + $0x80] sm:$0xff]
    %v107 = vld [vmem:[#allocation7 + $0x88] sm:$0xff]
    %v108 = vld [vmem:[#allocation7 + $0x90] sm:$0xff]
    %v109 = vld [vmem:[#allocation7 + $0x98] sm:$0xff]
    %v110 = vld [vmem:[#allocation7 + $0xa0] sm:$0xff]
    %v111 = vld [vmem:[#allocation7 + $0xa8] sm:$0xff]
    %v112 = vld [vmem:[#allocation7 + $0xb0] sm:$0xff]
    %v113 = vld [vmem:[#allocation7 + $0xb8] sm:$0xff]
    %v114 = vld [vmem:[#allocation7 + $0xc0] sm:$0xff]
    %v115 = vld [vmem:[#allocation7 + $0xc8] sm:$0xff]
    %v116 = vld [vmem:[#allocation7 + $0xd0] sm:$0xff]
    %v117 = vld [vmem:[#allocation7 + $0xd8] sm:$0xff]
    %v118 = vld [vmem:[#allocation7 + $0xe0] sm:$0xff]
    %v119 = vld [vmem:[#allocation7 + $0xe8] sm:$0xff]
    %v120 = vld [vmem:[#allocation7 + $0xf0] sm:$0xff]
    %v121 = vld [vmem:[#allocation7 + $0xf8] sm:$0xff]
    %v122 = vld [vmem:[#allocation2] sm:$0xff]
    %v123 = vld [vmem:[#allocation2 + $0x8] sm:$0xff]
    %v124 = vld [vmem:[#allocation3] sm:$0xff]
    %v125 = vld [vmem:[#allocation3 + $0x8] sm:$0xff]
    %v126 = vld [vmem:[#allocation4] sm:$0xff]
    %v127 = vld [vmem:[#allocation4 + $0x8] sm:$0xff]
    %v128 = vld [vmem:[#allocation4 + $0x10] sm:$0xff]
    %v129 = vld [vmem:[#allocation4 + $0x18] sm:$0xff]
    %v130 = vunpack.c.l.bf16 %v126
    %v131 = vunpack.c.h.bf16 %v126
    %v132 = vunpack.c.l.bf16 %v127
    %v133 = vunpack.c.h.bf16 %v127
    %v134 = vunpack.c.l.bf16 %v128
    %v135 = vunpack.c.h.bf16 %v128
    %v136 = vunpack.c.l.bf16 %v129
    %v137 = vunpack.c.h.bf16 %v129
    %v138 = vpack.c.bf16 %v123, %v122
    %v171 = vunpack.c.l.b16 %v90
    %v172 = vunpack.c.h.b16 %v90
    %v173 = vunpack.c.l.b16 %v91
    %v174 = vunpack.c.h.b16 %v91
    %v175 = vunpack.c.l.b16 %v92
    %v176 = vunpack.c.h.b16 %v92
    %v177 = vunpack.c.l.b16 %v93
    %v178 = vunpack.c.h.b16 %v93
    %v179 = vunpack.c.l.b16 %v94
    %v180 = vunpack.c.h.b16 %v94
    %v181 = vunpack.c.l.b16 %v95
    %v182 = vunpack.c.h.b16 %v95
    %v183 = vunpack.c.l.b16 %v96
    %v184 = vunpack.c.h.b16 %v96
    %v185 = vunpack.c.l.b16 %v97
    %v186 = vunpack.c.h.b16 %v97
    %v187 = vunpack.c.l.b16 %v98
    %v188 = vunpack.c.h.b16 %v98
    %v189 = vunpack.c.l.b16 %v99
    %v190 = vunpack.c.h.b16 %v99
    %v191 = vunpack.c.l.b16 %v100
    %v192 = vunpack.c.h.b16 %v100
    %v193 = vunpack.c.l.b16 %v101
    %v194 = vunpack.c.h.b16 %v101
    %v195 = vunpack.c.l.b16 %v102
    %v196 = vunpack.c.h.b16 %v102
    %v197 = vunpack.c.l.b16 %v103
    %v198 = vunpack.c.h.b16 %v103
    %v199 = vunpack.c.l.b16 %v104
    %v200 = vunpack.c.h.b16 %v104
    %v201 = vunpack.c.l.b16 %v105
    %v202 = vunpack.c.h.b16 %v105
    %v203 = vunpack.c.l.b16 %v106
    %v204 = vunpack.c.h.b16 %v106
    %v205 = vunpack.c.l.b16 %v107
    %v206 = vunpack.c.h.b16 %v107
    %v207 = vunpack.c.l.b16 %v108
    %v208 = vunpack.c.h.b16 %v108
    %v209 = vunpack.c.l.b16 %v109
    %v210 = vunpack.c.h.b16 %v109
    %v211 = vunpack.c.l.b16 %v110
    %v212 = vunpack.c.h.b16 %v110
    %v213 = vunpack.c.l.b16 %v111
    %v214 = vunpack.c.h.b16 %v111
    %v215 = vunpack.c.l.b16 %v112
    %v216 = vunpack.c.h.b16 %v112
    %v217 = vunpack.c.l.b16 %v113
    %v218 = vunpack.c.h.b16 %v113
    %v219 = vunpack.c.l.b16 %v114
    %v220 = vunpack.c.h.b16 %v114
    %v221 = vunpack.c.l.b16 %v115
    %v222 = vunpack.c.h.b16 %v115
    %v223 = vunpack.c.l.b16 %v116
    %v224 = vunpack.c.h.b16 %v116
    %v225 = vunpack.c.l.b16 %v117
    %v226 = vunpack.c.h.b16 %v117
    %v227 = vunpack.c.l.b16 %v118
    %v228 = vunpack.c.h.b16 %v118
    %v229 = vunpack.c.l.b16 %v119
    %v230 = vunpack.c.h.b16 %v119
    %v231 = vunpack.c.l.b16 %v120
    %v232 = vunpack.c.h.b16 %v120
    %v233 = vunpack.c.l.b16 %v121
    %v234 = vunpack.c.h.b16 %v121
    %v235 = vpack.c.b16 %v175, %v171
    %v236 = vpack.c.b16 %v176, %v172
    %v237 = vpack.c.b16 %v177, %v173
    %v238 = vpack.c.b16 %v178, %v174
    %v239 = vpack.c.b16 %v183, %v179
    %v240 = vpack.c.b16 %v184, %v180
    %v241 = vpack.c.b16 %v185, %v181
    %v242 = vpack.c.b16 %v186, %v182
    %v243 = vpack.c.b16 %v191, %v187
    %v244 = vpack.c.b16 %v192, %v188
    %v245 = vpack.c.b16 %v193, %v189
    %v246 = vpack.c.b16 %v194, %v190
    %v247 = vpack.c.b16 %v199, %v195
    %v248 = vpack.c.b16 %v200, %v196
    %v249 = vpack.c.b16 %v201, %v197
    %v250 = vpack.c.b16 %v202, %v198
    %v251 = vpack.c.b16 %v207, %v203
    %v252 = vpack.c.b16 %v208, %v204
    %v253 = vpack.c.b16 %v209, %v205
    %v254 = vpack.c.b16 %v210, %v206
    %v255 = vpack.c.b16 %v215, %v211
    %v256 = vpack.c.b16 %v216, %v212
    %v257 = vpack.c.b16 %v217, %v213
    %v258 = vpack.c.b16 %v218, %v214
    %v259 = vpack.c.b16 %v223, %v219
    %v260 = vpack.c.b16 %v224, %v220
    %v261 = vpack.c.b16 %v225, %v221
    %v262 = vpack.c.b16 %v226, %v222
    %v263 = vpack.c.b16 %v231, %v227
    %v264 = vpack.c.b16 %v232, %v228
    %v265 = vpack.c.b16 %v233, %v229
    %v266 = vpack.c.b16 %v234, %v230
    %299 = vmatprep.subr.bf16.mxu0 %v236
    %300 = vmatpush1.bf16.msra.mxu0 %v235
    %301 = vmatprep.subr.bf16.mxu0 %v240
    %302 = vmatpush1.bf16.msra.mxu0 %v239
    %303 = vmatprep.subr.bf16.mxu0 %v244
    %304 = vmatpush1.bf16.msra.mxu0 %v243
    %305 = vmatprep.subr.bf16.mxu0 %v248
    %306 = vmatpush1.bf16.msra.mxu0 %v247
    %307 = vmatprep.subr.bf16.mxu0 %v252
    %308 = vmatpush1.bf16.msra.mxu0 %v251
    %309 = vmatprep.subr.bf16.mxu0 %v256
    %310 = vmatpush1.bf16.msra.mxu0 %v255
    %311 = vmatprep.subr.bf16.mxu0 %v260
    %312 = vmatpush1.bf16.msra.mxu0 %v259
    %313 = vmatprep.subr.bf16.mxu0 %v264
    %314 = vmatpush1.bf16.msra.mxu0 %v263
    %315 = vmatprep.subr.bf16.mxu0 0
    %316 = vmatpush1.bf16.msra.mxu0 0
    %317 = vmatprep.subr.bf16.mxu0 0
    %318 = vmatpush1.bf16.msra.mxu0 0
    %319 = vmatprep.subr.bf16.mxu0 0
    %320 = vmatpush1.bf16.msra.mxu0 0
    %321 = vmatprep.subr.bf16.mxu0 0
    %322 = vmatpush1.bf16.msra.mxu0 0
    %323 = vmatprep.subr.bf16.mxu0 0
    %324 = vmatpush1.bf16.msra.mxu0 0
    %325 = vmatprep.subr.bf16.mxu0 0
    %326 = vmatpush1.bf16.msra.mxu0 0
    %327 = vmatprep.subr.bf16.mxu0 0
    %328 = vmatpush1.bf16.msra.mxu0 0
    %329 = vmatprep.subr.bf16.mxu0 0
    %330 = vmatpush1.bf16.msra.mxu0 0
    %331 = vmatprep.mubr.bf16.mxu0 0
    %332 = vmatmul.mubr.bf16.gmra.mrb[0].mxu0 %v138
    %v333 = vpop.f32.mrb[0].mxu0
    %v334 = vadd.f32 0.0, %v333
    %v335 = vpop.f32.mrb[0].mxu0
    %v336 = vadd.f32 0.0, %v335
    %v337 = vpop.f32.mrb[0].mxu0
    %v338 = vadd.f32 0.0, %v337
    %v339 = vpop.f32.mrb[0].mxu0
    %v340 = vadd.f32 0.0, %v339
    %341 = vdwg.mxu0
    %342 = vmatprep.subr.bf16.mxu0 %v238
    %343 = vmatpush1.bf16.msra.mxu0 %v237
    %344 = vmatprep.subr.bf16.mxu0 %v242
    %345 = vmatpush1.bf16.msra.mxu0 %v241
    %346 = vmatprep.subr.bf16.mxu0 %v246
    %347 = vmatpush1.bf16.msra.mxu0 %v245
    %348 = vmatprep.subr.bf16.mxu0 %v250
    %349 = vmatpush1.bf16.msra.mxu0 %v249
    %350 = vmatprep.subr.bf16.mxu0 %v254
    %351 = vmatpush1.bf16.msra.mxu0 %v253
    %352 = vmatprep.subr.bf16.mxu0 %v258
    %353 = vmatpush1.bf16.msra.mxu0 %v257
    %354 = vmatprep.subr.bf16.mxu0 %v262
    %355 = vmatpush1.bf16.msra.mxu0 %v261
    %356 = vmatprep.subr.bf16.mxu0 %v266
    %357 = vmatpush1.bf16.msra.mxu0 %v265
    %358 = vmatprep.subr.bf16.mxu0 0
    %359 = vmatpush1.bf16.msra.mxu0 0
    %360 = vmatprep.subr.bf16.mxu0 0
    %361 = vmatpush1.bf16.msra.mxu0 0
    %362 = vmatprep.subr.bf16.mxu0 0
    %363 = vmatpush1.bf16.msra.mxu0 0
    %364 = vmatprep.subr.bf16.mxu0 0
    %365 = vmatpush1.bf16.msra.mxu0 0
    %366 = vmatprep.subr.bf16.mxu0 0
    %367 = vmatpush1.bf16.msra.mxu0 0
    %368 = vmatprep.subr.bf16.mxu0 0
    %369 = vmatpush1.bf16.msra.mxu0 0
    %370 = vmatprep.subr.bf16.mxu0 0
    %371 = vmatpush1.bf16.msra.mxu0 0
    %372 = vmatprep.subr.bf16.mxu0 0
    %373 = vmatpush1.bf16.msra.mxu0 0
    %374 = vmatprep.mubr.bf16.mxu0 0
    %375 = vmatmul.mubr.bf16.gmra.mrb[0].mxu0 %v138
    %v376 = vpop.f32.mrb[0].mxu0
    %v377 = vadd.f32 0.0, %v376
    %v378 = vpop.f32.mrb[0].mxu0
    %v379 = vadd.f32 0.0, %v378
    %v380 = vpop.f32.mrb[0].mxu0
    %v381 = vadd.f32 0.0, %v380
    %v382 = vpop.f32.mrb[0].mxu0
    %v383 = vadd.f32 0.0, %v382
    %384 = vdwg.mxu0
    %v385 = vadd.f32 %v130, %v334
    %v386 = vadd.f32 %v131, %v336
    %v387 = vadd.f32 %v132, %v377
    %v388 = vadd.f32 %v133, %v379
    %v389 = vadd.f32 %v134, %v338
    %v390 = vadd.f32 %v135, %v340
    %v391 = vadd.f32 %v136, %v381
    %v392 = vadd.f32 %v137, %v383
    %v393 = vxor.u32 %v385, 2147483648
    %v394 = vxor.u32 %v389, 2147483648
    %v395 = vmul.f32 %v393, 1.442695
    %v396 = vpow.pop %v395
    %v397 = vmul.f32 %v394, 1.442695
    %v398 = vpow.pop %v397
    %v399 = vadd.f32 %v396, 1.0
    %v400 = vadd.f32 %v398, 1.0
    %v401 = vrcp.pop %v399
    %v402 = vmul.f32 1.0, %v401
    %v403 = vrcp.pop %v400
    %v404 = vmul.f32 1.0, %v403
    %v405 = vxor.u32 %v386, 2147483648
    %v406 = vxor.u32 %v390, 2147483648
    %v407 = vmul.f32 %v405, 1.442695
    %v408 = vpow.pop %v407
    %v409 = vmul.f32 %v406, 1.442695
    %v410 = vpow.pop %v409
    %v411 = vadd.f32 %v408, 1.0
    %v412 = vadd.f32 %v410, 1.0
    %v413 = vrcp.pop %v411
    %v414 = vmul.f32 1.0, %v413
    %v415 = vrcp.pop %v412
    %v416 = vmul.f32 1.0, %v415
    %v417 = vtanh.pop %v387
    %v418 = vtanh.pop %v391
    %v419 = vxor.u32 %v388, 2147483648
    %v420 = vxor.u32 %v392, 2147483648
    %v421 = vmul.f32 %v419, 1.442695
    %v422 = vpow.pop %v421
    %v423 = vmul.f32 %v420, 1.442695
    %v424 = vpow.pop %v423
    %v425 = vadd.f32 %v422, 1.0
    %v426 = vadd.f32 %v424, 1.0
    %v427 = vrcp.pop %v425
    %v428 = vmul.f32 1.0, %v427
    %v429 = vrcp.pop %v426
    %v430 = vmul.f32 1.0, %v429
    %v431 = vmul.f32 %v414, %v124
    %v432 = vmul.f32 %v416, %v125
    %v433 = vmul.f32 %v402, %v417
    %v434 = vmul.f32 %v404, %v418
    %v435 = vadd.f32 %v431, %v433
    %v436 = vadd.f32 %v432, %v434
    %v437 = vtanh.pop %v435
    %v438 = vtanh.pop %v436
    %v439 = vmul.f32 %v428, %v437
    %v440 = vmul.f32 %v430, %v438
    %441 = vst [vmem:[#allocation2] sm:$0xff] %v439
    %442 = vst [vmem:[#allocation2 + $0x8] sm:$0xff] %v440
    %443 = vst [vmem:[#allocation3] sm:$0xff] %v435
    %444 = vst [vmem:[#allocation3 + $0x8] sm:$0xff] %v436
    %v445 = vpack.c.bf16 %v440, %v439
    %v447 = vunpack.c.l.b16 %v445
    %v448 = vunpack.c.h.b16 %v445
    %v449 = vpack.c.b16 %v447, %v447
    %v450 = vpack.c.b16 %v448, %v448
    %453 = vst [vmem:[#allocation12] sm:$0xf] %v449
    %454 = vst [vmem:[#allocation12 + $0x4] sm:$0xf] %v450
    %v455 = vld [vmem:[#allocation2] sm:$0xff]
    %v456 = vld [vmem:[#allocation2 + $0x8] sm:$0xff]
    %v457 = vld [vmem:[#allocation3] sm:$0xff]
    %v458 = vld [vmem:[#allocation3 + $0x8] sm:$0xff]
    %s459 = scalar_lea.vmem [#allocation4], 32
    %v460 = vld [vmem:[%s459] sm:$0xff]
    %v461 = vld [vmem:[%s459 + $0x8] sm:$0xff]
    %v462 = vld [vmem:[%s459 + $0x10] sm:$0xff]
    %v463 = vld [vmem:[%s459 + $0x18] sm:$0xff]
    %v464 = vunpack.c.l.bf16 %v460
    %v465 = vunpack.c.h.bf16 %v460
    %v466 = vunpack.c.l.bf16 %v461
    %v467 = vunpack.c.h.bf16 %v461
    %v468 = vunpack.c.l.bf16 %v462
    %v469 = vunpack.c.h.bf16 %v462
    %v470 = vunpack.c.l.bf16 %v463
    %v471 = vunpack.c.h.bf16 %v463
    %v472 = vpack.c.bf16 %v456, %v455
    %473 = vmatprep.subr.bf16.mxu0 %v236
    %474 = vmatpush1.bf16.msra.mxu0 %v235
    %475 = vmatprep.subr.bf16.mxu0 %v240
    %476 = vmatpush1.bf16.msra.mxu0 %v239
    %477 = vmatprep.subr.bf16.mxu0 %v244
    %478 = vmatpush1.bf16.msra.mxu0 %v243
    %479 = vmatprep.subr.bf16.mxu0 %v248
    %480 = vmatpush1.bf16.msra.mxu0 %v247
    %481 = vmatprep.subr.bf16.mxu0 %v252
    %482 = vmatpush1.bf16.msra.mxu0 %v251
    %483 = vmatprep.subr.bf16.mxu0 %v256
    %484 = vmatpush1.bf16.msra.mxu0 %v255
    %485 = vmatprep.subr.bf16.mxu0 %v260
    %486 = vmatpush1.bf16.msra.mxu0 %v259
    %487 = vmatprep.subr.bf16.mxu0 %v264
    %488 = vmatpush1.bf16.msra.mxu0 %v263
    %489 = vmatprep.subr.bf16.mxu0 0
    %490 = vmatpush1.bf16.msra.mxu0 0
    %491 = vmatprep.subr.bf16.mxu0 0
    %492 = vmatpush1.bf16.msra.mxu0 0
    %493 = vmatprep.subr.bf16.mxu0 0
    %494 = vmatpush1.bf16.msra.mxu0 0
    %495 = vmatprep.subr.bf16.mxu0 0
    %496 = vmatpush1.bf16.msra.mxu0 0
    %497 = vmatprep.subr.bf16.mxu0 0
    %498 = vmatpush1.bf16.msra.mxu0 0
    %499 = vmatprep.subr.bf16.mxu0 0
    %500 = vmatpush1.bf16.msra.mxu0 0
    %501 = vmatprep.subr.bf16.mxu0 0
    %502 = vmatpush1.bf16.msra.mxu0 0
    %503 = vmatprep.subr.bf16.mxu0 0
    %504 = vmatpush1.bf16.msra.mxu0 0
    %505 = vmatprep.mubr.bf16.mxu0 0
    %506 = vmatmul.mubr.bf16.gmra.mrb[0].mxu0 %v472
    %v507 = vpop.f32.mrb[0].mxu0
    %v508 = vadd.f32 0.0, %v507
    %v509 = vpop.f32.mrb[0].mxu0
    %v510 = vadd.f32 0.0, %v509
    %v511 = vpop.f32.mrb[0].mxu0
    %v512 = vadd.f32 0.0, %v511
    %v513 = vpop.f32.mrb[0].mxu0
    %v514 = vadd.f32 0.0, %v513
    %515 = vdwg.mxu0
    %516 = vmatprep.subr.bf16.mxu0 %v238
    %517 = vmatpush1.bf16.msra.mxu0 %v237
    %518 = vmatprep.subr.bf16.mxu0 %v242
    %519 = vmatpush1.bf16.msra.mxu0 %v241
    %520 = vmatprep.subr.bf16.mxu0 %v246
    %521 = vmatpush1.bf16.msra.mxu0 %v245
    %522 = vmatprep.subr.bf16.mxu0 %v250
    %523 = vmatpush1.bf16.msra.mxu0 %v249
    %524 = vmatprep.subr.bf16.mxu0 %v254
    %525 = vmatpush1.bf16.msra.mxu0 %v253
    %526 = vmatprep.subr.bf16.mxu0 %v258
    %527 = vmatpush1.bf16.msra.mxu0 %v257
    %528 = vmatprep.subr.bf16.mxu0 %v262
    %529 = vmatpush1.bf16.msra.mxu0 %v261
    %530 = vmatprep.subr.bf16.mxu0 %v266
    %531 = vmatpush1.bf16.msra.mxu0 %v265
    %532 = vmatprep.subr.bf16.mxu0 0
    %533 = vmatpush1.bf16.msra.mxu0 0
    %534 = vmatprep.subr.bf16.mxu0 0
    %535 = vmatpush1.bf16.msra.mxu0 0
    %536 = vmatprep.subr.bf16.mxu0 0
    %537 = vmatpush1.bf16.msra.mxu0 0
    %538 = vmatprep.subr.bf16.mxu0 0
    %539 = vmatpush1.bf16.msra.mxu0 0
    %540 = vmatprep.subr.bf16.mxu0 0
    %541 = vmatpush1.bf16.msra.mxu0 0
    %542 = vmatprep.subr.bf16.mxu0 0
    %543 = vmatpush1.bf16.msra.mxu0 0
    %544 = vmatprep.subr.bf16.mxu0 0
    %545 = vmatpush1.bf16.msra.mxu0 0
    %546 = vmatprep.subr.bf16.mxu0 0
    %547 = vmatpush1.bf16.msra.mxu0 0
    %548 = vmatprep.mubr.bf16.mxu0 0
    %549 = vmatmul.mubr.bf16.gmra.mrb[0].mxu0 %v472
    %v550 = vpop.f32.mrb[0].mxu0
    %v551 = vadd.f32 0.0, %v550
    %v552 = vpop.f32.mrb[0].mxu0
    %v553 = vadd.f32 0.0, %v552
    %v554 = vpop.f32.mrb[0].mxu0
    %v555 = vadd.f32 0.0, %v554
    %v556 = vpop.f32.mrb[0].mxu0
    %v557 = vadd.f32 0.0, %v556
    %558 = vdwg.mxu0
    %v559 = vadd.f32 %v464, %v508
    %v560 = vadd.f32 %v465, %v510
    %v561 = vadd.f32 %v466, %v551
    %v562 = vadd.f32 %v467, %v553
    %v563 = vadd.f32 %v468, %v512
    %v564 = vadd.f32 %v469, %v514
    %v565 = vadd.f32 %v470, %v555
    %v566 = vadd.f32 %v471, %v557
    %v567 = vxor.u32 %v559, 2147483648
    %v568 = vxor.u32 %v563, 2147483648
    %v569 = vmul.f32 %v567, 1.442695
    %v570 = vpow.pop %v569
    %v571 = vmul.f32 %v568, 1.442695
    %v572 = vpow.pop %v571
    %v573 = vadd.f32 %v570, 1.0
    %v574 = vadd.f32 %v572, 1.0
    %v575 = vrcp.pop %v573
    %v576 = vmul.f32 1.0, %v575
    %v577 = vrcp.pop %v574
    %v578 = vmul.f32 1.0, %v577
    %v579 = vxor.u32 %v560, 2147483648
    %v580 = vxor.u32 %v564, 2147483648
    %v581 = vmul.f32 %v579, 1.442695
    %v582 = vpow.pop %v581
    %v583 = vmul.f32 %v580, 1.442695
    %v584 = vpow.pop %v583
    %v585 = vadd.f32 %v582, 1.0
    %v586 = vadd.f32 %v584, 1.0
    %v587 = vrcp.pop %v585
    %v588 = vmul.f32 1.0, %v587
    %v589 = vrcp.pop %v586
    %v590 = vmul.f32 1.0, %v589
    %v591 = vtanh.pop %v561
    %v592 = vtanh.pop %v565
    %v593 = vxor.u32 %v562, 2147483648
    %v594 = vxor.u32 %v566, 2147483648
    %v595 = vmul.f32 %v593, 1.442695
    %v596 = vpow.pop %v595
    %v597 = vmul.f32 %v594, 1.442695
    %v598 = vpow.pop %v597
    %v599 = vadd.f32 %v596, 1.0
    %v600 = vadd.f32 %v598, 1.0
    %v601 = vrcp.pop %v599
    %v602 = vmul.f32 1.0, %v601
    %v603 = vrcp.pop %v600
    %v604 = vmul.f32 1.0, %v603
    %v605 = vmul.f32 %v588, %v457
    %v606 = vmul.f32 %v590, %v458
    %v607 = vmul.f32 %v576, %v591
    %v608 = vmul.f32 %v578, %v592
    %v609 = vadd.f32 %v605, %v607
    %v610 = vadd.f32 %v606, %v608
    %v611 = vtanh.pop %v609
    %v612 = vtanh.pop %v610
    %v613 = vmul.f32 %v602, %v611
    %v614 = vmul.f32 %v604, %v612
    %615 = vst [vmem:[#allocation2] sm:$0xff] %v613
    %616 = vst [vmem:[#allocation2 + $0x8] sm:$0xff] %v614
    %617 = vst [vmem:[#allocation3] sm:$0xff] %v609
    %618 = vst [vmem:[#allocation3 + $0x8] sm:$0xff] %v610
    %v619 = vpack.c.bf16 %v614, %v613
    %v621 = vunpack.c.l.b16 %v619
    %v622 = vunpack.c.h.b16 %v619
    %v623 = vpack.c.b16 %v621, %v621
    %v624 = vpack.c.b16 %v622, %v622
    %s627 = scalar_lea.vmem [#allocation12], 8
    %628 = vst [vmem:[%s627] sm:$0xf] %v623
    %629 = vst [vmem:[%s627 + $0x4] sm:$0xf] %v624
    %v630 = vld [vmem:[#allocation2] sm:$0xff]
    %v631 = vld [vmem:[#allocation2 + $0x8] sm:$0xff]
    %v632 = vld [vmem:[#allocation3] sm:$0xff]
    %v633 = vld [vmem:[#allocation3 + $0x8] sm:$0xff]
    %s634 = scalar_lea.vmem [#allocation4], 64
    %v635 = vld [vmem:[%s634] sm:$0xff]
    %v636 = vld [vmem:[%s634 + $0x8] sm:$0xff]
    %v637 = vld [vmem:[%s634 + $0x10] sm:$0xff]
    %v638 = vld [vmem:[%s634 + $0x18] sm:$0xff]
    %v639 = vunpack.c.l.bf16 %v635
    %v640 = vunpack.c.h.bf16 %v635
    %v641 = vunpack.c.l.bf16 %v636
    %v642 = vunpack.c.h.bf16 %v636
    %v643 = vunpack.c.l.bf16 %v637
    %v644 = vunpack.c.h.bf16 %v637
    %v645 = vunpack.c.l.bf16 %v638
    %v646 = vunpack.c.h.bf16 %v638
    %v647 = vpack.c.bf16 %v631, %v630
    %648 = vmatprep.subr.bf16.mxu0 %v236
    %649 = vmatpush1.bf16.msra.mxu0 %v235
    %650 = vmatprep.subr.bf16.mxu0 %v240
    %651 = vmatpush1.bf16.msra.mxu0 %v239
    %652 = vmatprep.subr.bf16.mxu0 %v244
    %653 = vmatpush1.bf16.msra.mxu0 %v243
    %654 = vmatprep.subr.bf16.mxu0 %v248
    %655 = vmatpush1.bf16.msra.mxu0 %v247
    %656 = vmatprep.subr.bf16.mxu0 %v252
    %657 = vmatpush1.bf16.msra.mxu0 %v251
    %658 = vmatprep.subr.bf16.mxu0 %v256
    %659 = vmatpush1.bf16.msra.mxu0 %v255
    %660 = vmatprep.subr.bf16.mxu0 %v260
    %661 = vmatpush1.bf16.msra.mxu0 %v259
    %662 = vmatprep.subr.bf16.mxu0 %v264
    %663 = vmatpush1.bf16.msra.mxu0 %v263
    %664 = vmatprep.subr.bf16.mxu0 0
    %665 = vmatpush1.bf16.msra.mxu0 0
    %666 = vmatprep.subr.bf16.mxu0 0
    %667 = vmatpush1.bf16.msra.mxu0 0
    %668 = vmatprep.subr.bf16.mxu0 0
    %669 = vmatpush1.bf16.msra.mxu0 0
    %670 = vmatprep.subr.bf16.mxu0 0
    %671 = vmatpush1.bf16.msra.mxu0 0
    %672 = vmatprep.subr.bf16.mxu0 0
    %673 = vmatpush1.bf16.msra.mxu0 0
    %674 = vmatprep.subr.bf16.mxu0 0
    %675 = vmatpush1.bf16.msra.mxu0 0
    %676 = vmatprep.subr.bf16.mxu0 0
    %677 = vmatpush1.bf16.msra.mxu0 0
    %678 = vmatprep.subr.bf16.mxu0 0
    %679 = vmatpush1.bf16.msra.mxu0 0
    %680 = vmatprep.mubr.bf16.mxu0 0
    %681 = vmatmul.mubr.bf16.gmra.mrb[0].mxu0 %v647
    %v682 = vpop.f32.mrb[0].mxu0
    %v683 = vadd.f32 0.0, %v682
    %v684 = vpop.f32.mrb[0].mxu0
    %v685 = vadd.f32 0.0, %v684
    %v686 = vpop.f32.mrb[0].mxu0
    %v687 = vadd.f32 0.0, %v686
    %v688 = vpop.f32.mrb[0].mxu0
    %v689 = vadd.f32 0.0, %v688
    %690 = vdwg.mxu0
    %691 = vmatprep.subr.bf16.mxu0 %v238
    %692 = vmatpush1.bf16.msra.mxu0 %v237
    %693 = vmatprep.subr.bf16.mxu0 %v242
    %694 = vmatpush1.bf16.msra.mxu0 %v241
    %695 = vmatprep.subr.bf16.mxu0 %v246
    %696 = vmatpush1.bf16.msra.mxu0 %v245
    %697 = vmatprep.subr.bf16.mxu0 %v250
    %698 = vmatpush1.bf16.msra.mxu0 %v249
    %699 = vmatprep.subr.bf16.mxu0 %v254
    %700 = vmatpush1.bf16.msra.mxu0 %v253
    %701 = vmatprep.subr.bf16.mxu0 %v258
    %702 = vmatpush1.bf16.msra.mxu0 %v257
    %703 = vmatprep.subr.bf16.mxu0 %v262
    %704 = vmatpush1.bf16.msra.mxu0 %v261
    %705 = vmatprep.subr.bf16.mxu0 %v266
    %706 = vmatpush1.bf16.msra.mxu0 %v265
    %707 = vmatprep.subr.bf16.mxu0 0
    %708 = vmatpush1.bf16.msra.mxu0 0
    %709 = vmatprep.subr.bf16.mxu0 0
    %710 = vmatpush1.bf16.msra.mxu0 0
    %711 = vmatprep.subr.bf16.mxu0 0
    %712 = vmatpush1.bf16.msra.mxu0 0
    %713 = vmatprep.subr.bf16.mxu0 0
    %714 = vmatpush1.bf16.msra.mxu0 0
    %715 = vmatprep.subr.bf16.mxu0 0
    %716 = vmatpush1.bf16.msra.mxu0 0
    %717 = vmatprep.subr.bf16.mxu0 0
    %718 = vmatpush1.bf16.msra.mxu0 0
    %719 = vmatprep.subr.bf16.mxu0 0
    %720 = vmatpush1.bf16.msra.mxu0 0
    %721 = vmatprep.subr.bf16.mxu0 0
    %722 = vmatpush1.bf16.msra.mxu0 0
    %723 = vmatprep.mubr.bf16.mxu0 0
    %724 = vmatmul.mubr.bf16.gmra.mrb[0].mxu0 %v647
    %v725 = vpop.f32.mrb[0].mxu0
    %v726 = vadd.f32 0.0, %v725
    %v727 = vpop.f32.mrb[0].mxu0
    %v728 = vadd.f32 0.0, %v727
    %v729 = vpop.f32.mrb[0].mxu0
    %v730 = vadd.f32 0.0, %v729
    %v731 = vpop.f32.mrb[0].mxu0
    %v732 = vadd.f32 0.0, %v731
    %733 = vdwg.mxu0
    %v734 = vadd.f32 %v639, %v683
    %v735 = vadd.f32 %v640, %v685
    %v736 = vadd.f32 %v641, %v726
    %v737 = vadd.f32 %v642, %v728
    %v738 = vadd.f32 %v643, %v687
    %v739 = vadd.f32 %v644, %v689
    %v740 = vadd.f32 %v645, %v730
    %v741 = vadd.f32 %v646, %v732
    %v742 = vxor.u32 %v734, 2147483648
    %v743 = vxor.u32 %v738, 2147483648
    %v744 = vmul.f32 %v742, 1.442695
    %v745 = vpow.pop %v744
    %v746 = vmul.f32 %v743, 1.442695
    %v747 = vpow.pop %v746
    %v748 = vadd.f32 %v745, 1.0
    %v749 = vadd.f32 %v747, 1.0
    %v750 = vrcp.pop %v748
    %v751 = vmul.f32 1.0, %v750
    %v752 = vrcp.pop %v749
    %v753 = vmul.f32 1.0, %v752
    %v754 = vxor.u32 %v735, 2147483648
    %v755 = vxor.u32 %v739, 2147483648
    %v756 = vmul.f32 %v754, 1.442695
    %v757 = vpow.pop %v756
    %v758 = vmul.f32 %v755, 1.442695
    %v759 = vpow.pop %v758
    %v760 = vadd.f32 %v757, 1.0
    %v761 = vadd.f32 %v759, 1.0
    %v762 = vrcp.pop %v760
    %v763 = vmul.f32 1.0, %v762
    %v764 = vrcp.pop %v761
    %v765 = vmul.f32 1.0, %v764
    %v766 = vtanh.pop %v736
    %v767 = vtanh.pop %v740
    %v768 = vxor.u32 %v737, 2147483648
    %v769 = vxor.u32 %v741, 2147483648
    %v770 = vmul.f32 %v768, 1.442695
    %v771 = vpow.pop %v770
    %v772 = vmul.f32 %v769, 1.442695
    %v773 = vpow.pop %v772
    %v774 = vadd.f32 %v771, 1.0
    %v775 = vadd.f32 %v773, 1.0
    %v776 = vrcp.pop %v774
    %v777 = vmul.f32 1.0, %v776
    %v778 = vrcp.pop %v775
    %v779 = vmul.f32 1.0, %v778
    %v780 = vmul.f32 %v763, %v632
    %v781 = vmul.f32 %v765, %v633
    %v782 = vmul.f32 %v751, %v766
    %v783 = vmul.f32 %v753, %v767
    %v784 = vadd.f32 %v780, %v782
    %v785 = vadd.f32 %v781, %v783
    %v786 = vtanh.pop %v784
    %v787 = vtanh.pop %v785
    %v788 = vmul.f32 %v777, %v786
    %v789 = vmul.f32 %v779, %v787
    %790 = vst [vmem:[#allocation2] sm:$0xff] %v788
    %791 = vst [vmem:[#allocation2 + $0x8] sm:$0xff] %v789
    %792 = vst [vmem:[#allocation3] sm:$0xff] %v784
    %793 = vst [vmem:[#allocation3 + $0x8] sm:$0xff] %v785
    %v794 = vpack.c.bf16 %v789, %v788
    %v796 = vunpack.c.l.b16 %v794
    %v797 = vunpack.c.h.b16 %v794
    %v798 = vpack.c.b16 %v796, %v796
    %v799 = vpack.c.b16 %v797, %v797
    %s802 = scalar_lea.vmem [#allocation12], 16
    %803 = vst [vmem:[%s802] sm:$0xf] %v798
    %804 = vst [vmem:[%s802 + $0x4] sm:$0xf] %v799
    %v805 = vld [vmem:[#allocation2] sm:$0xff]
    %v806 = vld [vmem:[#allocation2 + $0x8] sm:$0xff]
    %v807 = vld [vmem:[#allocation3] sm:$0xff]
    %v808 = vld [vmem:[#allocation3 + $0x8] sm:$0xff]
    %s809 = scalar_lea.vmem [#allocation4], 96
    %v810 = vld [vmem:[%s809] sm:$0xff]
    %v811 = vld [vmem:[%s809 + $0x8] sm:$0xff]
    %v812 = vld [vmem:[%s809 + $0x10] sm:$0xff]
    %v813 = vld [vmem:[%s809 + $0x18] sm:$0xff]
    %v814 = vunpack.c.l.bf16 %v810
    %v815 = vunpack.c.h.bf16 %v810
    %v816 = vunpack.c.l.bf16 %v811
    %v817 = vunpack.c.h.bf16 %v811
    %v818 = vunpack.c.l.bf16 %v812
    %v819 = vunpack.c.h.bf16 %v812
    %v820 = vunpack.c.l.bf16 %v813
    %v821 = vunpack.c.h.bf16 %v813
    %v822 = vpack.c.bf16 %v806, %v805
    %823 = vmatprep.subr.bf16.mxu0 %v236
    %824 = vmatpush1.bf16.msra.mxu0 %v235
    %825 = vmatprep.subr.bf16.mxu0 %v240
    %826 = vmatpush1.bf16.msra.mxu0 %v239
    %827 = vmatprep.subr.bf16.mxu0 %v244
    %828 = vmatpush1.bf16.msra.mxu0 %v243
    %829 = vmatprep.subr.bf16.mxu0 %v248
    %830 = vmatpush1.bf16.msra.mxu0 %v247
    %831 = vmatprep.subr.bf16.mxu0 %v252
    %832 = vmatpush1.bf16.msra.mxu0 %v251
    %833 = vmatprep.subr.bf16.mxu0 %v256
    %834 = vmatpush1.bf16.msra.mxu0 %v255
    %835 = vmatprep.subr.bf16.mxu0 %v260
    %836 = vmatpush1.bf16.msra.mxu0 %v259
    %837 = vmatprep.subr.bf16.mxu0 %v264
    %838 = vmatpush1.bf16.msra.mxu0 %v263
    %839 = vmatprep.subr.bf16.mxu0 0
    %840 = vmatpush1.bf16.msra.mxu0 0
    %841 = vmatprep.subr.bf16.mxu0 0
    %842 = vmatpush1.bf16.msra.mxu0 0
    %843 = vmatprep.subr.bf16.mxu0 0
    %844 = vmatpush1.bf16.msra.mxu0 0
    %845 = vmatprep.subr.bf16.mxu0 0
    %846 = vmatpush1.bf16.msra.mxu0 0
    %847 = vmatprep.subr.bf16.mxu0 0
    %848 = vmatpush1.bf16.msra.mxu0 0
    %849 = vmatprep.subr.bf16.mxu0 0
    %850 = vmatpush1.bf16.msra.mxu0 0
    %851 = vmatprep.subr.bf16.mxu0 0
    %852 = vmatpush1.bf16.msra.mxu0 0
    %853 = vmatprep.subr.bf16.mxu0 0
    %854 = vmatpush1.bf16.msra.mxu0 0
    %855 = vmatprep.mubr.bf16.mxu0 0
    %856 = vmatmul.mubr.bf16.gmra.mrb[0].mxu0 %v822
    %v857 = vpop.f32.mrb[0].mxu0
    %v858 = vadd.f32 0.0, %v857
    %v859 = vpop.f32.mrb[0].mxu0
    %v860 = vadd.f32 0.0, %v859
    %v861 = vpop.f32.mrb[0].mxu0
    %v862 = vadd.f32 0.0, %v861
    %v863 = vpop.f32.mrb[0].mxu0
    %v864 = vadd.f32 0.0, %v863
    %865 = vdwg.mxu0
    %866 = vmatprep.subr.bf16.mxu0 %v238
    %867 = vmatpush1.bf16.msra.mxu0 %v237
    %868 = vmatprep.subr.bf16.mxu0 %v242
    %869 = vmatpush1.bf16.msra.mxu0 %v241
    %870 = vmatprep.subr.bf16.mxu0 %v246
    %871 = vmatpush1.bf16.msra.mxu0 %v245
    %872 = vmatprep.subr.bf16.mxu0 %v250
    %873 = vmatpush1.bf16.msra.mxu0 %v249
    %874 = vmatprep.subr.bf16.mxu0 %v254
    %875 = vmatpush1.bf16.msra.mxu0 %v253
    %876 = vmatprep.subr.bf16.mxu0 %v258
    %877 = vmatpush1.bf16.msra.mxu0 %v257
    %878 = vmatprep.subr.bf16.mxu0 %v262
    %879 = vmatpush1.bf16.msra.mxu0 %v261
    %880 = vmatprep.subr.bf16.mxu0 %v266
    %881 = vmatpush1.bf16.msra.mxu0 %v265
    %882 = vmatprep.subr.bf16.mxu0 0
    %883 = vmatpush1.bf16.msra.mxu0 0
    %884 = vmatprep.subr.bf16.mxu0 0
    %885 = vmatpush1.bf16.msra.mxu0 0
    %886 = vmatprep.subr.bf16.mxu0 0
    %887 = vmatpush1.bf16.msra.mxu0 0
    %888 = vmatprep.subr.bf16.mxu0 0
    %889 = vmatpush1.bf16.msra.mxu0 0
    %890 = vmatprep.subr.bf16.mxu0 0
    %891 = vmatpush1.bf16.msra.mxu0 0
    %892 = vmatprep.subr.bf16.mxu0 0
    %893 = vmatpush1.bf16.msra.mxu0 0
    %894 = vmatprep.subr.bf16.mxu0 0
    %895 = vmatpush1.bf16.msra.mxu0 0
    %896 = vmatprep.subr.bf16.mxu0 0
    %897 = vmatpush1.bf16.msra.mxu0 0
    %898 = vmatprep.mubr.bf16.mxu0 0
    %899 = vmatmul.mubr.bf16.gmra.mrb[0].mxu0 %v822
    %v900 = vpop.f32.mrb[0].mxu0
    %v901 = vadd.f32 0.0, %v900
    %v902 = vpop.f32.mrb[0].mxu0
    %v903 = vadd.f32 0.0, %v902
    %v904 = vpop.f32.mrb[0].mxu0
    %v905 = vadd.f32 0.0, %v904
    %v906 = vpop.f32.mrb[0].mxu0
    %v907 = vadd.f32 0.0, %v906
    %908 = vdwg.mxu0
    %v909 = vadd.f32 %v814, %v858
    %v910 = vadd.f32 %v815, %v860
    %v911 = vadd.f32 %v816, %v901
    %v912 = vadd.f32 %v817, %v903
    %v913 = vadd.f32 %v818, %v862
    %v914 = vadd.f32 %v819, %v864
    %v915 = vadd.f32 %v820, %v905
    %v916 = vadd.f32 %v821, %v907
    %v917 = vxor.u32 %v909, 2147483648
    %v918 = vxor.u32 %v913, 2147483648
    %v919 = vmul.f32 %v917, 1.442695
    %v920 = vpow.pop %v919
    %v921 = vmul.f32 %v918, 1.442695
    %v922 = vpow.pop %v921
    %v923 = vadd.f32 %v920, 1.0
    %v924 = vadd.f32 %v922, 1.0
    %v925 = vrcp.pop %v923
    %v926 = vmul.f32 1.0, %v925
    %v927 = vrcp.pop %v924
    %v928 = vmul.f32 1.0, %v927
    %v929 = vxor.u32 %v910, 2147483648
    %v930 = vxor.u32 %v914, 2147483648
    %v931 = vmul.f32 %v929, 1.442695
    %v932 = vpow.pop %v931
    %v933 = vmul.f32 %v930, 1.442695
    %v934 = vpow.pop %v933
    %v935 = vadd.f32 %v932, 1.0
    %v936 = vadd.f32 %v934, 1.0
    %v937 = vrcp.pop %v935
    %v938 = vmul.f32 1.0, %v937
    %v939 = vrcp.pop %v936
    %v940 = vmul.f32 1.0, %v939
    %v941 = vtanh.pop %v911
    %v942 = vtanh.pop %v915
    %v943 = vxor.u32 %v912, 2147483648
    %v944 = vxor.u32 %v916, 2147483648
    %v945 = vmul.f32 %v943, 1.442695
    %v946 = vpow.pop %v945
    %v947 = vmul.f32 %v944, 1.442695
    %v948 = vpow.pop %v947
    %v949 = vadd.f32 %v946, 1.0
    %v950 = vadd.f32 %v948, 1.0
    %v951 = vrcp.pop %v949
    %v952 = vmul.f32 1.0, %v951
    %v953 = vrcp.pop %v950
    %v954 = vmul.f32 1.0, %v953
    %v955 = vmul.f32 %v938, %v807
    %v956 = vmul.f32 %v940, %v808
    %v957 = vmul.f32 %v926, %v941
    %v958 = vmul.f32 %v928, %v942
    %v959 = vadd.f32 %v955, %v957
    %v960 = vadd.f32 %v956, %v958
    %v961 = vtanh.pop %v959
    %v962 = vtanh.pop %v960
    %v963 = vmul.f32 %v952, %v961
    %v964 = vmul.f32 %v954, %v962
    %965 = vst [vmem:[#allocation2] sm:$0xff] %v963
    %966 = vst [vmem:[#allocation2 + $0x8] sm:$0xff] %v964
    %967 = vst [vmem:[#allocation3] sm:$0xff] %v959
    %968 = vst [vmem:[#allocation3 + $0x8] sm:$0xff] %v960
    %v969 = vpack.c.bf16 %v964, %v963
    %v971 = vunpack.c.l.b16 %v969
    %v972 = vunpack.c.h.b16 %v969
    %v973 = vpack.c.b16 %v971, %v971
    %v974 = vpack.c.b16 %v972, %v972
    %s977 = scalar_lea.vmem [#allocation12], 24
    %978 = vst [vmem:[%s977] sm:$0xf] %v973
    %979 = vst [vmem:[%s977 + $0x4] sm:$0xf] %v974
    %v980 = vld [vmem:[#allocation2] sm:$0xff]
    %v981 = vld [vmem:[#allocation2 + $0x8] sm:$0xff]
    %v982 = vld [vmem:[#allocation3] sm:$0xff]
    %v983 = vld [vmem:[#allocation3 + $0x8] sm:$0xff]
    %s984 = scalar_lea.vmem [#allocation4], 128
    %v985 = vld [vmem:[%s984] sm:$0xff]
    %v986 = vld [vmem:[%s984 + $0x8] sm:$0xff]
    %v987 = vld [vmem:[%s984 + $0x10] sm:$0xff]
    %v988 = vld [vmem:[%s984 + $0x18] sm:$0xff]
    %v989 = vunpack.c.l.bf16 %v985
    %v990 = vunpack.c.h.bf16 %v985
    %v991 = vunpack.c.l.bf16 %v986
    %v992 = vunpack.c.h.bf16 %v986
    %v993 = vunpack.c.l.bf16 %v987
    %v994 = vunpack.c.h.bf16 %v987
    %v995 = vunpack.c.l.bf16 %v988
    %v996 = vunpack.c.h.bf16 %v988
    %v997 = vpack.c.bf16 %v981, %v980
    %998 = vmatprep.subr.bf16.mxu0 %v236
    %999 = vmatpush1.bf16.msra.mxu0 %v235
    %1000 = vmatprep.subr.bf16.mxu0 %v240
    %1001 = vmatpush1.bf16.msra.mxu0 %v239
    %1002 = vmatprep.subr.bf16.mxu0 %v244
    %1003 = vmatpush1.bf16.msra.mxu0 %v243
    %1004 = vmatprep.subr.bf16.mxu0 %v248
    %1005 = vmatpush1.bf16.msra.mxu0 %v247
    %1006 = vmatprep.subr.bf16.mxu0 %v252
    %1007 = vmatpush1.bf16.msra.mxu0 %v251
    %1008 = vmatprep.subr.bf16.mxu0 %v256
    %1009 = vmatpush1.bf16.msra.mxu0 %v255
    %1010 = vmatprep.subr.bf16.mxu0 %v260
    %1011 = vmatpush1.bf16.msra.mxu0 %v259
    %1012 = vmatprep.subr.bf16.mxu0 %v264
    %1013 = vmatpush1.bf16.msra.mxu0 %v263
    %1014 = vmatprep.subr.bf16.mxu0 0
    %1015 = vmatpush1.bf16.msra.mxu0 0
    %1016 = vmatprep.subr.bf16.mxu0 0
    %1017 = vmatpush1.bf16.msra.mxu0 0
    %1018 = vmatprep.subr.bf16.mxu0 0
    %1019 = vmatpush1.bf16.msra.mxu0 0
    %1020 = vmatprep.subr.bf16.mxu0 0
    %1021 = vmatpush1.bf16.msra.mxu0 0
    %1022 = vmatprep.subr.bf16.mxu0 0
    %1023 = vmatpush1.bf16.msra.mxu0 0
    %1024 = vmatprep.subr.bf16.mxu0 0
    %1025 = vmatpush1.bf16.msra.mxu0 0
    %1026 = vmatprep.subr.bf16.mxu0 0
    %1027 = vmatpush1.bf16.msra.mxu0 0
    %1028 = vmatprep.subr.bf16.mxu0 0
    %1029 = vmatpush1.bf16.msra.mxu0 0
    %1030 = vmatprep.mubr.bf16.mxu0 0
    %1031 = vmatmul.mubr.bf16.gmra.mrb[0].mxu0 %v997
    %v1032 = vpop.f32.mrb[0].mxu0
    %v1033 = vadd.f32 0.0, %v1032
    %v1034 = vpop.f32.mrb[0].mxu0
    %v1035 = vadd.f32 0.0, %v1034
    %v1036 = vpop.f32.mrb[0].mxu0
    %v1037 = vadd.f32 0.0, %v1036
    %v1038 = vpop.f32.mrb[0].mxu0
    %v1039 = vadd.f32 0.0, %v1038
    %1040 = vdwg.mxu0
    %1041 = vmatprep.subr.bf16.mxu0 %v238
    %1042 = vmatpush1.bf16.msra.mxu0 %v237
    %1043 = vmatprep.subr.bf16.mxu0 %v242
    %1044 = vmatpush1.bf16.msra.mxu0 %v241
    %1045 = vmatprep.subr.bf16.mxu0 %v246
    %1046 = vmatpush1.bf16.msra.mxu0 %v245
    %1047 = vmatprep.subr.bf16.mxu0 %v250
    %1048 = vmatpush1.bf16.msra.mxu0 %v249
    %1049 = vmatprep.subr.bf16.mxu0 %v254
    %1050 = vmatpush1.bf16.msra.mxu0 %v253
    %1051 = vmatprep.subr.bf16.mxu0 %v258
    %1052 = vmatpush1.bf16.msra.mxu0 %v257
    %1053 = vmatprep.subr.bf16.mxu0 %v262
    %1054 = vmatpush1.bf16.msra.mxu0 %v261
    %1055 = vmatprep.subr.bf16.mxu0 %v266
    %1056 = vmatpush1.bf16.msra.mxu0 %v265
    %1057 = vmatprep.subr.bf16.mxu0 0
    %1058 = vmatpush1.bf16.msra.mxu0 0
    %1059 = vmatprep.subr.bf16.mxu0 0
    %1060 = vmatpush1.bf16.msra.mxu0 0
    %1061 = vmatprep.subr.bf16.mxu0 0
    %1062 = vmatpush1.bf16.msra.mxu0 0
    %1063 = vmatprep.subr.bf16.mxu0 0
    %1064 = vmatpush1.bf16.msra.mxu0 0
    %1065 = vmatprep.subr.bf16.mxu0 0
    %1066 = vmatpush1.bf16.msra.mxu0 0
    %1067 = vmatprep.subr.bf16.mxu0 0
    %1068 = vmatpush1.bf16.msra.mxu0 0
    %1069 = vmatprep.subr.bf16.mxu0 0
    %1070 = vmatpush1.bf16.msra.mxu0 0
    %1071 = vmatprep.subr.bf16.mxu0 0
    %1072 = vmatpush1.bf16.msra.mxu0 0
    %1073 = vmatprep.mubr.bf16.mxu0 0
    %1074 = vmatmul.mubr.bf16.gmra.mrb[0].mxu0 %v997
    %v1075 = vpop.f32.mrb[0].mxu0
    %v1076 = vadd.f32 0.0, %v1075
    %v1077 = vpop.f32.mrb[0].mxu0
    %v1078 = vadd.f32 0.0, %v1077
    %v1079 = vpop.f32.mrb[0].mxu0
    %v1080 = vadd.f32 0.0, %v1079
    %v1081 = vpop.f32.mrb[0].mxu0
    %v1082 = vadd.f32 0.0, %v1081
    %1083 = vdwg.mxu0
    %v1084 = vadd.f32 %v989, %v1033
    %v1085 = vadd.f32 %v990, %v1035
    %v1086 = vadd.f32 %v991, %v1076
    %v1087 = vadd.f32 %v992, %v1078
    %v1088 = vadd.f32 %v993, %v1037
    %v1089 = vadd.f32 %v994, %v1039
    %v1090 = vadd.f32 %v995, %v1080
    %v1091 = vadd.f32 %v996, %v1082
    %v1092 = vxor.u32 %v1084, 2147483648
    %v1093 = vxor.u32 %v1088, 2147483648
    %v1094 = vmul.f32 %v1092, 1.442695
    %v1095 = vpow.pop %v1094
    %v1096 = vmul.f32 %v1093, 1.442695
    %v1097 = vpow.pop %v1096
    %v1098 = vadd.f32 %v1095, 1.0
    %v1099 = vadd.f32 %v1097, 1.0
    %v1100 = vrcp.pop %v1098
    %v1101 = vmul.f32 1.0, %v1100
    %v1102 = vrcp.pop %v1099
    %v1103 = vmul.f32 1.0, %v1102
    %v1104 = vxor.u32 %v1085, 2147483648
    %v1105 = vxor.u32 %v1089, 2147483648
    %v1106 = vmul.f32 %v1104, 1.442695
    %v1107 = vpow.pop %v1106
    %v1108 = vmul.f32 %v1105, 1.442695
    %v1109 = vpow.pop %v1108
    %v1110 = vadd.f32 %v1107, 1.0
    %v1111 = vadd.f32 %v1109, 1.0
    %v1112 = vrcp.pop %v1110
    %v1113 = vmul.f32 1.0, %v1112
    %v1114 = vrcp.pop %v1111
    %v1115 = vmul.f32 1.0, %v1114
    %v1116 = vtanh.pop %v1086
    %v1117 = vtanh.pop %v1090
    %v1118 = vxor.u32 %v1087, 2147483648
    %v1119 = vxor.u32 %v1091, 2147483648
    %v1120 = vmul.f32 %v1118, 1.442695
    %v1121 = vpow.pop %v1120
    %v1122 = vmul.f32 %v1119, 1.442695
    %v1123 = vpow.pop %v1122
    %v1124 = vadd.f32 %v1121, 1.0
    %v1125 = vadd.f32 %v1123, 1.0
    %v1126 = vrcp.pop %v1124
    %v1127 = vmul.f32 1.0, %v1126
    %v1128 = vrcp.pop %v1125
    %v1129 = vmul.f32 1.0, %v1128
    %v1130 = vmul.f32 %v1113, %v982
    %v1131 = vmul.f32 %v1115, %v983
    %v1132 = vmul.f32 %v1101, %v1116
    %v1133 = vmul.f32 %v1103, %v1117
    %v1134 = vadd.f32 %v1130, %v1132
    %v1135 = vadd.f32 %v1131, %v1133
    %v1136 = vtanh.pop %v1134
    %v1137 = vtanh.pop %v1135
    %v1138 = vmul.f32 %v1127, %v1136
    %v1139 = vmul.f32 %v1129, %v1137
    %1140 = vst [vmem:[#allocation2] sm:$0xff] %v1138
    %1141 = vst [vmem:[#allocation2 + $0x8] sm:$0xff] %v1139
    %1142 = vst [vmem:[#allocation3] sm:$0xff] %v1134
    %1143 = vst [vmem:[#allocation3 + $0x8] sm:$0xff] %v1135
    %v1144 = vpack.c.bf16 %v1139, %v1138
    %v1146 = vunpack.c.l.b16 %v1144
    %v1147 = vunpack.c.h.b16 %v1144
    %v1148 = vpack.c.b16 %v1146, %v1146
    %v1149 = vpack.c.b16 %v1147, %v1147
    %s1152 = scalar_lea.vmem [#allocation12], 32
    %1153 = vst [vmem:[%s1152] sm:$0xf] %v1148
    %1154 = vst [vmem:[%s1152 + $0x4] sm:$0xf] %v1149
    %v1155 = vld [vmem:[#allocation2] sm:$0xff]
    %v1156 = vld [vmem:[#allocation2 + $0x8] sm:$0xff]
    %v1157 = vld [vmem:[#allocation3] sm:$0xff]
    %v1158 = vld [vmem:[#allocation3 + $0x8] sm:$0xff]
    %s1159 = scalar_lea.vmem [#allocation4], 160
    %v1160 = vld [vmem:[%s1159] sm:$0xff]
    %v1161 = vld [vmem:[%s1159 + $0x8] sm:$0xff]
    %v1162 = vld [vmem:[%s1159 + $0x10] sm:$0xff]
    %v1163 = vld [vmem:[%s1159 + $0x18] sm:$0xff]
    %v1164 = vunpack.c.l.bf16 %v1160
    %v1165 = vunpack.c.h.bf16 %v1160
    %v1166 = vunpack.c.l.bf16 %v1161
    %v1167 = vunpack.c.h.bf16 %v1161
    %v1168 = vunpack.c.l.bf16 %v1162
    %v1169 = vunpack.c.h.bf16 %v1162
    %v1170 = vunpack.c.l.bf16 %v1163
    %v1171 = vunpack.c.h.bf16 %v1163
    %v1172 = vpack.c.bf16 %v1156, %v1155
    %1173 = vmatprep.subr.bf16.mxu0 %v236
    %1174 = vmatpush1.bf16.msra.mxu0 %v235
    %1175 = vmatprep.subr.bf16.mxu0 %v240
    %1176 = vmatpush1.bf16.msra.mxu0 %v239
    %1177 = vmatprep.subr.bf16.mxu0 %v244
    %1178 = vmatpush1.bf16.msra.mxu0 %v243
    %1179 = vmatprep.subr.bf16.mxu0 %v248
    %1180 = vmatpush1.bf16.msra.mxu0 %v247
    %1181 = vmatprep.subr.bf16.mxu0 %v252
    %1182 = vmatpush1.bf16.msra.mxu0 %v251
    %1183 = vmatprep.subr.bf16.mxu0 %v256
    %1184 = vmatpush1.bf16.msra.mxu0 %v255
    %1185 = vmatprep.subr.bf16.mxu0 %v260
    %1186 = vmatpush1.bf16.msra.mxu0 %v259
    %1187 = vmatprep.subr.bf16.mxu0 %v264
    %1188 = vmatpush1.bf16.msra.mxu0 %v263
    %1189 = vmatprep.subr.bf16.mxu0 0
    %1190 = vmatpush1.bf16.msra.mxu0 0
    %1191 = vmatprep.subr.bf16.mxu0 0
    %1192 = vmatpush1.bf16.msra.mxu0 0
    %1193 = vmatprep.subr.bf16.mxu0 0
    %1194 = vmatpush1.bf16.msra.mxu0 0
    %1195 = vmatprep.subr.bf16.mxu0 0
    %1196 = vmatpush1.bf16.msra.mxu0 0
    %1197 = vmatprep.subr.bf16.mxu0 0
    %1198 = vmatpush1.bf16.msra.mxu0 0
    %1199 = vmatprep.subr.bf16.mxu0 0
    %1200 = vmatpush1.bf16.msra.mxu0 0
    %1201 = vmatprep.subr.bf16.mxu0 0
    %1202 = vmatpush1.bf16.msra.mxu0 0
    %1203 = vmatprep.subr.bf16.mxu0 0
    %1204 = vmatpush1.bf16.msra.mxu0 0
    %1205 = vmatprep.mubr.bf16.mxu0 0
    %1206 = vmatmul.mubr.bf16.gmra.mrb[0].mxu0 %v1172
    %v1207 = vpop.f32.mrb[0].mxu0
    %v1208 = vadd.f32 0.0, %v1207
    %v1209 = vpop.f32.mrb[0].mxu0
    %v1210 = vadd.f32 0.0, %v1209
    %v1211 = vpop.f32.mrb[0].mxu0
    %v1212 = vadd.f32 0.0, %v1211
    %v1213 = vpop.f32.mrb[0].mxu0
    %v1214 = vadd.f32 0.0, %v1213
    %1215 = vdwg.mxu0
    %1216 = vmatprep.subr.bf16.mxu0 %v238
    %1217 = vmatpush1.bf16.msra.mxu0 %v237
    %1218 = vmatprep.subr.bf16.mxu0 %v242
    %1219 = vmatpush1.bf16.msra.mxu0 %v241
    %1220 = vmatprep.subr.bf16.mxu0 %v246
    %1221 = vmatpush1.bf16.msra.mxu0 %v245
    %1222 = vmatprep.subr.bf16.mxu0 %v250
    %1223 = vmatpush1.bf16.msra.mxu0 %v249
    %1224 = vmatprep.subr.bf16.mxu0 %v254
    %1225 = vmatpush1.bf16.msra.mxu0 %v253
    %1226 = vmatprep.subr.bf16.mxu0 %v258
    %1227 = vmatpush1.bf16.msra.mxu0 %v257
    %1228 = vmatprep.subr.bf16.mxu0 %v262
    %1229 = vmatpush1.bf16.msra.mxu0 %v261
    %1230 = vmatprep.subr.bf16.mxu0 %v266
    %1231 = vmatpush1.bf16.msra.mxu0 %v265
    %1232 = vmatprep.subr.bf16.mxu0 0
    %1233 = vmatpush1.bf16.msra.mxu0 0
    %1234 = vmatprep.subr.bf16.mxu0 0
    %1235 = vmatpush1.bf16.msra.mxu0 0
    %1236 = vmatprep.subr.bf16.mxu0 0
    %1237 = vmatpush1.bf16.msra.mxu0 0
    %1238 = vmatprep.subr.bf16.mxu0 0
    %1239 = vmatpush1.bf16.msra.mxu0 0
    %1240 = vmatprep.subr.bf16.mxu0 0
    %1241 = vmatpush1.bf16.msra.mxu0 0
    %1242 = vmatprep.subr.bf16.mxu0 0
    %1243 = vmatpush1.bf16.msra.mxu0 0
    %1244 = vmatprep.subr.bf16.mxu0 0
    %1245 = vmatpush1.bf16.msra.mxu0 0
    %1246 = vmatprep.subr.bf16.mxu0 0
    %1247 = vmatpush1.bf16.msra.mxu0 0
    %1248 = vmatprep.mubr.bf16.mxu0 0
    %1249 = vmatmul.mubr.bf16.gmra.mrb[0].mxu0 %v1172
    %v1250 = vpop.f32.mrb[0].mxu0
    %v1251 = vadd.f32 0.0, %v1250
    %v1252 = vpop.f32.mrb[0].mxu0
    %v1253 = vadd.f32 0.0, %v1252
    %v1254 = vpop.f32.mrb[0].mxu0
    %v1255 = vadd.f32 0.0, %v1254
    %v1256 = vpop.f32.mrb[0].mxu0
    %v1257 = vadd.f32 0.0, %v1256
    %1258 = vdwg.mxu0
    %v1259 = vadd.f32 %v1164, %v1208
    %v1260 = vadd.f32 %v1165, %v1210
    %v1261 = vadd.f32 %v1166, %v1251
    %v1262 = vadd.f32 %v1167, %v1253
    %v1263 = vadd.f32 %v1168, %v1212
    %v1264 = vadd.f32 %v1169, %v1214
    %v1265 = vadd.f32 %v1170, %v1255
    %v1266 = vadd.f32 %v1171, %v1257
    %v1267 = vxor.u32 %v1259, 2147483648
    %v1268 = vxor.u32 %v1263, 2147483648
    %v1269 = vmul.f32 %v1267, 1.442695
    %v1270 = vpow.pop %v1269
    %v1271 = vmul.f32 %v1268, 1.442695
    %v1272 = vpow.pop %v1271
    %v1273 = vadd.f32 %v1270, 1.0
    %v1274 = vadd.f32 %v1272, 1.0
    %v1275 = vrcp.pop %v1273
    %v1276 = vmul.f32 1.0, %v1275
    %v1277 = vrcp.pop %v1274
    %v1278 = vmul.f32 1.0, %v1277
    %v1279 = vxor.u32 %v1260, 2147483648
    %v1280 = vxor.u32 %v1264, 2147483648
    %v1281 = vmul.f32 %v1279, 1.442695
    %v1282 = vpow.pop %v1281
    %v1283 = vmul.f32 %v1280, 1.442695
    %v1284 = vpow.pop %v1283
    %v1285 = vadd.f32 %v1282, 1.0
    %v1286 = vadd.f32 %v1284, 1.0
    %v1287 = vrcp.pop %v1285
    %v1288 = vmul.f32 1.0, %v1287
    %v1289 = vrcp.pop %v1286
    %v1290 = vmul.f32 1.0, %v1289
    %v1291 = vtanh.pop %v1261
    %v1292 = vtanh.pop %v1265
    %v1293 = vxor.u32 %v1262, 2147483648
    %v1294 = vxor.u32 %v1266, 2147483648
    %v1295 = vmul.f32 %v1293, 1.442695
    %v1296 = vpow.pop %v1295
    %v1297 = vmul.f32 %v1294, 1.442695
    %v1298 = vpow.pop %v1297
    %v1299 = vadd.f32 %v1296, 1.0
    %v1300 = vadd.f32 %v1298, 1.0
    %v1301 = vrcp.pop %v1299
    %v1302 = vmul.f32 1.0, %v1301
    %v1303 = vrcp.pop %v1300
    %v1304 = vmul.f32 1.0, %v1303
    %v1305 = vmul.f32 %v1288, %v1157
    %v1306 = vmul.f32 %v1290, %v1158
    %v1307 = vmul.f32 %v1276, %v1291
    %v1308 = vmul.f32 %v1278, %v1292
    %v1309 = vadd.f32 %v1305, %v1307
    %v1310 = vadd.f32 %v1306, %v1308
    %v1311 = vtanh.pop %v1309
    %v1312 = vtanh.pop %v1310
    %v1313 = vmul.f32 %v1302, %v1311
    %v1314 = vmul.f32 %v1304, %v1312
    %1315 = vst [vmem:[#allocation2] sm:$0xff] %v1313
    %1316 = vst [vmem:[#allocation2 + $0x8] sm:$0xff] %v1314
    %1317 = vst [vmem:[#allocation3] sm:$0xff] %v1309
    %1318 = vst [vmem:[#allocation3 + $0x8] sm:$0xff] %v1310
    %v1319 = vpack.c.bf16 %v1314, %v1313
    %v1321 = vunpack.c.l.b16 %v1319
    %v1322 = vunpack.c.h.b16 %v1319
    %v1323 = vpack.c.b16 %v1321, %v1321
    %v1324 = vpack.c.b16 %v1322, %v1322
    %s1327 = scalar_lea.vmem [#allocation12], 40
    %1328 = vst [vmem:[%s1327] sm:$0xf] %v1323
    %1329 = vst [vmem:[%s1327 + $0x4] sm:$0xf] %v1324
    %v1330 = vld [vmem:[#allocation2] sm:$0xff]
    %v1331 = vld [vmem:[#allocation2 + $0x8] sm:$0xff]
    %v1332 = vld [vmem:[#allocation3] sm:$0xff]
    %v1333 = vld [vmem:[#allocation3 + $0x8] sm:$0xff]
    %s1334 = scalar_lea.vmem [#allocation4], 192
    %v1335 = vld [vmem:[%s1334] sm:$0xff]
    %v1336 = vld [vmem:[%s1334 + $0x8] sm:$0xff]
    %v1337 = vld [vmem:[%s1334 + $0x10] sm:$0xff]
    %v1338 = vld [vmem:[%s1334 + $0x18] sm:$0xff]
    %v1339 = vunpack.c.l.bf16 %v1335
    %v1340 = vunpack.c.h.bf16 %v1335
    %v1341 = vunpack.c.l.bf16 %v1336
    %v1342 = vunpack.c.h.bf16 %v1336
    %v1343 = vunpack.c.l.bf16 %v1337
    %v1344 = vunpack.c.h.bf16 %v1337
    %v1345 = vunpack.c.l.bf16 %v1338
    %v1346 = vunpack.c.h.bf16 %v1338
    %v1347 = vpack.c.bf16 %v1331, %v1330
    %1348 = vmatprep.subr.bf16.mxu0 %v236
    %1349 = vmatpush1.bf16.msra.mxu0 %v235
    %1350 = vmatprep.subr.bf16.mxu0 %v240
    %1351 = vmatpush1.bf16.msra.mxu0 %v239
    %1352 = vmatprep.subr.bf16.mxu0 %v244
    %1353 = vmatpush1.bf16.msra.mxu0 %v243
    %1354 = vmatprep.subr.bf16.mxu0 %v248
    %1355 = vmatpush1.bf16.msra.mxu0 %v247
    %1356 = vmatprep.subr.bf16.mxu0 %v252
    %1357 = vmatpush1.bf16.msra.mxu0 %v251
    %1358 = vmatprep.subr.bf16.mxu0 %v256
    %1359 = vmatpush1.bf16.msra.mxu0 %v255
    %1360 = vmatprep.subr.bf16.mxu0 %v260
    %1361 = vmatpush1.bf16.msra.mxu0 %v259
    %1362 = vmatprep.subr.bf16.mxu0 %v264
    %1363 = vmatpush1.bf16.msra.mxu0 %v263
    %1364 = vmatprep.subr.bf16.mxu0 0
    %1365 = vmatpush1.bf16.msra.mxu0 0
    %1366 = vmatprep.subr.bf16.mxu0 0
    %1367 = vmatpush1.bf16.msra.mxu0 0
    %1368 = vmatprep.subr.bf16.mxu0 0
    %1369 = vmatpush1.bf16.msra.mxu0 0
    %1370 = vmatprep.subr.bf16.mxu0 0
    %1371 = vmatpush1.bf16.msra.mxu0 0
    %1372 = vmatprep.subr.bf16.mxu0 0
    %1373 = vmatpush1.bf16.msra.mxu0 0
    %1374 = vmatprep.subr.bf16.mxu0 0
    %1375 = vmatpush1.bf16.msra.mxu0 0
    %1376 = vmatprep.subr.bf16.mxu0 0
    %1377 = vmatpush1.bf16.msra.mxu0 0
    %1378 = vmatprep.subr.bf16.mxu0 0
    %1379 = vmatpush1.bf16.msra.mxu0 0
    %1380 = vmatprep.mubr.bf16.mxu0 0
    %1381 = vmatmul.mubr.bf16.gmra.mrb[0].mxu0 %v1347
    %v1382 = vpop.f32.mrb[0].mxu0
    %v1383 = vadd.f32 0.0, %v1382
    %v1384 = vpop.f32.mrb[0].mxu0
    %v1385 = vadd.f32 0.0, %v1384
    %v1386 = vpop.f32.mrb[0].mxu0
    %v1387 = vadd.f32 0.0, %v1386
    %v1388 = vpop.f32.mrb[0].mxu0
    %v1389 = vadd.f32 0.0, %v1388
    %1390 = vdwg.mxu0
    %1391 = vmatprep.subr.bf16.mxu0 %v238
    %1392 = vmatpush1.bf16.msra.mxu0 %v237
    %1393 = vmatprep.subr.bf16.mxu0 %v242
    %1394 = vmatpush1.bf16.msra.mxu0 %v241
    %1395 = vmatprep.subr.bf16.mxu0 %v246
    %1396 = vmatpush1.bf16.msra.mxu0 %v245
    %1397 = vmatprep.subr.bf16.mxu0 %v250
    %1398 = vmatpush1.bf16.msra.mxu0 %v249
    %1399 = vmatprep.subr.bf16.mxu0 %v254
    %1400 = vmatpush1.bf16.msra.mxu0 %v253
    %1401 = vmatprep.subr.bf16.mxu0 %v258
    %1402 = vmatpush1.bf16.msra.mxu0 %v257
    %1403 = vmatprep.subr.bf16.mxu0 %v262
    %1404 = vmatpush1.bf16.msra.mxu0 %v261
    %1405 = vmatprep.subr.bf16.mxu0 %v266
    %1406 = vmatpush1.bf16.msra.mxu0 %v265
    %1407 = vmatprep.subr.bf16.mxu0 0
    %1408 = vmatpush1.bf16.msra.mxu0 0
    %1409 = vmatprep.subr.bf16.mxu0 0
    %1410 = vmatpush1.bf16.msra.mxu0 0
    %1411 = vmatprep.subr.bf16.mxu0 0
    %1412 = vmatpush1.bf16.msra.mxu0 0
    %1413 = vmatprep.subr.bf16.mxu0 0
    %1414 = vmatpush1.bf16.msra.mxu0 0
    %1415 = vmatprep.subr.bf16.mxu0 0
    %1416 = vmatpush1.bf16.msra.mxu0 0
    %1417 = vmatprep.subr.bf16.mxu0 0
    %1418 = vmatpush1.bf16.msra.mxu0 0
    %1419 = vmatprep.subr.bf16.mxu0 0
    %1420 = vmatpush1.bf16.msra.mxu0 0
    %1421 = vmatprep.subr.bf16.mxu0 0
    %1422 = vmatpush1.bf16.msra.mxu0 0
    %1423 = vmatprep.mubr.bf16.mxu0 0
    %1424 = vmatmul.mubr.bf16.gmra.mrb[0].mxu0 %v1347
    %v1425 = vpop.f32.mrb[0].mxu0
    %v1426 = vadd.f32 0.0, %v1425
    %v1427 = vpop.f32.mrb[0].mxu0
    %v1428 = vadd.f32 0.0, %v1427
    %v1429 = vpop.f32.mrb[0].mxu0
    %v1430 = vadd.f32 0.0, %v1429
    %v1431 = vpop.f32.mrb[0].mxu0
    %v1432 = vadd.f32 0.0, %v1431
    %1433 = vdwg.mxu0
    %v1434 = vadd.f32 %v1339, %v1383
    %v1435 = vadd.f32 %v1340, %v1385
    %v1436 = vadd.f32 %v1341, %v1426
    %v1437 = vadd.f32 %v1342, %v1428
    %v1438 = vadd.f32 %v1343, %v1387
    %v1439 = vadd.f32 %v1344, %v1389
    %v1440 = vadd.f32 %v1345, %v1430
    %v1441 = vadd.f32 %v1346, %v1432
    %v1442 = vxor.u32 %v1434, 2147483648
    %v1443 = vxor.u32 %v1438, 2147483648
    %v1444 = vmul.f32 %v1442, 1.442695
    %v1445 = vpow.pop %v1444
    %v1446 = vmul.f32 %v1443, 1.442695
    %v1447 = vpow.pop %v1446
    %v1448 = vadd.f32 %v1445, 1.0
    %v1449 = vadd.f32 %v1447, 1.0
    %v1450 = vrcp.pop %v1448
    %v1451 = vmul.f32 1.0, %v1450
    %v1452 = vrcp.pop %v1449
    %v1453 = vmul.f32 1.0, %v1452
    %v1454 = vxor.u32 %v1435, 2147483648
    %v1455 = vxor.u32 %v1439, 2147483648
    %v1456 = vmul.f32 %v1454, 1.442695
    %v1457 = vpow.pop %v1456
    %v1458 = vmul.f32 %v1455, 1.442695
    %v1459 = vpow.pop %v1458
    %v1460 = vadd.f32 %v1457, 1.0
    %v1461 = vadd.f32 %v1459, 1.0
    %v1462 = vrcp.pop %v1460
    %v1463 = vmul.f32 1.0, %v1462
    %v1464 = vrcp.pop %v1461
    %v1465 = vmul.f32 1.0, %v1464
    %v1466 = vtanh.pop %v1436
    %v1467 = vtanh.pop %v1440
    %v1468 = vxor.u32 %v1437, 2147483648
    %v1469 = vxor.u32 %v1441, 2147483648
    %v1470 = vmul.f32 %v1468, 1.442695
    %v1471 = vpow.pop %v1470
    %v1472 = vmul.f32 %v1469, 1.442695
    %v1473 = vpow.pop %v1472
    %v1474 = vadd.f32 %v1471, 1.0
    %v1475 = vadd.f32 %v1473, 1.0
    %v1476 = vrcp.pop %v1474
    %v1477 = vmul.f32 1.0, %v1476
    %v1478 = vrcp.pop %v1475
    %v1479 = vmul.f32 1.0, %v1478
    %v1480 = vmul.f32 %v1463, %v1332
    %v1481 = vmul.f32 %v1465, %v1333
    %v1482 = vmul.f32 %v1451, %v1466
    %v1483 = vmul.f32 %v1453, %v1467
    %v1484 = vadd.f32 %v1480, %v1482
    %v1485 = vadd.f32 %v1481, %v1483
    %v1486 = vtanh.pop %v1484
    %v1487 = vtanh.pop %v1485
    %v1488 = vmul.f32 %v1477, %v1486
    %v1489 = vmul.f32 %v1479, %v1487
    %1490 = vst [vmem:[#allocation2] sm:$0xff] %v1488
    %1491 = vst [vmem:[#allocation2 + $0x8] sm:$0xff] %v1489
    %1492 = vst [vmem:[#allocation3] sm:$0xff] %v1484
    %1493 = vst [vmem:[#allocation3 + $0x8] sm:$0xff] %v1485
    %v1494 = vpack.c.bf16 %v1489, %v1488
    %v1496 = vunpack.c.l.b16 %v1494
    %v1497 = vunpack.c.h.b16 %v1494
    %v1498 = vpack.c.b16 %v1496, %v1496
    %v1499 = vpack.c.b16 %v1497, %v1497
    %s1502 = scalar_lea.vmem [#allocation12], 48
    %1503 = vst [vmem:[%s1502] sm:$0xf] %v1498
    %1504 = vst [vmem:[%s1502 + $0x4] sm:$0xf] %v1499
    %v1505 = vld [vmem:[#allocation2] sm:$0xff]
    %v1506 = vld [vmem:[#allocation2 + $0x8] sm:$0xff]
    %v1507 = vld [vmem:[#allocation3] sm:$0xff]
    %v1508 = vld [vmem:[#allocation3 + $0x8] sm:$0xff]
    %s1509 = scalar_lea.vmem [#allocation4], 224
    %v1510 = vld [vmem:[%s1509] sm:$0xff]
    %v1511 = vld [vmem:[%s1509 + $0x8] sm:$0xff]
    %v1512 = vld [vmem:[%s1509 + $0x10] sm:$0xff]
    %v1513 = vld [vmem:[%s1509 + $0x18] sm:$0xff]
    %v1514 = vunpack.c.l.bf16 %v1510
    %v1515 = vunpack.c.h.bf16 %v1510
    %v1516 = vunpack.c.l.bf16 %v1511
    %v1517 = vunpack.c.h.bf16 %v1511
    %v1518 = vunpack.c.l.bf16 %v1512
    %v1519 = vunpack.c.h.bf16 %v1512
    %v1520 = vunpack.c.l.bf16 %v1513
    %v1521 = vunpack.c.h.bf16 %v1513
    %v1522 = vpack.c.bf16 %v1506, %v1505
    %1523 = vmatprep.subr.bf16.mxu0 %v236
    %1524 = vmatpush1.bf16.msra.mxu0 %v235
    %1525 = vmatprep.subr.bf16.mxu0 %v240
    %1526 = vmatpush1.bf16.msra.mxu0 %v239
    %1527 = vmatprep.subr.bf16.mxu0 %v244
    %1528 = vmatpush1.bf16.msra.mxu0 %v243
    %1529 = vmatprep.subr.bf16.mxu0 %v248
    %1530 = vmatpush1.bf16.msra.mxu0 %v247
    %1531 = vmatprep.subr.bf16.mxu0 %v252
    %1532 = vmatpush1.bf16.msra.mxu0 %v251
    %1533 = vmatprep.subr.bf16.mxu0 %v256
    %1534 = vmatpush1.bf16.msra.mxu0 %v255
    %1535 = vmatprep.subr.bf16.mxu0 %v260
    %1536 = vmatpush1.bf16.msra.mxu0 %v259
    %1537 = vmatprep.subr.bf16.mxu0 %v264
    %1538 = vmatpush1.bf16.msra.mxu0 %v263
    %1539 = vmatprep.subr.bf16.mxu0 0
    %1540 = vmatpush1.bf16.msra.mxu0 0
    %1541 = vmatprep.subr.bf16.mxu0 0
    %1542 = vmatpush1.bf16.msra.mxu0 0
    %1543 = vmatprep.subr.bf16.mxu0 0
    %1544 = vmatpush1.bf16.msra.mxu0 0
    %1545 = vmatprep.subr.bf16.mxu0 0
    %1546 = vmatpush1.bf16.msra.mxu0 0
    %1547 = vmatprep.subr.bf16.mxu0 0
    %1548 = vmatpush1.bf16.msra.mxu0 0
    %1549 = vmatprep.subr.bf16.mxu0 0
    %1550 = vmatpush1.bf16.msra.mxu0 0
    %1551 = vmatprep.subr.bf16.mxu0 0
    %1552 = vmatpush1.bf16.msra.mxu0 0
    %1553 = vmatprep.subr.bf16.mxu0 0
    %1554 = vmatpush1.bf16.msra.mxu0 0
    %1555 = vmatprep.mubr.bf16.mxu0 0
    %1556 = vmatmul.mubr.bf16.gmra.mrb[0].mxu0 %v1522
    %v1557 = vpop.f32.mrb[0].mxu0
    %v1558 = vadd.f32 0.0, %v1557
    %v1559 = vpop.f32.mrb[0].mxu0
    %v1560 = vadd.f32 0.0, %v1559
    %v1561 = vpop.f32.mrb[0].mxu0
    %v1562 = vadd.f32 0.0, %v1561
    %v1563 = vpop.f32.mrb[0].mxu0
    %v1564 = vadd.f32 0.0, %v1563
    %1565 = vdwg.mxu0
    %1566 = vmatprep.subr.bf16.mxu0 %v238
    %1567 = vmatpush1.bf16.msra.mxu0 %v237
    %1568 = vmatprep.subr.bf16.mxu0 %v242
    %1569 = vmatpush1.bf16.msra.mxu0 %v241
    %1570 = vmatprep.subr.bf16.mxu0 %v246
    %1571 = vmatpush1.bf16.msra.mxu0 %v245
    %1572 = vmatprep.subr.bf16.mxu0 %v250
    %1573 = vmatpush1.bf16.msra.mxu0 %v249
    %1574 = vmatprep.subr.bf16.mxu0 %v254
    %1575 = vmatpush1.bf16.msra.mxu0 %v253
    %1576 = vmatprep.subr.bf16.mxu0 %v258
    %1577 = vmatpush1.bf16.msra.mxu0 %v257
    %1578 = vmatprep.subr.bf16.mxu0 %v262
    %1579 = vmatpush1.bf16.msra.mxu0 %v261
    %1580 = vmatprep.subr.bf16.mxu0 %v266
    %1581 = vmatpush1.bf16.msra.mxu0 %v265
    %1582 = vmatprep.subr.bf16.mxu0 0
    %1583 = vmatpush1.bf16.msra.mxu0 0
    %1584 = vmatprep.subr.bf16.mxu0 0
    %1585 = vmatpush1.bf16.msra.mxu0 0
    %1586 = vmatprep.subr.bf16.mxu0 0
    %1587 = vmatpush1.bf16.msra.mxu0 0
    %1588 = vmatprep.subr.bf16.mxu0 0
    %1589 = vmatpush1.bf16.msra.mxu0 0
    %1590 = vmatprep.subr.bf16.mxu0 0
    %1591 = vmatpush1.bf16.msra.mxu0 0
    %1592 = vmatprep.subr.bf16.mxu0 0
    %1593 = vmatpush1.bf16.msra.mxu0 0
    %1594 = vmatprep.subr.bf16.mxu0 0
    %1595 = vmatpush1.bf16.msra.mxu0 0
    %1596 = vmatprep.subr.bf16.mxu0 0
    %1597 = vmatpush1.bf16.msra.mxu0 0
    %1598 = vmatprep.mubr.bf16.mxu0 0
    %1599 = vmatmul.mubr.bf16.gmra.mrb[0].mxu0 %v1522
    %v1600 = vpop.f32.mrb[0].mxu0
    %v1601 = vadd.f32 0.0, %v1600
    %v1602 = vpop.f32.mrb[0].mxu0
    %v1603 = vadd.f32 0.0, %v1602
    %v1604 = vpop.f32.mrb[0].mxu0
    %v1605 = vadd.f32 0.0, %v1604
    %v1606 = vpop.f32.mrb[0].mxu0
    %v1607 = vadd.f32 0.0, %v1606
    %1608 = vdwg.mxu0
    %v1609 = vadd.f32 %v1514, %v1558
    %v1610 = vadd.f32 %v1515, %v1560
    %v1611 = vadd.f32 %v1516, %v1601
    %v1612 = vadd.f32 %v1517, %v1603
    %v1613 = vadd.f32 %v1518, %v1562
    %v1614 = vadd.f32 %v1519, %v1564
    %v1615 = vadd.f32 %v1520, %v1605
    %v1616 = vadd.f32 %v1521, %v1607
    %v1617 = vxor.u32 %v1609, 2147483648
    %v1618 = vxor.u32 %v1613, 2147483648
    %v1619 = vmul.f32 %v1617, 1.442695
    %v1620 = vpow.pop %v1619
    %v1621 = vmul.f32 %v1618, 1.442695
    %v1622 = vpow.pop %v1621
    %v1623 = vadd.f32 %v1620, 1.0
    %v1624 = vadd.f32 %v1622, 1.0
    %v1625 = vrcp.pop %v1623
    %v1626 = vmul.f32 1.0, %v1625
    %v1627 = vrcp.pop %v1624
    %v1628 = vmul.f32 1.0, %v1627
    %v1629 = vxor.u32 %v1610, 2147483648
    %v1630 = vxor.u32 %v1614, 2147483648
    %v1631 = vmul.f32 %v1629, 1.442695
    %v1632 = vpow.pop %v1631
    %v1633 = vmul.f32 %v1630, 1.442695
    %v1634 = vpow.pop %v1633
    %v1635 = vadd.f32 %v1632, 1.0
    %v1636 = vadd.f32 %v1634, 1.0
    %v1637 = vrcp.pop %v1635
    %v1638 = vmul.f32 1.0, %v1637
    %v1639 = vrcp.pop %v1636
    %v1640 = vmul.f32 1.0, %v1639
    %v1641 = vtanh.pop %v1611
    %v1642 = vtanh.pop %v1615
    %v1643 = vxor.u32 %v1612, 2147483648
    %v1644 = vxor.u32 %v1616, 2147483648
    %v1645 = vmul.f32 %v1643, 1.442695
    %v1646 = vpow.pop %v1645
    %v1647 = vmul.f32 %v1644, 1.442695
    %v1648 = vpow.pop %v1647
    %v1649 = vadd.f32 %v1646, 1.0
    %v1650 = vadd.f32 %v1648, 1.0
    %v1651 = vrcp.pop %v1649
    %v1652 = vmul.f32 1.0, %v1651
    %v1653 = vrcp.pop %v1650
    %v1654 = vmul.f32 1.0, %v1653
    %v1655 = vmul.f32 %v1638, %v1507
    %v1656 = vmul.f32 %v1640, %v1508
    %v1657 = vmul.f32 %v1626, %v1641
    %v1658 = vmul.f32 %v1628, %v1642
    %v1659 = vadd.f32 %v1655, %v1657
    %v1660 = vadd.f32 %v1656, %v1658
    %v1661 = vtanh.pop %v1659
    %v1662 = vtanh.pop %v1660
    %v1663 = vmul.f32 %v1652, %v1661
    %v1664 = vmul.f32 %v1654, %v1662
    %1665 = vst [vmem:[#allocation2] sm:$0xff] %v1663
    %1666 = vst [vmem:[#allocation2 + $0x8] sm:$0xff] %v1664
    %1667 = vst [vmem:[#allocation3] sm:$0xff] %v1659
    %1668 = vst [vmem:[#allocation3 + $0x8] sm:$0xff] %v1660
    %v1669 = vpack.c.bf16 %v1664, %v1663
    %v1671 = vunpack.c.l.b16 %v1669
    %v1672 = vunpack.c.h.b16 %v1669
    %v1673 = vpack.c.b16 %v1671, %v1671
    %v1674 = vpack.c.b16 %v1672, %v1672
    %s1677 = scalar_lea.vmem [#allocation12], 56
    %1678 = vst [vmem:[%s1677] sm:$0xf] %v1673
    %1679 = vst [vmem:[%s1677 + $0x4] sm:$0xf] %v1674
    // Predicated region
    $region38: #{_forward.6} parent=1 // pred_check
      %p1680 = pneg %p78
    $region39: #{_forward.6} parent=1 // pred_check_branch
      %1682 = sbr.rel (%p1680) target = $region41
    $region40: #{_forward.6} parent=1 // pred_region
      %v1683 = vld [vmem:[#allocation2] sm:$0xff]
      %v1684 = vld [vmem:[#allocation2 + $0x8] sm:$0xff]
      %1685 = vst [vmem:[#allocation13] sm:$0xff] %v1683
      %1686 = vst [vmem:[#allocation13 + $0x8] sm:$0xff] %v1684
      %v1687 = vld [vmem:[#allocation3] sm:$0xff]
      %v1688 = vld [vmem:[#allocation3 + $0x8] sm:$0xff]
      %1689 = vst [vmem:[#allocation15] sm:$0xff] %v1687
      %1690 = vst [vmem:[#allocation15 + $0x8] sm:$0xff] %v1688
    $region41: #{_forward.6} parent=1 // pred_fallthru
      _
    // Predicated region
    $region42: #{_forward.6} parent=1 // pred_check
      _
    $region43: #{_forward.6} parent=1 // pred_check_branch
      %1692 = sbr.rel (0) target = $region45
    $region44: #{_forward.6} parent=1 // pred_region
      %s1694 = ssub.s32 1024, 1024
      %1695 = vsyncadd [#allocation6], %s1694
      %s1696 = sshll.u32 [#allocation12], 4
      %s1697 = int_to_ptr.vmem [resolvable:$true] %s1696
      %1702 = dma.vmem_to_hbm [thread:$0]  %s1697, 1024, %s4, [#allocation6], 64, 64, 4
    $region45: #{_forward.6} parent=1 // pred_fallthru
      _
    // Predicated region
    $region46: #{_forward.6} parent=1 // pred_check
      _
    $region47: #{_forward.6} parent=1 // pred_check_branch
      %1704 = sbr.rel (0) target = $region49
    $region48: #{_forward.6} parent=1 // pred_region
      %s1706 = ssub.s32 256, 256
      %1707 = vsyncadd [#allocation14], %s1706
      %s1708 = sshll.u32 [#allocation13], 4
      %s1709 = int_to_ptr.vmem [resolvable:$true] %s1708
      %1714 = dma.vmem_to_hbm [thread:$0]  %s1709, 256, %s5, [#allocation14], 128, 128, 8
    $region49: #{_forward.6} parent=1 // pred_fallthru
      _
    // Predicated region
    $region50: #{_forward.6} parent=1 // pred_check
      _
    $region51: #{_forward.6} parent=1 // pred_check_branch
      %1716 = sbr.rel (0) target = $region53
    $region52: #{_forward.6} parent=1 // pred_region
      %s1718 = ssub.s32 256, 256
      %1719 = vsyncadd [#allocation14], %s1718
      %s1720 = sshll.u32 [#allocation15], 4
      %s1721 = int_to_ptr.vmem [resolvable:$true] %s1720
      %1726 = dma.vmem_to_hbm [thread:$0]  %s1721, 256, %s6, [#allocation14], 128, 128, 8
    $region53: #{_forward.6} parent=1 // pred_fallthru
      _
    // Predicated region
    $region54: #{_forward.6} parent=1 // pred_check
      _
    $region55: #{_forward.6} parent=1 // pred_check_branch
      %1728 = sbr.rel (0) target = $region57
    $region56: #{_forward.6} parent=1 // pred_region
      %1729 = dma.done [#allocation6], 1024
    $region57: #{_forward.6} parent=1 // pred_fallthru
      _
    // Predicated region
    $region58: #{_forward.6} parent=1 // pred_check
      _
    $region59: #{_forward.6} parent=1 // pred_check_branch
      %1731 = sbr.rel (0) target = $region61
    $region60: #{_forward.6} parent=1 // pred_region
      %1732 = dma.done [#allocation14], 256
    $region61: #{_forward.6} parent=1 // pred_fallthru
      _
    // Predicated region
    $region62: #{_forward.6} parent=1 // pred_check
      _
    $region63: #{_forward.6} parent=1 // pred_check_branch
      %1734 = sbr.rel (0) target = $region65
    $region64: #{_forward.6} parent=1 // pred_region
      %1735 = dma.done [#allocation14], 256
    $region65: #{_forward.6} parent=1 // pred_fallthru
      _
    %1736 = vsyncpa [#allocation5], 1
    %1737 = vsyncpa [#allocation8], 1
    %1738 = vsyncpa [#allocation11], 1
    %1739 = vsyncpa [#allocation6], 1
    %1740 = vsyncpa [#allocation14], 1

</llo_original>
